<compile_context>
chip_gen: v7x
topology: tpu7x:2x2x1
jax: 0.10.0
libtpu: 0.0.40
codegen_flags: <defaults>
</compile_context>

<pallas_src>
import math
from functools import partial

import jax
import jax.numpy as jnp
import numpy as np
from jax.experimental import pallas as pl
from jax.experimental.pallas import tpu as pltpu

DEFAULT_DIM_HEAD = 64
LN_EPS = 1e-5  # nn.LayerNorm default


# ----------------------------------------------------------------------------
# In-kernel math helpers (traced inside the Pallas kernel)
# ----------------------------------------------------------------------------
def _layernorm(x, g, b):
    # x: (M, D) f32, g/b: (1, D) f32.  Biased variance, eps=1e-5 (PyTorch).
    mu = jnp.mean(x, axis=-1, keepdims=True)
    var = jnp.mean((x - mu) * (x - mu), axis=-1, keepdims=True)
    return (x - mu) * jax.lax.rsqrt(var + LN_EPS) * g + b


def _gelu_tanh(x):
    # tanh-form GELU: 1 EUP op + a handful of VALU ops.  Max deviation from the
    # exact erf GELU (F.gelu default) is ~1e-3, well under bf16 matmul noise.
    c = math.sqrt(2.0 / math.pi)
    return 0.5 * x * (1.0 + jnp.tanh(c * (x + 0.044715 * x * x * x)))


# ----------------------------------------------------------------------------
# Fused encoder-stack kernel.
# grid = (m_tiles, n_layer); one grid step == one ('a', 'f') layer pair on one
# row tile.  The residual stream lives in the output VMEM block (resident across
# the layer axis); per-layer weight slabs are streamed by layer-indexed BlockSpecs.
# ----------------------------------------------------------------------------
def encoder_stack_kernel(x_hbm,                         # (M, D) f32, HBM (pl.ANY)
                         ag_ref, ab_ref,                # (1, 1, D) attn pre-LN
                         wqkv_ref,                      # (1, D, 3*H*Dh) bf16 (fused QKV)
                         wo_ref, bo_ref,                # (1, H*Dh, D) bf16 / (1, 1, D)
                         fg_ref, fb_ref,                # (1, 1, D) ff pre-LN
                         w1_ref, b1_ref,                # (1, D, F) bf16 / (1, 1, F)
                         w2_ref, b2_ref,                # (1, F, D) bf16 / (1, 1, D)
                         lng_ref, lnb_ref,              # (1, D) final LN
                         o_ref,                         # (M_t, D) f32, resident residual stream
                         attn_scr,                      # (M_t, H*Dh) bf16 scratch (head outputs)
                         *, B_t, N, heads, dim_head, scale, ff_chunk):
    m = pl.program_id(0)
    l = pl.program_id(1)
    n_layers = pl.num_programs(1)
    M_t, D = o_ref.shape
    HDh = heads * dim_head

    @pl.when(l == 0)
    def _():
        # Pull this row tile of the embedded tokens straight into the resident
        # residual-stream buffer (one DMA; the input never occupies a VMEM block).
        pltpu.sync_copy(x_hbm.at[pl.ds(m * M_t, M_t), :], o_ref)

    x = o_ref[...]                                      # (M_t, D) f32

    # ------------------- attention block (pre-norm) -------------------
    xnb = _layernorm(x, ag_ref[0], ab_ref[0]).astype(jnp.bfloat16)
    # Fused QKV projection: one full-width bf16 MXU matmul (K=D, Nout=3*H*Dh).
    qkv = jnp.dot(xnb, wqkv_ref[0], preferred_element_type=jnp.float32)   # (M_t, 3*HDh)
    q = (qkv[:, :HDh] * scale).astype(jnp.bfloat16)     # fold 1/sqrt(Dh) into q
    k = qkv[:, HDh:2 * HDh].astype(jnp.bfloat16)
    v = qkv[:, 2 * HDh:].astype(jnp.bfloat16)

    # Per-head score / attn@V matmuls (bf16 operands, f32 accumulation).  Head
    # outputs are written into a bf16 scratch slab so the output projection is a
    # single K=H*Dh matmul (no f32 accumulator live across the head loop).
    for h in range(heads):
        sl = slice(h * dim_head, (h + 1) * dim_head)
        qh = q[:, sl].reshape(B_t, N, dim_head)
        kh = k[:, sl].reshape(B_t, N, dim_head)
        vh = v[:, sl].reshape(B_t, N, dim_head)
        dots = jax.lax.dot_general(qh, kh, (((2,), (2,)), ((0,), (0,))),
                                   preferred_element_type=jnp.float32)    # (B_t, N, N)
        mx = jnp.max(dots, axis=-1, keepdims=True)
        p = jnp.exp(dots - mx)
        attn = p * pl.reciprocal(jnp.sum(p, axis=-1, keepdims=True), approx=True)
        oh = jax.lax.dot_general(attn.astype(jnp.bfloat16), vh,
                                 (((2,), (1,)), ((0,), (0,))),
                                 preferred_element_type=jnp.float32)      # (B_t, N, Dh)
        attn_scr[:, sl] = oh.reshape(M_t, dim_head).astype(jnp.bfloat16)

    # Fused output projection (K = H*Dh) + residual add + to_out bias.
    y = jnp.dot(attn_scr[...], wo_ref[0], preferred_element_type=jnp.float32)
    x = x + y + bo_ref[0]

    # ------------------- feed-forward block (pre-norm), hidden dim chunked ----
    xn2 = _layernorm(x, fg_ref[0], fb_ref[0]).astype(jnp.bfloat16)
    F = w1_ref.shape[2]
    y2 = jnp.zeros((M_t, D), jnp.float32)
    # Static chunk loop (small trip count, 128-aligned static lane slices): the
    # full (M, F) f32 hidden / bf16 copy is never materialized.
    for c0 in range(0, F, ff_chunk):
        c1 = c0 + ff_chunk
        hd = jnp.dot(xn2, w1_ref[0, :, c0:c1],
                     preferred_element_type=jnp.float32) + b1_ref[0, :, c0:c1]
        hd = _gelu_tanh(hd)
        y2 = y2 + jnp.dot(hd.astype(jnp.bfloat16), w2_ref[0, c0:c1, :],
                          preferred_element_type=jnp.float32)
    x = x + y2 + b2_ref[0]                              # residual add + bias

    # ------------------- write back residual stream / final LN ----------------
    @pl.when(l < n_layers - 1)
    def _():
        o_ref[...] = x

    @pl.when(l == n_layers - 1)
    def _():
        o_ref[...] = _layernorm(x, lng_ref[...], lnb_ref[...])


# ----------------------------------------------------------------------------
# Wrapper
# ----------------------------------------------------------------------------
def _pick_ff_chunk(F):
    # Largest 128-multiple chunk <= 1024 that divides F (falls back to F).
    if F <= 1024:
        return F
    for c in (1024, 768, 512, 384, 256, 128):
        if F % c == 0:
            return c
    return F


def _vmem_limit_bytes(M_t, D, HDh, F, ff_chunk, B_t, N):
    # Double-buffered bf16 per-layer weight slabs + resident activations +
    # largest in-flight intermediates (deliberately generous), clamped to chip VMEM.
    w = 2 * 2 * (D * 3 * HDh + HDh * D + 2 * D * F)
    act = (M_t * D * 4                       # resident residual stream (output block)
           + M_t * HDh * 2                   # assembled head outputs (scratch)
           + M_t * 3 * HDh * (4 + 2)         # fused qkv f32 + bf16 copies
           + M_t * ff_chunk * (4 + 2)        # one FFN hidden chunk f32 + bf16
           + 2 * B_t * N * N * 4             # per-head scores + probs
           + 4 * M_t * D * 4)                # x / xn / y / y2 temporaries
    est = int(1.5 * (w + act)) + (8 << 20)
    est = max(est, 32 << 20)
    try:
        cap = int(pltpu.get_tpu_info().vmem_capacity_bytes)
    except Exception:
        cap = 64 << 20                       # v7x per-TC VMEM (most restrictive)
    return min(est, cap - (4 << 20))


def encoder_stack(x2d, p, *, B, N, heads, dim_head, m_tiles=1):
    M, D = x2d.shape
    L = p["wqkv"].shape[0]
    HDh = heads * dim_head
    F = p["w1"].shape[2]
    assert B % m_tiles == 0, "m_tiles must divide the batch (tiles hold whole sequences)"
    B_t = B // m_tiles           # sequences per row tile (attention stays intra-tile)
    M_t = B_t * N
    ff_chunk = _pick_ff_chunk(F)

    kernel = partial(encoder_stack_kernel, B_t=B_t, N=N, heads=heads,
                     dim_head=dim_head, scale=dim_head ** -0.5, ff_chunk=ff_chunk)

    def layer_spec(arr):
        # Per-layer weight slab: block (1, ...) selected by the layer grid axis.
        nd = arr.ndim
        return pl.BlockSpec((1,) + arr.shape[1:],
                            lambda m, l, n=nd: (l,) + (0,) * (n - 1))

    def whole_spec(arr):
        nd = arr.ndim
        return pl.BlockSpec(arr.shape, lambda m, l, n=nd: (0,) * n)

    return pl.pallas_call(
        kernel,
        out_shape=jax.ShapeDtypeStruct((M, D), jnp.float32),
        grid=(m_tiles, L),
        in_specs=[
            pl.BlockSpec(memory_space=pl.ANY),        # embedded tokens stay in HBM
            layer_spec(p["ln1_g"]), layer_spec(p["ln1_b"]),
            layer_spec(p["wqkv"]),
            layer_spec(p["wo"]), layer_spec(p["bo"]),
            layer_spec(p["ln2_g"]), layer_spec(p["ln2_b"]),
            layer_spec(p["w1"]), layer_spec(p["b1"]),
            layer_spec(p["w2"]), layer_spec(p["b2"]),
            whole_spec(p["norm_g"]), whole_spec(p["norm_b"]),
        ],
        out_specs=pl.BlockSpec((M_t, D), lambda m, l: (m, 0)),
        scratch_shapes=[pltpu.VMEM((M_t, HDh), jnp.bfloat16)],
        input_output_aliases={0: 0},                  # residual stream written in place
        compiler_params=pltpu.CompilerParams(
            dimension_semantics=("parallel", "arbitrary"),
            vmem_limit_bytes=_vmem_limit_bytes(M_t, D, HDh, F, ff_chunk, B_t, N)),
    )(x2d, p["ln1_g"], p["ln1_b"], p["wqkv"], p["wo"], p["bo"],
      p["ln2_g"], p["ln2_b"], p["w1"], p["b1"], p["w2"], p["b2"],
      p["norm_g"], p["norm_b"])


def bert_embedder_forward(params, tokens, *, heads, dim_head, m_tiles=1):
    B, N = tokens.shape
    D = params["token_emb"].shape[1]
    # token embedding + absolute positional embedding (glue; gather in JAX).
    # emb_dropout(p=0) and project_emb=Identity are no-ops.
    x = params["token_emb"][tokens] + params["pos_emb"][:N][None, :, :]
    x2d = x.reshape(B * N, D)      # flatten batch*seq into the matmul M dimension
    y2d = encoder_stack(x2d, params, B=B, N=N, heads=heads,
                        dim_head=dim_head, m_tiles=m_tiles)
    return y2d.reshape(B, N, D)


# ----------------------------------------------------------------------------
# Parameter init (synthetic, deterministic; fused/flat, layer-stacked, bf16 weights)
# ----------------------------------------------------------------------------
def init_params(key, *, vocab_size, max_seq_len, n_embed, n_layer,
                heads=8, dim_head=DEFAULT_DIM_HEAD, ff_mult=4):
    D, H, Dh = n_embed, heads, dim_head
    HDh = H * Dh
    Fh = int(D * ff_mult)
    L = n_layer
    ks = iter(jax.random.split(key, 2 + 9 * n_layer))

    def unif(k, shape, fan_in):
        b = 1.0 / math.sqrt(fan_in)
        return jax.random.uniform(k, shape, jnp.float32, -b, b)

    wqkv, wo, bo, w1, b1, w2, b2 = ([] for _ in range(7))
    for _ in range(n_layer):
        wq = unif(next(ks), (D, HDh), D)          # columns [h*Dh:(h+1)*Dh] = head h
        wk = unif(next(ks), (D, HDh), D)
        wv = unif(next(ks), (D, HDh), D)
        wqkv.append(jnp.concatenate([wq, wk, wv], axis=-1))   # (D, 3*HDh)
        wo.append(unif(next(ks), (HDh, D), HDh))
        bo.append(unif(next(ks), (1, D), HDh))
        w1.append(unif(next(ks), (D, Fh), D))
        b1.append(unif(next(ks), (1, Fh), D))
        w2.append(unif(next(ks), (Fh, D), Fh))
        b2.append(unif(next(ks), (1, D), Fh))

    return {
        "token_emb": 0.02 * jax.random.normal(next(ks), (vocab_size, D), jnp.float32),
        "pos_emb": 0.02 * jax.random.normal(next(ks), (max_seq_len, D), jnp.float32),
        "ln1_g": jnp.ones((L, 1, D), jnp.float32), "ln1_b": jnp.zeros((L, 1, D), jnp.float32),
        "wqkv": jnp.stack(wqkv).astype(jnp.bfloat16),
        "wo": jnp.stack(wo).astype(jnp.bfloat16),
        "bo": jnp.stack(bo),
        "ln2_g": jnp.ones((L, 1, D), jnp.float32), "ln2_b": jnp.zeros((L, 1, D), jnp.float32),
        "w1": jnp.stack(w1).astype(jnp.bfloat16), "b1": jnp.stack(b1),
        "w2": jnp.stack(w2).astype(jnp.bfloat16), "b2": jnp.stack(b2),
        "norm_g": jnp.ones((1, D), jnp.float32), "norm_b": jnp.zeros((1, D), jnp.float32),
    }


# ----------------------------------------------------------------------------
# Pure-JAX f32 reference (PyTorch semantics; bf16 weights upcast, exact GELU)
# ----------------------------------------------------------------------------
def _ln_ref(x, g, b):
    mu = jnp.mean(x, axis=-1, keepdims=True)
    var = jnp.mean((x - mu) ** 2, axis=-1, keepdims=True)
    return (x - mu) * jax.lax.rsqrt(var + LN_EPS) * g + b


def reference_forward(params, tokens, *, heads, dim_head):
    HI = jax.lax.Precision.HIGHEST
    H, Dh = heads, dim_head
    HDh = H * Dh
    B, N = tokens.shape
    D = params["token_emb"].shape[1]
    L = params["wqkv"].shape[0]
    x = params["token_emb"][tokens] + params["pos_emb"][:N][None, :, :]
    for l in range(L):
        # attention block
        wqkv = params["wqkv"][l].astype(jnp.float32)
        wq, wk, wv = wqkv[:, :HDh], wqkv[:, HDh:2 * HDh], wqkv[:, 2 * HDh:]
        wo = params["wo"][l].astype(jnp.float32)
        r = x
        xn = _ln_ref(x, params["ln1_g"][l], params["ln1_b"][l])
        q = jnp.einsum("bnd,de->bne", xn, wq, precision=HI)
        k = jnp.einsum("bnd,de->bne", xn, wk, precision=HI)
        v = jnp.einsum("bnd,de->bne", xn, wv, precision=HI)
        q, k, v = [t.reshape(B, N, H, Dh).transpose(0, 2, 1, 3) for t in (q, k, v)]
        dots = jnp.einsum("bhid,bhjd->bhij", q, k, precision=HI) * (Dh ** -0.5)
        attn = jax.nn.softmax(dots, axis=-1)
        out = jnp.einsum("bhij,bhjd->bhid", attn, v, precision=HI)
        out = out.transpose(0, 2, 1, 3).reshape(B, N, HDh)
        x = jnp.einsum("bne,ed->bnd", out, wo, precision=HI) + params["bo"][l] + r
        # feed-forward block
        r = x
        xn = _ln_ref(x, params["ln2_g"][l], params["ln2_b"][l])
        w1 = params["w1"][l].astype(jnp.float32)
        w2 = params["w2"][l].astype(jnp.float32)
        hdn = jnp.einsum("bnd,de->bne", xn, w1, precision=HI) + params["b1"][l]
        hdn = jax.nn.gelu(hdn, approximate=False)
        x = jnp.einsum("bne,ed->bnd", hdn, w2, precision=HI) + params["b2"][l] + r
    return _ln_ref(x, params["norm_g"], params["norm_b"])


# ----------------------------------------------------------------------------
if __name__ == "__main__":
    key = jax.random.PRNGKey(0)
    B, N = 2, 8                 # batch, sequence length (<= max_seq_len)
    n_embed, n_layer = 32, 2    # BERTEmbedder(n_embed=32, n_layer=2)
    vocab_size = 1000           # synthetic vocab (module default 30522)
    heads, dim_head = 8, DEFAULT_DIM_HEAD

    params = init_params(key, vocab_size=vocab_size, max_seq_len=77,
                         n_embed=n_embed, n_layer=n_layer,
                         heads=heads, dim_head=dim_head)
    tokens = jax.random.randint(jax.random.fold_in(key, 123), (B, N),
                                0, vocab_size, dtype=jnp.int32)

    fwd = jax.jit(partial(bert_embedder_forward, heads=heads, dim_head=dim_head))
    z = jax.block_until_ready(fwd(params, tokens))
    assert z.shape == (B, N, n_embed) and z.dtype == jnp.float32

    # Kernel uses bf16 matmul inputs (f32 accumulation), approx reciprocal and
    # tanh-GELU, so allow a bf16-level tolerance vs the full-f32 / exact-GELU
    # reference; real bugs give O(1) errors.
    z_ref = reference_forward(params, tokens, heads=heads, dim_head=dim_head)
    np.testing.assert_allclose(np.asarray(z), np.asarray(z_ref), rtol=5e-2, atol=5e-2)
    print("KERNEL_OK")
</pallas_src>

<mosaic_0001>
module attributes {stable_mosaic.version = 11 : i64} {
  func.func @encoder_stack_kernel(%arg0: i32, %arg1: i32, %arg2: memref<16x32xf32, #tpu.memory_space<any>>, %arg3: memref<1x1x32xf32, #tpu.memory_space<vmem>>, %arg4: memref<1x1x32xf32, #tpu.memory_space<vmem>>, %arg5: memref<1x32x1536xbf16, #tpu.memory_space<vmem>>, %arg6: memref<1x512x32xbf16, #tpu.memory_space<vmem>>, %arg7: memref<1x1x32xf32, #tpu.memory_space<vmem>>, %arg8: memref<1x1x32xf32, #tpu.memory_space<vmem>>, %arg9: memref<1x1x32xf32, #tpu.memory_space<vmem>>, %arg10: memref<1x32x128xbf16, #tpu.memory_space<vmem>>, %arg11: memref<1x1x128xf32, #tpu.memory_space<vmem>>, %arg12: memref<1x128x32xbf16, #tpu.memory_space<vmem>>, %arg13: memref<1x1x32xf32, #tpu.memory_space<vmem>>, %arg14: memref<1x32xf32, #tpu.memory_space<vmem>>, %arg15: memref<1x32xf32, #tpu.memory_space<vmem>>, %arg16: memref<16x32xf32, #tpu.memory_space<vmem>>, %arg17: memref<16x512xbf16, #tpu.memory_space<vmem>>) attributes {dimension_semantics = [#tpu.dimension_semantics<parallel>, #tpu.dimension_semantics<arbitrary>], iteration_bounds = array<i64: 1, 2>, scalar_prefetch = 0 : i64, scratch_operands = 1 : i64, tpu.core_type = #tpu.core_type<tc>, window_params = [{}, {transform_indices = @transform_1, window_bounds = array<i64: 1, 1, 32>}, {transform_indices = @transform_2, window_bounds = array<i64: 1, 1, 32>}, {transform_indices = @transform_3, window_bounds = array<i64: 1, 32, 1536>}, {transform_indices = @transform_4, window_bounds = array<i64: 1, 512, 32>}, {transform_indices = @transform_5, window_bounds = array<i64: 1, 1, 32>}, {transform_indices = @transform_6, window_bounds = array<i64: 1, 1, 32>}, {transform_indices = @transform_7, window_bounds = array<i64: 1, 1, 32>}, {transform_indices = @transform_8, window_bounds = array<i64: 1, 32, 128>}, {transform_indices = @transform_9, window_bounds = array<i64: 1, 1, 128>}, {transform_indices = @transform_10, window_bounds = array<i64: 1, 128, 32>}, {transform_indices = @transform_11, window_bounds = array<i64: 1, 1, 32>}, {pipeline_mode = #tpu.pipeline_mode<synchronous>, transform_indices = @transform_12, window_bounds = array<i64: 1, 32>}, {pipeline_mode = #tpu.pipeline_mode<synchronous>, transform_indices = @transform_13, window_bounds = array<i64: 1, 32>}, {transform_indices = @transform_14, window_bounds = array<i64: 16, 32>}]} {
    %c0_i32 = arith.constant 0 : i32
    %0 = arith.cmpi eq, %arg1, %c0_i32 : i32
    %1 = arith.extui %0 : i1 to i32
    %c0_i32_0 = arith.constant 0 : i32
    %2 = arith.cmpi ne, %1, %c0_i32_0 : i32
    scf.if %2 {
      %c16_i32 = arith.constant 16 : i32
      %295 = arith.muli %arg0, %c16_i32 : i32
      "tpu.region"() ({
        %296 = tpu.sem_alloc : memref<!tpu.dma_semaphore, #tpu.memory_space<semaphore_mem>>
        %c0_i32_100 = arith.constant 0 : i32
        %297 = tpu.memref_slice %arg2[%295, %c0_i32_100] : memref<16x32xf32, #tpu.memory_space<any>> -> memref<16x32xf32, #tpu.memory_space<any>>
        tpu.enqueue_dma source(%297 : memref<16x32xf32, #tpu.memory_space<any>>) target(%arg16 : memref<16x32xf32, #tpu.memory_space<vmem>>) target_semaphore(%296 : memref<!tpu.dma_semaphore, #tpu.memory_space<semaphore_mem>>)
        %c0_i32_101 = arith.constant 0 : i32
        %298 = tpu.memref_slice %arg2[%295, %c0_i32_101] : memref<16x32xf32, #tpu.memory_space<any>> -> memref<16x32xf32, #tpu.memory_space<any>>
        tpu.wait_dma2 semaphore(%296 : memref<!tpu.dma_semaphore, #tpu.memory_space<semaphore_mem>>) src(%298 : memref<16x32xf32, #tpu.memory_space<any>>) dst(%arg16 : memref<16x32xf32, #tpu.memory_space<vmem>>)
        tpu.yield
      }) : () -> ()
    } else {
    }
    %c0 = arith.constant 0 : index
    %c0_1 = arith.constant 0 : index
    %3 = vector.load %arg16[%c0, %c0_1] : memref<16x32xf32, #tpu.memory_space<vmem>>, vector<16x32xf32>
    %c0_2 = arith.constant 0 : index
    %c0_3 = arith.constant 0 : index
    %c0_4 = arith.constant 0 : index
    %4 = vector.load %arg3[%c0_2, %c0_3, %c0_4] : memref<1x1x32xf32, #tpu.memory_space<vmem>>, vector<1x1x32xf32>
    %5 = vector.shape_cast %4 : vector<1x1x32xf32> to vector<1x32xf32>
    %c0_5 = arith.constant 0 : index
    %c0_6 = arith.constant 0 : index
    %c0_7 = arith.constant 0 : index
    %6 = vector.load %arg4[%c0_5, %c0_6, %c0_7] : memref<1x1x32xf32, #tpu.memory_space<vmem>>, vector<1x1x32xf32>
    %7 = vector.shape_cast %6 : vector<1x1x32xf32> to vector<1x32xf32>
    %cst = arith.constant dense<0.000000e+00> : vector<16xf32>
    %8 = vector.multi_reduction <add>, %3, %cst [1] : vector<16x32xf32> to vector<16xf32>
    %9 = vector.shape_cast %8 : vector<16xf32> to vector<16x1xf32>
    %cst_8 = arith.constant 3.200000e+01 : f32
    %10 = vector.broadcast %cst_8 : f32 to vector<16x1xf32>
    %11 = arith.divf %9, %10 : vector<16x1xf32>
    %12 = vector.broadcast %11 : vector<16x1xf32> to vector<16x32xf32>
    %13 = arith.subf %3, %12 : vector<16x32xf32>
    %14 = vector.broadcast %11 : vector<16x1xf32> to vector<16x32xf32>
    %15 = arith.subf %3, %14 : vector<16x32xf32>
    %16 = arith.mulf %13, %15 : vector<16x32xf32>
    %cst_9 = arith.constant dense<0.000000e+00> : vector<16xf32>
    %17 = vector.multi_reduction <add>, %16, %cst_9 [1] : vector<16x32xf32> to vector<16xf32>
    %18 = vector.shape_cast %17 : vector<16xf32> to vector<16x1xf32>
    %cst_10 = arith.constant 3.200000e+01 : f32
    %19 = vector.broadcast %cst_10 : f32 to vector<16x1xf32>
    %20 = arith.divf %18, %19 : vector<16x1xf32>
    %21 = vector.broadcast %11 : vector<16x1xf32> to vector<16x32xf32>
    %22 = arith.subf %3, %21 : vector<16x32xf32>
    %cst_11 = arith.constant 9.99999974E-6 : f32
    %23 = vector.broadcast %cst_11 : f32 to vector<16x1xf32>
    %24 = arith.addf %20, %23 : vector<16x1xf32>
    %25 = math.rsqrt %24 : vector<16x1xf32>
    %26 = vector.broadcast %25 : vector<16x1xf32> to vector<16x32xf32>
    %27 = arith.mulf %22, %26 : vector<16x32xf32>
    %28 = vector.broadcast %5 : vector<1x32xf32> to vector<16x32xf32>
    %29 = arith.mulf %27, %28 : vector<16x32xf32>
    %30 = vector.broadcast %7 : vector<1x32xf32> to vector<16x32xf32>
    %31 = arith.addf %29, %30 : vector<16x32xf32>
    %32 = arith.truncf %31 : vector<16x32xf32> to vector<16x32xbf16>
    %c0_12 = arith.constant 0 : index
    %c0_13 = arith.constant 0 : index
    %c0_14 = arith.constant 0 : index
    %33 = vector.load %arg5[%c0_12, %c0_13, %c0_14] : memref<1x32x1536xbf16, #tpu.memory_space<vmem>>, vector<1x32x1536xbf16>
    %34 = vector.shape_cast %33 : vector<1x32x1536xbf16> to vector<32x1536xbf16>
    %cst_15 = arith.constant dense<0.000000e+00> : vector<16x1536xf32>
    %35 = tpu.matmul %32, %34, %cst_15 {dimension_numbers = #tpu.dot_dimension_numbers<[1], [0], [0], [1], [0, 0, 1, 1], [], []>} : vector<16x32xbf16>, vector<32x1536xbf16>, vector<16x1536xf32> -> vector<16x1536xf32>
    %36 = vector.extract_strided_slice %35 {offsets = [0, 0], sizes = [16, 512], strides = [1, 1]} : vector<16x1536xf32> to vector<16x512xf32>
    %cst_16 = arith.constant 1.250000e-01 : f32
    %37 = vector.broadcast %cst_16 : f32 to vector<16x512xf32>
    %38 = arith.mulf %36, %37 : vector<16x512xf32>
    %39 = arith.truncf %38 : vector<16x512xf32> to vector<16x512xbf16>
    %40 = vector.extract_strided_slice %35 {offsets = [0, 512], sizes = [16, 512], strides = [1, 1]} : vector<16x1536xf32> to vector<16x512xf32>
    %41 = arith.truncf %40 : vector<16x512xf32> to vector<16x512xbf16>
    %42 = vector.extract_strided_slice %35 {offsets = [0, 1024], sizes = [16, 512], strides = [1, 1]} : vector<16x1536xf32> to vector<16x512xf32>
    %43 = arith.truncf %42 : vector<16x512xf32> to vector<16x512xbf16>
    %44 = vector.extract_strided_slice %39 {offsets = [0, 0], sizes = [16, 64], strides = [1, 1]} : vector<16x512xbf16> to vector<16x64xbf16>
    %45 = vector.shape_cast %44 : vector<16x64xbf16> to vector<2x8x64xbf16>
    %46 = vector.extract_strided_slice %41 {offsets = [0, 0], sizes = [16, 64], strides = [1, 1]} : vector<16x512xbf16> to vector<16x64xbf16>
    %47 = vector.shape_cast %46 : vector<16x64xbf16> to vector<2x8x64xbf16>
    %48 = vector.extract_strided_slice %43 {offsets = [0, 0], sizes = [16, 64], strides = [1, 1]} : vector<16x512xbf16> to vector<16x64xbf16>
    %49 = vector.shape_cast %48 : vector<16x64xbf16> to vector<2x8x64xbf16>
    %cst_17 = arith.constant dense<0.000000e+00> : vector<2x8x8xf32>
    %50 = tpu.matmul %45, %47, %cst_17 {dimension_numbers = #tpu.dot_dimension_numbers<[2], [2], [1], [1], [0, 0, 0, 1, 1, 1], [0], [0]>} : vector<2x8x64xbf16>, vector<2x8x64xbf16>, vector<2x8x8xf32> -> vector<2x8x8xf32>
    %cst_18 = arith.constant dense<0xFF800000> : vector<2x8xf32>
    %51 = vector.multi_reduction <maximumf>, %50, %cst_18 [2] : vector<2x8x8xf32> to vector<2x8xf32>
    %52 = vector.shape_cast %51 : vector<2x8xf32> to vector<2x8x1xf32>
    %53 = vector.broadcast %52 : vector<2x8x1xf32> to vector<2x8x8xf32>
    %54 = arith.subf %50, %53 : vector<2x8x8xf32>
    %55 = math.exp %54 : vector<2x8x8xf32>
    %cst_19 = arith.constant dense<0.000000e+00> : vector<2x8xf32>
    %56 = vector.multi_reduction <add>, %55, %cst_19 [2] : vector<2x8x8xf32> to vector<2x8xf32>
    %57 = vector.shape_cast %56 : vector<2x8xf32> to vector<2x8x1xf32>
    %58 = tpu.reciprocal %57 {approx = true} : vector<2x8x1xf32> -> vector<2x8x1xf32>
    %59 = vector.broadcast %58 : vector<2x8x1xf32> to vector<2x8x8xf32>
    %60 = arith.mulf %55, %59 : vector<2x8x8xf32>
    %61 = arith.truncf %60 : vector<2x8x8xf32> to vector<2x8x8xbf16>
    %cst_20 = arith.constant dense<0.000000e+00> : vector<2x8x64xf32>
    %62 = tpu.matmul %61, %49, %cst_20 {dimension_numbers = #tpu.dot_dimension_numbers<[2], [1], [1], [2], [0, 0, 0, 1, 1, 2], [0], [0]>} : vector<2x8x8xbf16>, vector<2x8x64xbf16>, vector<2x8x64xf32> -> vector<2x8x64xf32>
    %63 = vector.shape_cast %62 : vector<2x8x64xf32> to vector<16x64xf32>
    %64 = arith.truncf %63 : vector<16x64xf32> to vector<16x64xbf16>
    %c0_21 = arith.constant 0 : index
    %c0_22 = arith.constant 0 : index
    %65 = vector.load %arg17[%c0_21, %c0_22] : memref<16x512xbf16, #tpu.memory_space<vmem>>, vector<16x64xbf16>
    tpu.vector_store %arg17[%c0_21, %c0_22], %64 {strides = array<i32>} : memref<16x512xbf16, #tpu.memory_space<vmem>>, vector<16x64xbf16>,
    %66 = vector.extract_strided_slice %39 {offsets = [0, 64], sizes = [16, 64], strides = [1, 1]} : vector<16x512xbf16> to vector<16x64xbf16>
    %67 = vector.shape_cast %66 : vector<16x64xbf16> to vector<2x8x64xbf16>
    %68 = vector.extract_strided_slice %41 {offsets = [0, 64], sizes = [16, 64], strides = [1, 1]} : vector<16x512xbf16> to vector<16x64xbf16>
    %69 = vector.shape_cast %68 : vector<16x64xbf16> to vector<2x8x64xbf16>
    %70 = vector.extract_strided_slice %43 {offsets = [0, 64], sizes = [16, 64], strides = [1, 1]} : vector<16x512xbf16> to vector<16x64xbf16>
    %71 = vector.shape_cast %70 : vector<16x64xbf16> to vector<2x8x64xbf16>
    %cst_23 = arith.constant dense<0.000000e+00> : vector<2x8x8xf32>
    %72 = tpu.matmul %67, %69, %cst_23 {dimension_numbers = #tpu.dot_dimension_numbers<[2], [2], [1], [1], [0, 0, 0, 1, 1, 1], [0], [0]>} : vector<2x8x64xbf16>, vector<2x8x64xbf16>, vector<2x8x8xf32> -> vector<2x8x8xf32>
    %cst_24 = arith.constant dense<0xFF800000> : vector<2x8xf32>
    %73 = vector.multi_reduction <maximumf>, %72, %cst_24 [2] : vector<2x8x8xf32> to vector<2x8xf32>
    %74 = vector.shape_cast %73 : vector<2x8xf32> to vector<2x8x1xf32>
    %75 = vector.broadcast %74 : vector<2x8x1xf32> to vector<2x8x8xf32>
    %76 = arith.subf %72, %75 : vector<2x8x8xf32>
    %77 = math.exp %76 : vector<2x8x8xf32>
    %cst_25 = arith.constant dense<0.000000e+00> : vector<2x8xf32>
    %78 = vector.multi_reduction <add>, %77, %cst_25 [2] : vector<2x8x8xf32> to vector<2x8xf32>
    %79 = vector.shape_cast %78 : vector<2x8xf32> to vector<2x8x1xf32>
    %80 = tpu.reciprocal %79 {approx = true} : vector<2x8x1xf32> -> vector<2x8x1xf32>
    %81 = vector.broadcast %80 : vector<2x8x1xf32> to vector<2x8x8xf32>
    %82 = arith.mulf %77, %81 : vector<2x8x8xf32>
    %83 = arith.truncf %82 : vector<2x8x8xf32> to vector<2x8x8xbf16>
    %cst_26 = arith.constant dense<0.000000e+00> : vector<2x8x64xf32>
    %84 = tpu.matmul %83, %71, %cst_26 {dimension_numbers = #tpu.dot_dimension_numbers<[2], [1], [1], [2], [0, 0, 0, 1, 1, 2], [0], [0]>} : vector<2x8x8xbf16>, vector<2x8x64xbf16>, vector<2x8x64xf32> -> vector<2x8x64xf32>
    %85 = vector.shape_cast %84 : vector<2x8x64xf32> to vector<16x64xf32>
    %86 = arith.truncf %85 : vector<16x64xf32> to vector<16x64xbf16>
    %c0_27 = arith.constant 0 : index
    %c64 = arith.constant 64 : index
    %87 = vector.load %arg17[%c0_27, %c64] : memref<16x512xbf16, #tpu.memory_space<vmem>>, vector<16x64xbf16>
    tpu.vector_store %arg17[%c0_27, %c64], %86 {strides = array<i32>} : memref<16x512xbf16, #tpu.memory_space<vmem>>, vector<16x64xbf16>,
    %88 = vector.extract_strided_slice %39 {offsets = [0, 128], sizes = [16, 64], strides = [1, 1]} : vector<16x512xbf16> to vector<16x64xbf16>
    %89 = vector.shape_cast %88 : vector<16x64xbf16> to vector<2x8x64xbf16>
    %90 = vector.extract_strided_slice %41 {offsets = [0, 128], sizes = [16, 64], strides = [1, 1]} : vector<16x512xbf16> to vector<16x64xbf16>
    %91 = vector.shape_cast %90 : vector<16x64xbf16> to vector<2x8x64xbf16>
    %92 = vector.extract_strided_slice %43 {offsets = [0, 128], sizes = [16, 64], strides = [1, 1]} : vector<16x512xbf16> to vector<16x64xbf16>
    %93 = vector.shape_cast %92 : vector<16x64xbf16> to vector<2x8x64xbf16>
    %cst_28 = arith.constant dense<0.000000e+00> : vector<2x8x8xf32>
    %94 = tpu.matmul %89, %91, %cst_28 {dimension_numbers = #tpu.dot_dimension_numbers<[2], [2], [1], [1], [0, 0, 0, 1, 1, 1], [0], [0]>} : vector<2x8x64xbf16>, vector<2x8x64xbf16>, vector<2x8x8xf32> -> vector<2x8x8xf32>
    %cst_29 = arith.constant dense<0xFF800000> : vector<2x8xf32>
    %95 = vector.multi_reduction <maximumf>, %94, %cst_29 [2] : vector<2x8x8xf32> to vector<2x8xf32>
    %96 = vector.shape_cast %95 : vector<2x8xf32> to vector<2x8x1xf32>
    %97 = vector.broadcast %96 : vector<2x8x1xf32> to vector<2x8x8xf32>
    %98 = arith.subf %94, %97 : vector<2x8x8xf32>
    %99 = math.exp %98 : vector<2x8x8xf32>
    %cst_30 = arith.constant dense<0.000000e+00> : vector<2x8xf32>
    %100 = vector.multi_reduction <add>, %99, %cst_30 [2] : vector<2x8x8xf32> to vector<2x8xf32>
    %101 = vector.shape_cast %100 : vector<2x8xf32> to vector<2x8x1xf32>
    %102 = tpu.reciprocal %101 {approx = true} : vector<2x8x1xf32> -> vector<2x8x1xf32>
    %103 = vector.broadcast %102 : vector<2x8x1xf32> to vector<2x8x8xf32>
    %104 = arith.mulf %99, %103 : vector<2x8x8xf32>
    %105 = arith.truncf %104 : vector<2x8x8xf32> to vector<2x8x8xbf16>
    %cst_31 = arith.constant dense<0.000000e+00> : vector<2x8x64xf32>
    %106 = tpu.matmul %105, %93, %cst_31 {dimension_numbers = #tpu.dot_dimension_numbers<[2], [1], [1], [2], [0, 0, 0, 1, 1, 2], [0], [0]>} : vector<2x8x8xbf16>, vector<2x8x64xbf16>, vector<2x8x64xf32> -> vector<2x8x64xf32>
    %107 = vector.shape_cast %106 : vector<2x8x64xf32> to vector<16x64xf32>
    %108 = arith.truncf %107 : vector<16x64xf32> to vector<16x64xbf16>
    %c0_32 = arith.constant 0 : index
    %c128 = arith.constant 128 : index
    %109 = vector.load %arg17[%c0_32, %c128] : memref<16x512xbf16, #tpu.memory_space<vmem>>, vector<16x64xbf16>
    tpu.vector_store %arg17[%c0_32, %c128], %108 {strides = array<i32>} : memref<16x512xbf16, #tpu.memory_space<vmem>>, vector<16x64xbf16>,
    %110 = vector.extract_strided_slice %39 {offsets = [0, 192], sizes = [16, 64], strides = [1, 1]} : vector<16x512xbf16> to vector<16x64xbf16>
    %111 = vector.shape_cast %110 : vector<16x64xbf16> to vector<2x8x64xbf16>
    %112 = vector.extract_strided_slice %41 {offsets = [0, 192], sizes = [16, 64], strides = [1, 1]} : vector<16x512xbf16> to vector<16x64xbf16>
    %113 = vector.shape_cast %112 : vector<16x64xbf16> to vector<2x8x64xbf16>
    %114 = vector.extract_strided_slice %43 {offsets = [0, 192], sizes = [16, 64], strides = [1, 1]} : vector<16x512xbf16> to vector<16x64xbf16>
    %115 = vector.shape_cast %114 : vector<16x64xbf16> to vector<2x8x64xbf16>
    %cst_33 = arith.constant dense<0.000000e+00> : vector<2x8x8xf32>
    %116 = tpu.matmul %111, %113, %cst_33 {dimension_numbers = #tpu.dot_dimension_numbers<[2], [2], [1], [1], [0, 0, 0, 1, 1, 1], [0], [0]>} : vector<2x8x64xbf16>, vector<2x8x64xbf16>, vector<2x8x8xf32> -> vector<2x8x8xf32>
    %cst_34 = arith.constant dense<0xFF800000> : vector<2x8xf32>
    %117 = vector.multi_reduction <maximumf>, %116, %cst_34 [2] : vector<2x8x8xf32> to vector<2x8xf32>
    %118 = vector.shape_cast %117 : vector<2x8xf32> to vector<2x8x1xf32>
    %119 = vector.broadcast %118 : vector<2x8x1xf32> to vector<2x8x8xf32>
    %120 = arith.subf %116, %119 : vector<2x8x8xf32>
    %121 = math.exp %120 : vector<2x8x8xf32>
    %cst_35 = arith.constant dense<0.000000e+00> : vector<2x8xf32>
    %122 = vector.multi_reduction <add>, %121, %cst_35 [2] : vector<2x8x8xf32> to vector<2x8xf32>
    %123 = vector.shape_cast %122 : vector<2x8xf32> to vector<2x8x1xf32>
    %124 = tpu.reciprocal %123 {approx = true} : vector<2x8x1xf32> -> vector<2x8x1xf32>
    %125 = vector.broadcast %124 : vector<2x8x1xf32> to vector<2x8x8xf32>
    %126 = arith.mulf %121, %125 : vector<2x8x8xf32>
    %127 = arith.truncf %126 : vector<2x8x8xf32> to vector<2x8x8xbf16>
    %cst_36 = arith.constant dense<0.000000e+00> : vector<2x8x64xf32>
    %128 = tpu.matmul %127, %115, %cst_36 {dimension_numbers = #tpu.dot_dimension_numbers<[2], [1], [1], [2], [0, 0, 0, 1, 1, 2], [0], [0]>} : vector<2x8x8xbf16>, vector<2x8x64xbf16>, vector<2x8x64xf32> -> vector<2x8x64xf32>
    %129 = vector.shape_cast %128 : vector<2x8x64xf32> to vector<16x64xf32>
    %130 = arith.truncf %129 : vector<16x64xf32> to vector<16x64xbf16>
    %c0_37 = arith.constant 0 : index
    %c192 = arith.constant 192 : index
    %131 = vector.load %arg17[%c0_37, %c192] : memref<16x512xbf16, #tpu.memory_space<vmem>>, vector<16x64xbf16>
    tpu.vector_store %arg17[%c0_37, %c192], %130 {strides = array<i32>} : memref<16x512xbf16, #tpu.memory_space<vmem>>, vector<16x64xbf16>,
    %132 = vector.extract_strided_slice %39 {offsets = [0, 256], sizes = [16, 64], strides = [1, 1]} : vector<16x512xbf16> to vector<16x64xbf16>
    %133 = vector.shape_cast %132 : vector<16x64xbf16> to vector<2x8x64xbf16>
    %134 = vector.extract_strided_slice %41 {offsets = [0, 256], sizes = [16, 64], strides = [1, 1]} : vector<16x512xbf16> to vector<16x64xbf16>
    %135 = vector.shape_cast %134 : vector<16x64xbf16> to vector<2x8x64xbf16>
    %136 = vector.extract_strided_slice %43 {offsets = [0, 256], sizes = [16, 64], strides = [1, 1]} : vector<16x512xbf16> to vector<16x64xbf16>
    %137 = vector.shape_cast %136 : vector<16x64xbf16> to vector<2x8x64xbf16>
    %cst_38 = arith.constant dense<0.000000e+00> : vector<2x8x8xf32>
    %138 = tpu.matmul %133, %135, %cst_38 {dimension_numbers = #tpu.dot_dimension_numbers<[2], [2], [1], [1], [0, 0, 0, 1, 1, 1], [0], [0]>} : vector<2x8x64xbf16>, vector<2x8x64xbf16>, vector<2x8x8xf32> -> vector<2x8x8xf32>
    %cst_39 = arith.constant dense<0xFF800000> : vector<2x8xf32>
    %139 = vector.multi_reduction <maximumf>, %138, %cst_39 [2] : vector<2x8x8xf32> to vector<2x8xf32>
    %140 = vector.shape_cast %139 : vector<2x8xf32> to vector<2x8x1xf32>
    %141 = vector.broadcast %140 : vector<2x8x1xf32> to vector<2x8x8xf32>
    %142 = arith.subf %138, %141 : vector<2x8x8xf32>
    %143 = math.exp %142 : vector<2x8x8xf32>
    %cst_40 = arith.constant dense<0.000000e+00> : vector<2x8xf32>
    %144 = vector.multi_reduction <add>, %143, %cst_40 [2] : vector<2x8x8xf32> to vector<2x8xf32>
    %145 = vector.shape_cast %144 : vector<2x8xf32> to vector<2x8x1xf32>
    %146 = tpu.reciprocal %145 {approx = true} : vector<2x8x1xf32> -> vector<2x8x1xf32>
    %147 = vector.broadcast %146 : vector<2x8x1xf32> to vector<2x8x8xf32>
    %148 = arith.mulf %143, %147 : vector<2x8x8xf32>
    %149 = arith.truncf %148 : vector<2x8x8xf32> to vector<2x8x8xbf16>
    %cst_41 = arith.constant dense<0.000000e+00> : vector<2x8x64xf32>
    %150 = tpu.matmul %149, %137, %cst_41 {dimension_numbers = #tpu.dot_dimension_numbers<[2], [1], [1], [2], [0, 0, 0, 1, 1, 2], [0], [0]>} : vector<2x8x8xbf16>, vector<2x8x64xbf16>, vector<2x8x64xf32> -> vector<2x8x64xf32>
    %151 = vector.shape_cast %150 : vector<2x8x64xf32> to vector<16x64xf32>
    %152 = arith.truncf %151 : vector<16x64xf32> to vector<16x64xbf16>
    %c0_42 = arith.constant 0 : index
    %c256 = arith.constant 256 : index
    %153 = vector.load %arg17[%c0_42, %c256] : memref<16x512xbf16, #tpu.memory_space<vmem>>, vector<16x64xbf16>
    tpu.vector_store %arg17[%c0_42, %c256], %152 {strides = array<i32>} : memref<16x512xbf16, #tpu.memory_space<vmem>>, vector<16x64xbf16>,
    %154 = vector.extract_strided_slice %39 {offsets = [0, 320], sizes = [16, 64], strides = [1, 1]} : vector<16x512xbf16> to vector<16x64xbf16>
    %155 = vector.shape_cast %154 : vector<16x64xbf16> to vector<2x8x64xbf16>
    %156 = vector.extract_strided_slice %41 {offsets = [0, 320], sizes = [16, 64], strides = [1, 1]} : vector<16x512xbf16> to vector<16x64xbf16>
    %157 = vector.shape_cast %156 : vector<16x64xbf16> to vector<2x8x64xbf16>
    %158 = vector.extract_strided_slice %43 {offsets = [0, 320], sizes = [16, 64], strides = [1, 1]} : vector<16x512xbf16> to vector<16x64xbf16>
    %159 = vector.shape_cast %158 : vector<16x64xbf16> to vector<2x8x64xbf16>
    %cst_43 = arith.constant dense<0.000000e+00> : vector<2x8x8xf32>
    %160 = tpu.matmul %155, %157, %cst_43 {dimension_numbers = #tpu.dot_dimension_numbers<[2], [2], [1], [1], [0, 0, 0, 1, 1, 1], [0], [0]>} : vector<2x8x64xbf16>, vector<2x8x64xbf16>, vector<2x8x8xf32> -> vector<2x8x8xf32>
    %cst_44 = arith.constant dense<0xFF800000> : vector<2x8xf32>
    %161 = vector.multi_reduction <maximumf>, %160, %cst_44 [2] : vector<2x8x8xf32> to vector<2x8xf32>
    %162 = vector.shape_cast %161 : vector<2x8xf32> to vector<2x8x1xf32>
    %163 = vector.broadcast %162 : vector<2x8x1xf32> to vector<2x8x8xf32>
    %164 = arith.subf %160, %163 : vector<2x8x8xf32>
    %165 = math.exp %164 : vector<2x8x8xf32>
    %cst_45 = arith.constant dense<0.000000e+00> : vector<2x8xf32>
    %166 = vector.multi_reduction <add>, %165, %cst_45 [2] : vector<2x8x8xf32> to vector<2x8xf32>
    %167 = vector.shape_cast %166 : vector<2x8xf32> to vector<2x8x1xf32>
    %168 = tpu.reciprocal %167 {approx = true} : vector<2x8x1xf32> -> vector<2x8x1xf32>
    %169 = vector.broadcast %168 : vector<2x8x1xf32> to vector<2x8x8xf32>
    %170 = arith.mulf %165, %169 : vector<2x8x8xf32>
    %171 = arith.truncf %170 : vector<2x8x8xf32> to vector<2x8x8xbf16>
    %cst_46 = arith.constant dense<0.000000e+00> : vector<2x8x64xf32>
    %172 = tpu.matmul %171, %159, %cst_46 {dimension_numbers = #tpu.dot_dimension_numbers<[2], [1], [1], [2], [0, 0, 0, 1, 1, 2], [0], [0]>} : vector<2x8x8xbf16>, vector<2x8x64xbf16>, vector<2x8x64xf32> -> vector<2x8x64xf32>
    %173 = vector.shape_cast %172 : vector<2x8x64xf32> to vector<16x64xf32>
    %174 = arith.truncf %173 : vector<16x64xf32> to vector<16x64xbf16>
    %c0_47 = arith.constant 0 : index
    %c320 = arith.constant 320 : index
    %175 = vector.load %arg17[%c0_47, %c320] : memref<16x512xbf16, #tpu.memory_space<vmem>>, vector<16x64xbf16>
    tpu.vector_store %arg17[%c0_47, %c320], %174 {strides = array<i32>} : memref<16x512xbf16, #tpu.memory_space<vmem>>, vector<16x64xbf16>,
    %176 = vector.extract_strided_slice %39 {offsets = [0, 384], sizes = [16, 64], strides = [1, 1]} : vector<16x512xbf16> to vector<16x64xbf16>
    %177 = vector.shape_cast %176 : vector<16x64xbf16> to vector<2x8x64xbf16>
    %178 = vector.extract_strided_slice %41 {offsets = [0, 384], sizes = [16, 64], strides = [1, 1]} : vector<16x512xbf16> to vector<16x64xbf16>
    %179 = vector.shape_cast %178 : vector<16x64xbf16> to vector<2x8x64xbf16>
    %180 = vector.extract_strided_slice %43 {offsets = [0, 384], sizes = [16, 64], strides = [1, 1]} : vector<16x512xbf16> to vector<16x64xbf16>
    %181 = vector.shape_cast %180 : vector<16x64xbf16> to vector<2x8x64xbf16>
    %cst_48 = arith.constant dense<0.000000e+00> : vector<2x8x8xf32>
    %182 = tpu.matmul %177, %179, %cst_48 {dimension_numbers = #tpu.dot_dimension_numbers<[2], [2], [1], [1], [0, 0, 0, 1, 1, 1], [0], [0]>} : vector<2x8x64xbf16>, vector<2x8x64xbf16>, vector<2x8x8xf32> -> vector<2x8x8xf32>
    %cst_49 = arith.constant dense<0xFF800000> : vector<2x8xf32>
    %183 = vector.multi_reduction <maximumf>, %182, %cst_49 [2] : vector<2x8x8xf32> to vector<2x8xf32>
    %184 = vector.shape_cast %183 : vector<2x8xf32> to vector<2x8x1xf32>
    %185 = vector.broadcast %184 : vector<2x8x1xf32> to vector<2x8x8xf32>
    %186 = arith.subf %182, %185 : vector<2x8x8xf32>
    %187 = math.exp %186 : vector<2x8x8xf32>
    %cst_50 = arith.constant dense<0.000000e+00> : vector<2x8xf32>
    %188 = vector.multi_reduction <add>, %187, %cst_50 [2] : vector<2x8x8xf32> to vector<2x8xf32>
    %189 = vector.shape_cast %188 : vector<2x8xf32> to vector<2x8x1xf32>
    %190 = tpu.reciprocal %189 {approx = true} : vector<2x8x1xf32> -> vector<2x8x1xf32>
    %191 = vector.broadcast %190 : vector<2x8x1xf32> to vector<2x8x8xf32>
    %192 = arith.mulf %187, %191 : vector<2x8x8xf32>
    %193 = arith.truncf %192 : vector<2x8x8xf32> to vector<2x8x8xbf16>
    %cst_51 = arith.constant dense<0.000000e+00> : vector<2x8x64xf32>
    %194 = tpu.matmul %193, %181, %cst_51 {dimension_numbers = #tpu.dot_dimension_numbers<[2], [1], [1], [2], [0, 0, 0, 1, 1, 2], [0], [0]>} : vector<2x8x8xbf16>, vector<2x8x64xbf16>, vector<2x8x64xf32> -> vector<2x8x64xf32>
    %195 = vector.shape_cast %194 : vector<2x8x64xf32> to vector<16x64xf32>
    %196 = arith.truncf %195 : vector<16x64xf32> to vector<16x64xbf16>
    %c0_52 = arith.constant 0 : index
    %c384 = arith.constant 384 : index
    %197 = vector.load %arg17[%c0_52, %c384] : memref<16x512xbf16, #tpu.memory_space<vmem>>, vector<16x64xbf16>
    tpu.vector_store %arg17[%c0_52, %c384], %196 {strides = array<i32>} : memref<16x512xbf16, #tpu.memory_space<vmem>>, vector<16x64xbf16>,
    %198 = vector.extract_strided_slice %39 {offsets = [0, 448], sizes = [16, 64], strides = [1, 1]} : vector<16x512xbf16> to vector<16x64xbf16>
    %199 = vector.shape_cast %198 : vector<16x64xbf16> to vector<2x8x64xbf16>
    %200 = vector.extract_strided_slice %41 {offsets = [0, 448], sizes = [16, 64], strides = [1, 1]} : vector<16x512xbf16> to vector<16x64xbf16>
    %201 = vector.shape_cast %200 : vector<16x64xbf16> to vector<2x8x64xbf16>
    %202 = vector.extract_strided_slice %43 {offsets = [0, 448], sizes = [16, 64], strides = [1, 1]} : vector<16x512xbf16> to vector<16x64xbf16>
    %203 = vector.shape_cast %202 : vector<16x64xbf16> to vector<2x8x64xbf16>
    %cst_53 = arith.constant dense<0.000000e+00> : vector<2x8x8xf32>
    %204 = tpu.matmul %199, %201, %cst_53 {dimension_numbers = #tpu.dot_dimension_numbers<[2], [2], [1], [1], [0, 0, 0, 1, 1, 1], [0], [0]>} : vector<2x8x64xbf16>, vector<2x8x64xbf16>, vector<2x8x8xf32> -> vector<2x8x8xf32>
    %cst_54 = arith.constant dense<0xFF800000> : vector<2x8xf32>
    %205 = vector.multi_reduction <maximumf>, %204, %cst_54 [2] : vector<2x8x8xf32> to vector<2x8xf32>
    %206 = vector.shape_cast %205 : vector<2x8xf32> to vector<2x8x1xf32>
    %207 = vector.broadcast %206 : vector<2x8x1xf32> to vector<2x8x8xf32>
    %208 = arith.subf %204, %207 : vector<2x8x8xf32>
    %209 = math.exp %208 : vector<2x8x8xf32>
    %cst_55 = arith.constant dense<0.000000e+00> : vector<2x8xf32>
    %210 = vector.multi_reduction <add>, %209, %cst_55 [2] : vector<2x8x8xf32> to vector<2x8xf32>
    %211 = vector.shape_cast %210 : vector<2x8xf32> to vector<2x8x1xf32>
    %212 = tpu.reciprocal %211 {approx = true} : vector<2x8x1xf32> -> vector<2x8x1xf32>
    %213 = vector.broadcast %212 : vector<2x8x1xf32> to vector<2x8x8xf32>
    %214 = arith.mulf %209, %213 : vector<2x8x8xf32>
    %215 = arith.truncf %214 : vector<2x8x8xf32> to vector<2x8x8xbf16>
    %cst_56 = arith.constant dense<0.000000e+00> : vector<2x8x64xf32>
    %216 = tpu.matmul %215, %203, %cst_56 {dimension_numbers = #tpu.dot_dimension_numbers<[2], [1], [1], [2], [0, 0, 0, 1, 1, 2], [0], [0]>} : vector<2x8x8xbf16>, vector<2x8x64xbf16>, vector<2x8x64xf32> -> vector<2x8x64xf32>
    %217 = vector.shape_cast %216 : vector<2x8x64xf32> to vector<16x64xf32>
    %218 = arith.truncf %217 : vector<16x64xf32> to vector<16x64xbf16>
    %c0_57 = arith.constant 0 : index
    %c448 = arith.constant 448 : index
    %219 = vector.load %arg17[%c0_57, %c448] : memref<16x512xbf16, #tpu.memory_space<vmem>>, vector<16x64xbf16>
    tpu.vector_store %arg17[%c0_57, %c448], %218 {strides = array<i32>} : memref<16x512xbf16, #tpu.memory_space<vmem>>, vector<16x64xbf16>,
    %c0_58 = arith.constant 0 : index
    %c0_59 = arith.constant 0 : index
    %220 = vector.load %arg17[%c0_58, %c0_59] : memref<16x512xbf16, #tpu.memory_space<vmem>>, vector<16x512xbf16>
    %c0_60 = arith.constant 0 : index
    %c0_61 = arith.constant 0 : index
    %c0_62 = arith.constant 0 : index
    %221 = vector.load %arg6[%c0_60, %c0_61, %c0_62] : memref<1x512x32xbf16, #tpu.memory_space<vmem>>, vector<1x512x32xbf16>
    %222 = vector.shape_cast %221 : vector<1x512x32xbf16> to vector<512x32xbf16>
    %cst_63 = arith.constant dense<0.000000e+00> : vector<16x32xf32>
    %223 = tpu.matmul %220, %222, %cst_63 {dimension_numbers = #tpu.dot_dimension_numbers<[1], [0], [0], [1], [0, 0, 1, 1], [], []>} : vector<16x512xbf16>, vector<512x32xbf16>, vector<16x32xf32> -> vector<16x32xf32>
    %224 = arith.addf %3, %223 : vector<16x32xf32>
    %c0_64 = arith.constant 0 : index
    %c0_65 = arith.constant 0 : index
    %c0_66 = arith.constant 0 : index
    %225 = vector.load %arg7[%c0_64, %c0_65, %c0_66] : memref<1x1x32xf32, #tpu.memory_space<vmem>>, vector<1x1x32xf32>
    %226 = vector.shape_cast %225 : vector<1x1x32xf32> to vector<1x32xf32>
    %227 = vector.broadcast %226 : vector<1x32xf32> to vector<16x32xf32>
    %228 = arith.addf %224, %227 : vector<16x32xf32>
    %c0_67 = arith.constant 0 : index
    %c0_68 = arith.constant 0 : index
    %c0_69 = arith.constant 0 : index
    %229 = vector.load %arg8[%c0_67, %c0_68, %c0_69] : memref<1x1x32xf32, #tpu.memory_space<vmem>>, vector<1x1x32xf32>
    %230 = vector.shape_cast %229 : vector<1x1x32xf32> to vector<1x32xf32>
    %c0_70 = arith.constant 0 : index
    %c0_71 = arith.constant 0 : index
    %c0_72 = arith.constant 0 : index
    %231 = vector.load %arg9[%c0_70, %c0_71, %c0_72] : memref<1x1x32xf32, #tpu.memory_space<vmem>>, vector<1x1x32xf32>
    %232 = vector.shape_cast %231 : vector<1x1x32xf32> to vector<1x32xf32>
    %cst_73 = arith.constant dense<0.000000e+00> : vector<16xf32>
    %233 = vector.multi_reduction <add>, %228, %cst_73 [1] : vector<16x32xf32> to vector<16xf32>
    %234 = vector.shape_cast %233 : vector<16xf32> to vector<16x1xf32>
    %cst_74 = arith.constant 3.200000e+01 : f32
    %235 = vector.broadcast %cst_74 : f32 to vector<16x1xf32>
    %236 = arith.divf %234, %235 : vector<16x1xf32>
    %237 = vector.broadcast %236 : vector<16x1xf32> to vector<16x32xf32>
    %238 = arith.subf %228, %237 : vector<16x32xf32>
    %239 = vector.broadcast %236 : vector<16x1xf32> to vector<16x32xf32>
    %240 = arith.subf %228, %239 : vector<16x32xf32>
    %241 = arith.mulf %238, %240 : vector<16x32xf32>
    %cst_75 = arith.constant dense<0.000000e+00> : vector<16xf32>
    %242 = vector.multi_reduction <add>, %241, %cst_75 [1] : vector<16x32xf32> to vector<16xf32>
    %243 = vector.shape_cast %242 : vector<16xf32> to vector<16x1xf32>
    %cst_76 = arith.constant 3.200000e+01 : f32
    %244 = vector.broadcast %cst_76 : f32 to vector<16x1xf32>
    %245 = arith.divf %243, %244 : vector<16x1xf32>
    %246 = vector.broadcast %236 : vector<16x1xf32> to vector<16x32xf32>
    %247 = arith.subf %228, %246 : vector<16x32xf32>
    %cst_77 = arith.constant 9.99999974E-6 : f32
    %248 = vector.broadcast %cst_77 : f32 to vector<16x1xf32>
    %249 = arith.addf %245, %248 : vector<16x1xf32>
    %250 = math.rsqrt %249 : vector<16x1xf32>
    %251 = vector.broadcast %250 : vector<16x1xf32> to vector<16x32xf32>
    %252 = arith.mulf %247, %251 : vector<16x32xf32>
    %253 = vector.broadcast %230 : vector<1x32xf32> to vector<16x32xf32>
    %254 = arith.mulf %252, %253 : vector<16x32xf32>
    %255 = vector.broadcast %232 : vector<1x32xf32> to vector<16x32xf32>
    %256 = arith.addf %254, %255 : vector<16x32xf32>
    %257 = arith.truncf %256 : vector<16x32xf32> to vector<16x32xbf16>
    %cst_78 = arith.constant 0.000000e+00 : f32
    %258 = vector.broadcast %cst_78 : f32 to vector<16x32xf32>
    %c0_79 = arith.constant 0 : index
    %c0_80 = arith.constant 0 : index
    %c0_81 = arith.constant 0 : index
    %259 = vector.load %arg10[%c0_79, %c0_80, %c0_81] : memref<1x32x128xbf16, #tpu.memory_space<vmem>>, vector<1x32x128xbf16>
    %260 = vector.shape_cast %259 : vector<1x32x128xbf16> to vector<32x128xbf16>
    %cst_82 = arith.constant dense<0.000000e+00> : vector<16x128xf32>
    %261 = tpu.matmul %257, %260, %cst_82 {dimension_numbers = #tpu.dot_dimension_numbers<[1], [0], [0], [1], [0, 0, 1, 1], [], []>} : vector<16x32xbf16>, vector<32x128xbf16>, vector<16x128xf32> -> vector<16x128xf32>
    %c0_83 = arith.constant 0 : index
    %c0_84 = arith.constant 0 : index
    %c0_85 = arith.constant 0 : index
    %262 = vector.load %arg11[%c0_83, %c0_84, %c0_85] : memref<1x1x128xf32, #tpu.memory_space<vmem>>, vector<1x1x128xf32>
    %263 = vector.shape_cast %262 : vector<1x1x128xf32> to vector<1x128xf32>
    %264 = vector.broadcast %263 : vector<1x128xf32> to vector<16x128xf32>
    %265 = arith.addf %261, %264 : vector<16x128xf32>
    %cst_86 = arith.constant 5.000000e-01 : f32
    %266 = vector.broadcast %cst_86 : f32 to vector<16x128xf32>
    %267 = arith.mulf %266, %265 : vector<16x128xf32>
    %cst_87 = arith.constant 4.471500e-02 : f32
    %268 = vector.broadcast %cst_87 : f32 to vector<16x128xf32>
    %269 = arith.mulf %268, %265 : vector<16x128xf32>
    %270 = arith.mulf %269, %265 : vector<16x128xf32>
    %271 = arith.mulf %270, %265 : vector<16x128xf32>
    %272 = arith.addf %265, %271 : vector<16x128xf32>
    %cst_88 = arith.constant 0.797884583 : f32
    %273 = vector.broadcast %cst_88 : f32 to vector<16x128xf32>
    %274 = arith.mulf %273, %272 : vector<16x128xf32>
    %275 = math.tanh %274 : vector<16x128xf32>
    %cst_89 = arith.constant 1.000000e+00 : f32
    %276 = vector.broadcast %cst_89 : f32 to vector<16x128xf32>
    %277 = arith.addf %276, %275 : vector<16x128xf32>
    %278 = arith.mulf %267, %277 : vector<16x128xf32>
    %279 = arith.truncf %278 : vector<16x128xf32> to vector<16x128xbf16>
    %c0_90 = arith.constant 0 : index
    %c0_91 = arith.constant 0 : index
    %c0_92 = arith.constant 0 : index
    %280 = vector.load %arg12[%c0_90, %c0_91, %c0_92] : memref<1x128x32xbf16, #tpu.memory_space<vmem>>, vector<1x128x32xbf16>
    %281 = vector.shape_cast %280 : vector<1x128x32xbf16> to vector<128x32xbf16>
    %cst_93 = arith.constant dense<0.000000e+00> : vector<16x32xf32>
    %282 = tpu.matmul %279, %281, %cst_93 {dimension_numbers = #tpu.dot_dimension_numbers<[1], [0], [0], [1], [0, 0, 1, 1], [], []>} : vector<16x128xbf16>, vector<128x32xbf16>, vector<16x32xf32> -> vector<16x32xf32>
    %283 = arith.addf %258, %282 : vector<16x32xf32>
    %284 = arith.addf %228, %283 : vector<16x32xf32>
    %c0_94 = arith.constant 0 : index
    %c0_95 = arith.constant 0 : index
    %c0_96 = arith.constant 0 : index
    %285 = vector.load %arg13[%c0_94, %c0_95, %c0_96] : memref<1x1x32xf32, #tpu.memory_space<vmem>>, vector<1x1x32xf32>
    %286 = vector.shape_cast %285 : vector<1x1x32xf32> to vector<1x32xf32>
    %287 = vector.broadcast %286 : vector<1x32xf32> to vector<16x32xf32>
    %288 = arith.addf %284, %287 : vector<16x32xf32>
    %c1_i32 = arith.constant 1 : i32
    %289 = arith.cmpi slt, %arg1, %c1_i32 : i32
    %290 = arith.extui %289 : i1 to i32
    %c0_i32_97 = arith.constant 0 : i32
    %291 = arith.cmpi ne, %290, %c0_i32_97 : i32
    scf.if %291 {
      %c0_100 = arith.constant 0 : index
      %c0_101 = arith.constant 0 : index
      %295 = vector.load %arg16[%c0_100, %c0_101] : memref<16x32xf32, #tpu.memory_space<vmem>>, vector<16x32xf32>
      tpu.vector_store %arg16[%c0_100, %c0_101], %288 {strides = array<i32>} : memref<16x32xf32, #tpu.memory_space<vmem>>, vector<16x32xf32>,
    } else {
    }
    %c1_i32_98 = arith.constant 1 : i32
    %292 = arith.cmpi eq, %arg1, %c1_i32_98 : i32
    %293 = arith.extui %292 : i1 to i32
    %c0_i32_99 = arith.constant 0 : i32
    %294 = arith.cmpi ne, %293, %c0_i32_99 : i32
    scf.if %294 {
      %c0_100 = arith.constant 0 : index
      %c0_101 = arith.constant 0 : index
      %295 = vector.load %arg14[%c0_100, %c0_101] : memref<1x32xf32, #tpu.memory_space<vmem>>, vector<1x32xf32>
      %c0_102 = arith.constant 0 : index
      %c0_103 = arith.constant 0 : index
      %296 = vector.load %arg15[%c0_102, %c0_103] : memref<1x32xf32, #tpu.memory_space<vmem>>, vector<1x32xf32>
      %cst_104 = arith.constant dense<0.000000e+00> : vector<16xf32>
      %297 = vector.multi_reduction <add>, %288, %cst_104 [1] : vector<16x32xf32> to vector<16xf32>
      %298 = vector.shape_cast %297 : vector<16xf32> to vector<16x1xf32>
      %cst_105 = arith.constant 3.200000e+01 : f32
      %299 = vector.broadcast %cst_105 : f32 to vector<16x1xf32>
      %300 = arith.divf %298, %299 : vector<16x1xf32>
      %301 = vector.broadcast %300 : vector<16x1xf32> to vector<16x32xf32>
      %302 = arith.subf %288, %301 : vector<16x32xf32>
      %303 = vector.broadcast %300 : vector<16x1xf32> to vector<16x32xf32>
      %304 = arith.subf %288, %303 : vector<16x32xf32>
      %305 = arith.mulf %302, %304 : vector<16x32xf32>
      %cst_106 = arith.constant dense<0.000000e+00> : vector<16xf32>
      %306 = vector.multi_reduction <add>, %305, %cst_106 [1] : vector<16x32xf32> to vector<16xf32>
      %307 = vector.shape_cast %306 : vector<16xf32> to vector<16x1xf32>
      %cst_107 = arith.constant 3.200000e+01 : f32
      %308 = vector.broadcast %cst_107 : f32 to vector<16x1xf32>
      %309 = arith.divf %307, %308 : vector<16x1xf32>
      %310 = vector.broadcast %300 : vector<16x1xf32> to vector<16x32xf32>
      %311 = arith.subf %288, %310 : vector<16x32xf32>
      %cst_108 = arith.constant 9.99999974E-6 : f32
      %312 = vector.broadcast %cst_108 : f32 to vector<16x1xf32>
      %313 = arith.addf %309, %312 : vector<16x1xf32>
      %314 = math.rsqrt %313 : vector<16x1xf32>
      %315 = vector.broadcast %314 : vector<16x1xf32> to vector<16x32xf32>
      %316 = arith.mulf %311, %315 : vector<16x32xf32>
      %317 = vector.broadcast %295 : vector<1x32xf32> to vector<16x32xf32>
      %318 = arith.mulf %316, %317 : vector<16x32xf32>
      %319 = vector.broadcast %296 : vector<1x32xf32> to vector<16x32xf32>
      %320 = arith.addf %318, %319 : vector<16x32xf32>
      %c0_109 = arith.constant 0 : index
      %c0_110 = arith.constant 0 : index
      %321 = vector.load %arg16[%c0_109, %c0_110] : memref<16x32xf32, #tpu.memory_space<vmem>>, vector<16x32xf32>
      tpu.vector_store %arg16[%c0_109, %c0_110], %320 {strides = array<i32>} : memref<16x32xf32, #tpu.memory_space<vmem>>, vector<16x32xf32>,
    } else {
    }
    return
  }
  func.func @transform_1(%arg0: i32, %arg1: i32) -> (i32, i32, i32) {
    %c0_i32 = arith.constant 0 : i32
    %c0_i32_0 = arith.constant 0 : i32
    %c0_i32_1 = arith.constant 0 : i32
    return %arg1, %c0_i32, %c0_i32_0 : i32, i32, i32
  }
  func.func @transform_2(%arg0: i32, %arg1: i32) -> (i32, i32, i32) {
    %c0_i32 = arith.constant 0 : i32
    %c0_i32_0 = arith.constant 0 : i32
    %c0_i32_1 = arith.constant 0 : i32
    return %arg1, %c0_i32, %c0_i32_0 : i32, i32, i32
  }
  func.func @transform_3(%arg0: i32, %arg1: i32) -> (i32, i32, i32) {
    %c0_i32 = arith.constant 0 : i32
    %c0_i32_0 = arith.constant 0 : i32
    %c0_i32_1 = arith.constant 0 : i32
    return %arg1, %c0_i32, %c0_i32_0 : i32, i32, i32
  }
  func.func @transform_4(%arg0: i32, %arg1: i32) -> (i32, i32, i32) {
    %c0_i32 = arith.constant 0 : i32
    %c0_i32_0 = arith.constant 0 : i32
    %c0_i32_1 = arith.constant 0 : i32
    return %arg1, %c0_i32, %c0_i32_0 : i32, i32, i32
  }
  func.func @transform_5(%arg0: i32, %arg1: i32) -> (i32, i32, i32) {
    %c0_i32 = arith.constant 0 : i32
    %c0_i32_0 = arith.constant 0 : i32
    %c0_i32_1 = arith.constant 0 : i32
    return %arg1, %c0_i32, %c0_i32_0 : i32, i32, i32
  }
  func.func @transform_6(%arg0: i32, %arg1: i32) -> (i32, i32, i32) {
    %c0_i32 = arith.constant 0 : i32
    %c0_i32_0 = arith.constant 0 : i32
    %c0_i32_1 = arith.constant 0 : i32
    return %arg1, %c0_i32, %c0_i32_0 : i32, i32, i32
  }
  func.func @transform_7(%arg0: i32, %arg1: i32) -> (i32, i32, i32) {
    %c0_i32 = arith.constant 0 : i32
    %c0_i32_0 = arith.constant 0 : i32
    %c0_i32_1 = arith.constant 0 : i32
    return %arg1, %c0_i32, %c0_i32_0 : i32, i32, i32
  }
  func.func @transform_8(%arg0: i32, %arg1: i32) -> (i32, i32, i32) {
    %c0_i32 = arith.constant 0 : i32
    %c0_i32_0 = arith.constant 0 : i32
    %c0_i32_1 = arith.constant 0 : i32
    return %arg1, %c0_i32, %c0_i32_0 : i32, i32, i32
  }
  func.func @transform_9(%arg0: i32, %arg1: i32) -> (i32, i32, i32) {
    %c0_i32 = arith.constant 0 : i32
    %c0_i32_0 = arith.constant 0 : i32
    %c0_i32_1 = arith.constant 0 : i32
    return %arg1, %c0_i32, %c0_i32_0 : i32, i32, i32
  }
  func.func @transform_10(%arg0: i32, %arg1: i32) -> (i32, i32, i32) {
    %c0_i32 = arith.constant 0 : i32
    %c0_i32_0 = arith.constant 0 : i32
    %c0_i32_1 = arith.constant 0 : i32
    return %arg1, %c0_i32, %c0_i32_0 : i32, i32, i32
  }
  func.func @transform_11(%arg0: i32, %arg1: i32) -> (i32, i32, i32) {
    %c0_i32 = arith.constant 0 : i32
    %c0_i32_0 = arith.constant 0 : i32
    %c0_i32_1 = arith.constant 0 : i32
    return %arg1, %c0_i32, %c0_i32_0 : i32, i32, i32
  }
  func.func @transform_12(%arg0: i32, %arg1: i32) -> (i32, i32) {
    %c0_i32 = arith.constant 0 : i32
    %c0_i32_0 = arith.constant 0 : i32
    %c0_i32_1 = arith.constant 0 : i32
    return %c0_i32, %c0_i32_0 : i32, i32
  }
  func.func @transform_13(%arg0: i32, %arg1: i32) -> (i32, i32) {
    %c0_i32 = arith.constant 0 : i32
    %c0_i32_0 = arith.constant 0 : i32
    %c0_i32_1 = arith.constant 0 : i32
    return %c0_i32, %c0_i32_0 : i32, i32
  }
  func.func @transform_14(%arg0: i32, %arg1: i32) -> (i32, i32) {
    %c0_i32 = arith.constant 0 : i32
    %c0_i32_0 = arith.constant 0 : i32
    return %arg0, %c0_i32 : i32, i32
  }
}

</mosaic_0001>

<llo_original>
// kernel: bert_embedder_forward.1
$region0: #{bert_embedder_forward.1}
  #allocation0 [shape = 'u32[]', space=smem, size = 0x4, offset = 0x4, fixed_abs, tag = 'smem constant byte address 0x4 - core index']
  #allocation1 [shape = 'u32[144,128]{1,0:T(1,128)}', space=vmem, size = 0x12000, scoped, tag = 'internal scratch']
  #allocation2 [shape = 'bf16[16,512]{1,0:T(16,128)(2,1)}', space=vmem, size = 0x4000, scoped, tag = 'scratch operand']
  #allocation4 [shape = 's32[]', space=sflag, size = 0x4, offset = 0, fixed_abs, tag = 'sflag constant byte address 0x0 - dummy sync flag']
  %s0 = inlined_call_operand.vmem [shape: f32[16,32], index: 0, kind: input, shape index: {}, may-alias: {0,14}]
  %s1 = inlined_call_operand.vmem [shape: f32[2,1,32], index: 1, kind: input, shape index: {}]
  %s2 = inlined_call_operand.vmem [shape: f32[2,1,32], index: 2, kind: input, shape index: {}]
  %s3 = inlined_call_operand.vmem [shape: bf16[2,32,1536], index: 3, kind: input, shape index: {}]
  %s4 = inlined_call_operand.vmem [shape: bf16[2,512,32], index: 4, kind: input, shape index: {}]
  %s5 = inlined_call_operand.vmem [shape: f32[2,1,32], index: 5, kind: input, shape index: {}]
  %s6 = inlined_call_operand.vmem [shape: f32[2,1,32], index: 6, kind: input, shape index: {}]
  %s7 = inlined_call_operand.vmem [shape: f32[2,1,32], index: 7, kind: input, shape index: {}]
  %s8 = inlined_call_operand.vmem [shape: bf16[2,32,128], index: 8, kind: input, shape index: {}]
  %s9 = inlined_call_operand.vmem [shape: f32[2,1,128], index: 9, kind: input, shape index: {}]
  %s10 = inlined_call_operand.vmem [shape: bf16[2,128,32], index: 10, kind: input, shape index: {}]
  %s11 = inlined_call_operand.vmem [shape: f32[2,1,32], index: 11, kind: input, shape index: {}]
  %s12 = inlined_call_operand.vmem [shape: f32[1,32], index: 12, kind: input, shape index: {}]
  %s13 = inlined_call_operand.vmem [shape: f32[1,32], index: 13, kind: input, shape index: {}]
  %s14 = inlined_call_operand.vmem [shape: f32[16,32], index: 14, kind: output, shape index: {}, may-alias: {0,14}]
  %s15 = sld [smem:[#allocation0]]
  $region132: #{bert_embedder_forward.1} parent=0
    _
  %s17 = ssub.s32 1, %s15
  %s18 = scalar_select 0, %s17, %s15
  loop: start=0, step=1, limit=4
  $region2: #{bert_embedder_forward.1} parent=0 // loop_pre_header
    _
  $region3: #{bert_embedder_forward.1} parent=0 // loop_header
    %s20 = sphi 0, %s24
    %p21 = scmp.ge.s32.totalorder %s20, 4
    %s27 = sphi 0, %s39
    %s28 = sphi 0, %s35
    %s29 = sphi 0, %s27
    %s30 = sphi 0, %s28
    %s31 = sphi 0, %s29
    %s32 = sphi 0, %s30
    %s42 = sphi 0, %s44
    %s45 = sphi 0, %s42
    %s46 = sphi 0, %s45
    %s62 = sphi 0, %s46
    %s68 = sphi 0, %s70
    %s71 = sphi 0, %s68
    %s72 = sphi 0, %s71
    %s88 = sphi 0, %s72
    %s94 = sphi 0, %s96
    %s97 = sphi 0, %s94
    %s98 = sphi 0, %s97
    %s114 = sphi 0, %s98
    %s120 = sphi 0, %s122
    %s123 = sphi 0, %s120
    %s124 = sphi 0, %s123
    %s140 = sphi 0, %s124
    %s146 = sphi 0, %s148
    %s149 = sphi 0, %s146
    %s150 = sphi 0, %s149
    %s166 = sphi 0, %s150
    %s172 = sphi 0, %s174
    %s175 = sphi 0, %s172
    %s176 = sphi 0, %s175
    %s192 = sphi 0, %s176
    %s198 = sphi 0, %s200
    %s201 = sphi 0, %s198
    %s202 = sphi 0, %s201
    %s218 = sphi 0, %s202
    %s224 = sphi 0, %s226
    %s227 = sphi 0, %s224
    %s228 = sphi 0, %s227
    %s244 = sphi 0, %s228
    %s250 = sphi 0, %s252
    %s253 = sphi 0, %s250
    %s254 = sphi 0, %s253
    %s270 = sphi 0, %s254
    %s276 = sphi 0, %s278
    %s279 = sphi 0, %s276
    %s280 = sphi 0, %s279
    %s296 = sphi 0, %s280
    %s302 = sphi 0, %s304
    %s305 = sphi 0, %s302
    %s306 = sphi 0, %s305
    %s322 = sphi 0, %s306
    %s326 = sphi 0, %s326
    %s328 = sphi 0, %s326
    %s329 = sphi 0, %s328
    %s343 = sphi 0, %s329
    %s347 = sphi 0, %s347
    %s349 = sphi 0, %s347
    %s350 = sphi 0, %s349
    %s364 = sphi 0, %s350
    %s370 = sphi 0, %s372
    %s373 = sphi 0, %s370
    %s374 = sphi 0, %s373
    %s390 = sphi 0, %s374
  $region4: #{bert_embedder_forward.1} parent=0 // loop_header_branch
    %23 = sbr.rel (%p21) target = $region8
  $region5: #{bert_embedder_forward.1} parent=0 // loop_body
    %s25 = ssub.s32 %s20, 1
    %s26 = ssub.s32 %s20, 2
    %s33 = sadd.s32 1, %s28
    %p34 = scmp.ge.s32.totalorder %s33, 2
    %s35 = scalar_select %p34, 0, %s33
    %s36 = sadd.s32 1, %s27
    %s37 = scalar_select %p34, %s36, %s27
    %p38 = scmp.ge.s32.totalorder %s37, 1
    %s39 = scalar_select %p38, 0, %s37
    %s40 = ssub.s32 %s28, %s35
    %p41 = scmp.eq.s32.totalorder %s40, 0
    %s43 = sadd.s32 %s42, 1
    %s44 = scalar_select %p41, %s42, %s43
    %p47 = pneg %p41
    %p48 = scmp.eq.s32.totalorder %s20, 1
    %p49 = por %p47, %p48
    %p50 = scmp.ne.s32.totalorder %s42, %s45
    %p51 = scmp.eq.s32.totalorder %s20, 0
    %p52 = por %p50, %p51
    %p53 = scmp.ne.s32.totalorder %s42, %s45
    %p54 = scmp.eq.s32.totalorder %s25, 1
    %p55 = por %p53, %p54
    %p56 = scmp.ne.s32.totalorder %s45, %s46
    %p57 = scmp.eq.s32.totalorder %s25, 0
    %p58 = por %p56, %p57
    %p59 = scmp.ne.s32.totalorder %s45, %s46
    %p60 = scmp.eq.s32.totalorder %s26, 1
    %p61 = por %p59, %p60
    %p63 = scmp.ne.s32.totalorder %s46, %s62
    %p64 = scmp.eq.s32.totalorder %s26, 0
    %p65 = por %p63, %p64
    %s66 = ssub.s32 %s28, %s35
    %p67 = scmp.eq.s32.totalorder %s66, 0
    %s69 = sadd.s32 %s68, 1
    %s70 = scalar_select %p67, %s68, %s69
    %p73 = pneg %p67
    %p74 = scmp.eq.s32.totalorder %s20, 1
    %p75 = por %p73, %p74
    %p76 = scmp.ne.s32.totalorder %s68, %s71
    %p77 = scmp.eq.s32.totalorder %s20, 0
    %p78 = por %p76, %p77
    %p79 = scmp.ne.s32.totalorder %s68, %s71
    %p80 = scmp.eq.s32.totalorder %s25, 1
    %p81 = por %p79, %p80
    %p82 = scmp.ne.s32.totalorder %s71, %s72
    %p83 = scmp.eq.s32.totalorder %s25, 0
    %p84 = por %p82, %p83
    %p85 = scmp.ne.s32.totalorder %s71, %s72
    %p86 = scmp.eq.s32.totalorder %s26, 1
    %p87 = por %p85, %p86
    %p89 = scmp.ne.s32.totalorder %s72, %s88
    %p90 = scmp.eq.s32.totalorder %s26, 0
    %p91 = por %p89, %p90
    %s92 = ssub.s32 %s28, %s35
    %p93 = scmp.eq.s32.totalorder %s92, 0
    %s95 = sadd.s32 %s94, 1
    %s96 = scalar_select %p93, %s94, %s95
    %p99 = pneg %p93
    %p100 = scmp.eq.s32.totalorder %s20, 1
    %p101 = por %p99, %p100
    %p102 = scmp.ne.s32.totalorder %s94, %s97
    %p103 = scmp.eq.s32.totalorder %s20, 0
    %p104 = por %p102, %p103
    %p105 = scmp.ne.s32.totalorder %s94, %s97
    %p106 = scmp.eq.s32.totalorder %s25, 1
    %p107 = por %p105, %p106
    %p108 = scmp.ne.s32.totalorder %s97, %s98
    %p109 = scmp.eq.s32.totalorder %s25, 0
    %p110 = por %p108, %p109
    %p111 = scmp.ne.s32.totalorder %s97, %s98
    %p112 = scmp.eq.s32.totalorder %s26, 1
    %p113 = por %p111, %p112
    %p115 = scmp.ne.s32.totalorder %s98, %s114
    %p116 = scmp.eq.s32.totalorder %s26, 0
    %p117 = por %p115, %p116
    %s118 = ssub.s32 %s28, %s35
    %p119 = scmp.eq.s32.totalorder %s118, 0
    %s121 = sadd.s32 %s120, 1
    %s122 = scalar_select %p119, %s120, %s121
    %p125 = pneg %p119
    %p126 = scmp.eq.s32.totalorder %s20, 1
    %p127 = por %p125, %p126
    %p128 = scmp.ne.s32.totalorder %s120, %s123
    %p129 = scmp.eq.s32.totalorder %s20, 0
    %p130 = por %p128, %p129
    %p131 = scmp.ne.s32.totalorder %s120, %s123
    %p132 = scmp.eq.s32.totalorder %s25, 1
    %p133 = por %p131, %p132
    %p134 = scmp.ne.s32.totalorder %s123, %s124
    %p135 = scmp.eq.s32.totalorder %s25, 0
    %p136 = por %p134, %p135
    %p137 = scmp.ne.s32.totalorder %s123, %s124
    %p138 = scmp.eq.s32.totalorder %s26, 1
    %p139 = por %p137, %p138
    %p141 = scmp.ne.s32.totalorder %s124, %s140
    %p142 = scmp.eq.s32.totalorder %s26, 0
    %p143 = por %p141, %p142
    %s144 = ssub.s32 %s28, %s35
    %p145 = scmp.eq.s32.totalorder %s144, 0
    %s147 = sadd.s32 %s146, 1
    %s148 = scalar_select %p145, %s146, %s147
    %p151 = pneg %p145
    %p152 = scmp.eq.s32.totalorder %s20, 1
    %p153 = por %p151, %p152
    %p154 = scmp.ne.s32.totalorder %s146, %s149
    %p155 = scmp.eq.s32.totalorder %s20, 0
    %p156 = por %p154, %p155
    %p157 = scmp.ne.s32.totalorder %s146, %s149
    %p158 = scmp.eq.s32.totalorder %s25, 1
    %p159 = por %p157, %p158
    %p160 = scmp.ne.s32.totalorder %s149, %s150
    %p161 = scmp.eq.s32.totalorder %s25, 0
    %p162 = por %p160, %p161
    %p163 = scmp.ne.s32.totalorder %s149, %s150
    %p164 = scmp.eq.s32.totalorder %s26, 1
    %p165 = por %p163, %p164
    %p167 = scmp.ne.s32.totalorder %s150, %s166
    %p168 = scmp.eq.s32.totalorder %s26, 0
    %p169 = por %p167, %p168
    %s170 = ssub.s32 %s28, %s35
    %p171 = scmp.eq.s32.totalorder %s170, 0
    %s173 = sadd.s32 %s172, 1
    %s174 = scalar_select %p171, %s172, %s173
    %p177 = pneg %p171
    %p178 = scmp.eq.s32.totalorder %s20, 1
    %p179 = por %p177, %p178
    %p180 = scmp.ne.s32.totalorder %s172, %s175
    %p181 = scmp.eq.s32.totalorder %s20, 0
    %p182 = por %p180, %p181
    %p183 = scmp.ne.s32.totalorder %s172, %s175
    %p184 = scmp.eq.s32.totalorder %s25, 1
    %p185 = por %p183, %p184
    %p186 = scmp.ne.s32.totalorder %s175, %s176
    %p187 = scmp.eq.s32.totalorder %s25, 0
    %p188 = por %p186, %p187
    %p189 = scmp.ne.s32.totalorder %s175, %s176
    %p190 = scmp.eq.s32.totalorder %s26, 1
    %p191 = por %p189, %p190
    %p193 = scmp.ne.s32.totalorder %s176, %s192
    %p194 = scmp.eq.s32.totalorder %s26, 0
    %p195 = por %p193, %p194
    %s196 = ssub.s32 %s28, %s35
    %p197 = scmp.eq.s32.totalorder %s196, 0
    %s199 = sadd.s32 %s198, 1
    %s200 = scalar_select %p197, %s198, %s199
    %p203 = pneg %p197
    %p204 = scmp.eq.s32.totalorder %s20, 1
    %p205 = por %p203, %p204
    %p206 = scmp.ne.s32.totalorder %s198, %s201
    %p207 = scmp.eq.s32.totalorder %s20, 0
    %p208 = por %p206, %p207
    %p209 = scmp.ne.s32.totalorder %s198, %s201
    %p210 = scmp.eq.s32.totalorder %s25, 1
    %p211 = por %p209, %p210
    %p212 = scmp.ne.s32.totalorder %s201, %s202
    %p213 = scmp.eq.s32.totalorder %s25, 0
    %p214 = por %p212, %p213
    %p215 = scmp.ne.s32.totalorder %s201, %s202
    %p216 = scmp.eq.s32.totalorder %s26, 1
    %p217 = por %p215, %p216
    %p219 = scmp.ne.s32.totalorder %s202, %s218
    %p220 = scmp.eq.s32.totalorder %s26, 0
    %p221 = por %p219, %p220
    %s222 = ssub.s32 %s28, %s35
    %p223 = scmp.eq.s32.totalorder %s222, 0
    %s225 = sadd.s32 %s224, 1
    %s226 = scalar_select %p223, %s224, %s225
    %p229 = pneg %p223
    %p230 = scmp.eq.s32.totalorder %s20, 1
    %p231 = por %p229, %p230
    %p232 = scmp.ne.s32.totalorder %s224, %s227
    %p233 = scmp.eq.s32.totalorder %s20, 0
    %p234 = por %p232, %p233
    %p235 = scmp.ne.s32.totalorder %s224, %s227
    %p236 = scmp.eq.s32.totalorder %s25, 1
    %p237 = por %p235, %p236
    %p238 = scmp.ne.s32.totalorder %s227, %s228
    %p239 = scmp.eq.s32.totalorder %s25, 0
    %p240 = por %p238, %p239
    %p241 = scmp.ne.s32.totalorder %s227, %s228
    %p242 = scmp.eq.s32.totalorder %s26, 1
    %p243 = por %p241, %p242
    %p245 = scmp.ne.s32.totalorder %s228, %s244
    %p246 = scmp.eq.s32.totalorder %s26, 0
    %p247 = por %p245, %p246
    %s248 = ssub.s32 %s28, %s35
    %p249 = scmp.eq.s32.totalorder %s248, 0
    %s251 = sadd.s32 %s250, 1
    %s252 = scalar_select %p249, %s250, %s251
    %p255 = pneg %p249
    %p256 = scmp.eq.s32.totalorder %s20, 1
    %p257 = por %p255, %p256
    %p258 = scmp.ne.s32.totalorder %s250, %s253
    %p259 = scmp.eq.s32.totalorder %s20, 0
    %p260 = por %p258, %p259
    %p261 = scmp.ne.s32.totalorder %s250, %s253
    %p262 = scmp.eq.s32.totalorder %s25, 1
    %p263 = por %p261, %p262
    %p264 = scmp.ne.s32.totalorder %s253, %s254
    %p265 = scmp.eq.s32.totalorder %s25, 0
    %p266 = por %p264, %p265
    %p267 = scmp.ne.s32.totalorder %s253, %s254
    %p268 = scmp.eq.s32.totalorder %s26, 1
    %p269 = por %p267, %p268
    %p271 = scmp.ne.s32.totalorder %s254, %s270
    %p272 = scmp.eq.s32.totalorder %s26, 0
    %p273 = por %p271, %p272
    %s274 = ssub.s32 %s28, %s35
    %p275 = scmp.eq.s32.totalorder %s274, 0
    %s277 = sadd.s32 %s276, 1
    %s278 = scalar_select %p275, %s276, %s277
    %p281 = pneg %p275
    %p282 = scmp.eq.s32.totalorder %s20, 1
    %p283 = por %p281, %p282
    %p284 = scmp.ne.s32.totalorder %s276, %s279
    %p285 = scmp.eq.s32.totalorder %s20, 0
    %p286 = por %p284, %p285
    %p287 = scmp.ne.s32.totalorder %s276, %s279
    %p288 = scmp.eq.s32.totalorder %s25, 1
    %p289 = por %p287, %p288
    %p290 = scmp.ne.s32.totalorder %s279, %s280
    %p291 = scmp.eq.s32.totalorder %s25, 0
    %p292 = por %p290, %p291
    %p293 = scmp.ne.s32.totalorder %s279, %s280
    %p294 = scmp.eq.s32.totalorder %s26, 1
    %p295 = por %p293, %p294
    %p297 = scmp.ne.s32.totalorder %s280, %s296
    %p298 = scmp.eq.s32.totalorder %s26, 0
    %p299 = por %p297, %p298
    %s300 = ssub.s32 %s28, %s35
    %p301 = scmp.eq.s32.totalorder %s300, 0
    %s303 = sadd.s32 %s302, 1
    %s304 = scalar_select %p301, %s302, %s303
    %p307 = pneg %p301
    %p308 = scmp.eq.s32.totalorder %s20, 1
    %p309 = por %p307, %p308
    %p310 = scmp.ne.s32.totalorder %s302, %s305
    %p311 = scmp.eq.s32.totalorder %s20, 0
    %p312 = por %p310, %p311
    %p313 = scmp.ne.s32.totalorder %s302, %s305
    %p314 = scmp.eq.s32.totalorder %s25, 1
    %p315 = por %p313, %p314
    %p316 = scmp.ne.s32.totalorder %s305, %s306
    %p317 = scmp.eq.s32.totalorder %s25, 0
    %p318 = por %p316, %p317
    %p319 = scmp.ne.s32.totalorder %s305, %s306
    %p320 = scmp.eq.s32.totalorder %s26, 1
    %p321 = por %p319, %p320
    %p323 = scmp.ne.s32.totalorder %s306, %s322
    %p324 = scmp.eq.s32.totalorder %s26, 0
    %p325 = por %p323, %p324
    %s327 = sadd.s32 %s326, 1
    %p330 = scmp.eq.s32.totalorder %s20, 1
    %p331 = scmp.ne.s32.totalorder %s326, %s328
    %p332 = scmp.eq.s32.totalorder %s20, 0
    %p333 = por %p331, %p332
    %p334 = scmp.ne.s32.totalorder %s326, %s328
    %p335 = scmp.eq.s32.totalorder %s25, 1
    %p336 = por %p334, %p335
    %p337 = scmp.ne.s32.totalorder %s328, %s329
    %p338 = scmp.eq.s32.totalorder %s25, 0
    %p339 = por %p337, %p338
    %p340 = scmp.ne.s32.totalorder %s328, %s329
    %p341 = scmp.eq.s32.totalorder %s26, 1
    %p342 = por %p340, %p341
    %p344 = scmp.ne.s32.totalorder %s329, %s343
    %p345 = scmp.eq.s32.totalorder %s26, 0
    %p346 = por %p344, %p345
    %s348 = sadd.s32 %s347, 1
    %p351 = scmp.eq.s32.totalorder %s20, 1
    %p352 = scmp.ne.s32.totalorder %s347, %s349
    %p353 = scmp.eq.s32.totalorder %s20, 0
    %p354 = por %p352, %p353
    %p355 = scmp.ne.s32.totalorder %s347, %s349
    %p356 = scmp.eq.s32.totalorder %s25, 1
    %p357 = por %p355, %p356
    %p358 = scmp.ne.s32.totalorder %s349, %s350
    %p359 = scmp.eq.s32.totalorder %s25, 0
    %p360 = por %p358, %p359
    %p361 = scmp.ne.s32.totalorder %s349, %s350
    %p362 = scmp.eq.s32.totalorder %s26, 1
    %p363 = por %p361, %p362
    %p365 = scmp.ne.s32.totalorder %s350, %s364
    %p366 = scmp.eq.s32.totalorder %s26, 0
    %p367 = por %p365, %p366
    %s368 = ssub.s32 %s27, %s39
    %p369 = scmp.eq.s32.totalorder %s368, 0
    %s371 = sadd.s32 %s370, 1
    %s372 = scalar_select %p369, %s370, %s371
    %p375 = pneg %p369
    %p376 = scmp.eq.s32.totalorder %s20, 1
    %p377 = por %p375, %p376
    %p378 = scmp.ne.s32.totalorder %s370, %s373
    %p379 = scmp.eq.s32.totalorder %s20, 0
    %p380 = por %p378, %p379
    %p381 = scmp.ne.s32.totalorder %s370, %s373
    %p382 = scmp.eq.s32.totalorder %s25, 1
    %p383 = por %p381, %p382
    %p384 = scmp.ne.s32.totalorder %s373, %s374
    %p385 = scmp.eq.s32.totalorder %s25, 0
    %p386 = por %p384, %p385
    %p387 = scmp.ne.s32.totalorder %s373, %s374
    %p388 = scmp.eq.s32.totalorder %s26, 1
    %p389 = por %p387, %p388
    %p391 = scmp.ne.s32.totalorder %s374, %s390
    %p392 = scmp.eq.s32.totalorder %s26, 0
    %p393 = por %p391, %p392
    %p394 = scmp.le.s32.totalorder 1, %s20
    %p395 = scmp.lt.s32.totalorder %s20, 3
    %p396 = pnand %p394, %p395
    %p397 = pneg %p396
    // Predicated region
    $region9: #{bert_embedder_forward.1} parent=5 // pred_check
      _
    $region10: #{bert_embedder_forward.1} parent=5 // pred_check_branch
      %399 = sbr.rel (%p396) target = $region12
    $region11: #{bert_embedder_forward.1} parent=5 // pred_region
      %s400 = ssub.s32 %s20, 1
      // Predicated region
      $region13: #{bert_embedder_forward.1} parent=11 // pred_check
        %p401 = pneg %p339
      $region14: #{bert_embedder_forward.1} parent=11 // pred_check_branch
        %403 = sbr.rel (%p401) target = $region16
      $region15: #{bert_embedder_forward.1} parent=11 // pred_region
        _
      $region16: #{bert_embedder_forward.1} parent=11 // pred_fallthru
        _
      // Predicated region
      $region17: #{bert_embedder_forward.1} parent=11 // pred_check
        %p404 = pneg %p360
      $region18: #{bert_embedder_forward.1} parent=11 // pred_check_branch
        %406 = sbr.rel (%p404) target = $region20
      $region19: #{bert_embedder_forward.1} parent=11 // pred_region
        _
      $region20: #{bert_embedder_forward.1} parent=11 // pred_fallthru
        _
    $region12: #{bert_embedder_forward.1} parent=5 // pred_fallthru
      _
    %p407 = scmp.lt.s32.totalorder %s20, 2
    // Predicated region
    $region21: #{bert_embedder_forward.1} parent=5 // pred_check
      %p408 = pneg %p407
    $region22: #{bert_embedder_forward.1} parent=5 // pred_check_branch
      %410 = sbr.rel (%p408) target = $region24
    $region23: #{bert_embedder_forward.1} parent=5 // pred_region
      // Predicated region
      $region25: #{bert_embedder_forward.1} parent=23 // pred_check
        %p411 = pneg %p52
      $region26: #{bert_embedder_forward.1} parent=23 // pred_check_branch
        %413 = sbr.rel (%p411) target = $region28
      $region27: #{bert_embedder_forward.1} parent=23 // pred_region
        %p414 = scmp.lt.s32.totalorder %s28, 1
        %s415 = scalar_select %p414, %s28, 1
        %s416 = scalar_lea.vmem %s1, %s415
      $region28: #{bert_embedder_forward.1} parent=23 // pred_fallthru
        _
      // Predicated region
      $region29: #{bert_embedder_forward.1} parent=23 // pred_check
        %p417 = pneg %p78
      $region30: #{bert_embedder_forward.1} parent=23 // pred_check_branch
        %419 = sbr.rel (%p417) target = $region32
      $region31: #{bert_embedder_forward.1} parent=23 // pred_region
        %p420 = scmp.lt.s32.totalorder %s28, 1
        %s421 = scalar_select %p420, %s28, 1
        %s422 = scalar_lea.vmem %s2, %s421
      $region32: #{bert_embedder_forward.1} parent=23 // pred_fallthru
        _
      // Predicated region
      $region33: #{bert_embedder_forward.1} parent=23 // pred_check
        %p423 = pneg %p104
      $region34: #{bert_embedder_forward.1} parent=23 // pred_check_branch
        %425 = sbr.rel (%p423) target = $region36
      $region35: #{bert_embedder_forward.1} parent=23 // pred_region
        %p426 = scmp.lt.s32.totalorder %s28, 1
        %s427 = scalar_select %p426, %s28, 1
        %s428 = smul.addr %s427, 48
        %s429 = smul.addr %s428, 4
        %s430 = scalar_lea.vmem %s3, %s429
      $region36: #{bert_embedder_forward.1} parent=23 // pred_fallthru
        _
      // Predicated region
      $region37: #{bert_embedder_forward.1} parent=23 // pred_check
        %p431 = pneg %p130
      $region38: #{bert_embedder_forward.1} parent=23 // pred_check_branch
        %433 = sbr.rel (%p431) target = $region40
      $region39: #{bert_embedder_forward.1} parent=23 // pred_region
        %p434 = scmp.lt.s32.totalorder %s28, 1
        %s435 = scalar_select %p434, %s28, 1
        %s436 = smul.addr %s435, 64
        %s437 = smul.addr %s436, 4
        %s438 = scalar_lea.vmem %s4, %s437
      $region40: #{bert_embedder_forward.1} parent=23 // pred_fallthru
        _
      // Predicated region
      $region41: #{bert_embedder_forward.1} parent=23 // pred_check
        %p439 = pneg %p156
      $region42: #{bert_embedder_forward.1} parent=23 // pred_check_branch
        %441 = sbr.rel (%p439) target = $region44
      $region43: #{bert_embedder_forward.1} parent=23 // pred_region
        %p442 = scmp.lt.s32.totalorder %s28, 1
        %s443 = scalar_select %p442, %s28, 1
        %s444 = scalar_lea.vmem %s5, %s443
      $region44: #{bert_embedder_forward.1} parent=23 // pred_fallthru
        _
      // Predicated region
      $region45: #{bert_embedder_forward.1} parent=23 // pred_check
        %p445 = pneg %p182
      $region46: #{bert_embedder_forward.1} parent=23 // pred_check_branch
        %447 = sbr.rel (%p445) target = $region48
      $region47: #{bert_embedder_forward.1} parent=23 // pred_region
        %p448 = scmp.lt.s32.totalorder %s28, 1
        %s449 = scalar_select %p448, %s28, 1
        %s450 = scalar_lea.vmem %s6, %s449
      $region48: #{bert_embedder_forward.1} parent=23 // pred_fallthru
        _
      // Predicated region
      $region49: #{bert_embedder_forward.1} parent=23 // pred_check
        %p451 = pneg %p208
      $region50: #{bert_embedder_forward.1} parent=23 // pred_check_branch
        %453 = sbr.rel (%p451) target = $region52
      $region51: #{bert_embedder_forward.1} parent=23 // pred_region
        %p454 = scmp.lt.s32.totalorder %s28, 1
        %s455 = scalar_select %p454, %s28, 1
        %s456 = scalar_lea.vmem %s7, %s455
      $region52: #{bert_embedder_forward.1} parent=23 // pred_fallthru
        _
      // Predicated region
      $region53: #{bert_embedder_forward.1} parent=23 // pred_check
        %p457 = pneg %p234
      $region54: #{bert_embedder_forward.1} parent=23 // pred_check_branch
        %459 = sbr.rel (%p457) target = $region56
      $region55: #{bert_embedder_forward.1} parent=23 // pred_region
        %p460 = scmp.lt.s32.totalorder %s28, 1
        %s461 = scalar_select %p460, %s28, 1
        %s462 = smul.addr %s461, 4
        %s463 = smul.addr %s462, 4
        %s464 = scalar_lea.vmem %s8, %s463
      $region56: #{bert_embedder_forward.1} parent=23 // pred_fallthru
        _
      // Predicated region
      $region57: #{bert_embedder_forward.1} parent=23 // pred_check
        %p465 = pneg %p260
      $region58: #{bert_embedder_forward.1} parent=23 // pred_check_branch
        %467 = sbr.rel (%p465) target = $region60
      $region59: #{bert_embedder_forward.1} parent=23 // pred_region
        %p468 = scmp.lt.s32.totalorder %s28, 1
        %s469 = scalar_select %p468, %s28, 1
        %s470 = scalar_lea.vmem %s9, %s469
      $region60: #{bert_embedder_forward.1} parent=23 // pred_fallthru
        _
      // Predicated region
      $region61: #{bert_embedder_forward.1} parent=23 // pred_check
        %p471 = pneg %p286
      $region62: #{bert_embedder_forward.1} parent=23 // pred_check_branch
        %473 = sbr.rel (%p471) target = $region64
      $region63: #{bert_embedder_forward.1} parent=23 // pred_region
        %p474 = scmp.lt.s32.totalorder %s28, 1
        %s475 = scalar_select %p474, %s28, 1
        %s476 = smul.addr %s475, 16
        %s477 = smul.addr %s476, 4
        %s478 = scalar_lea.vmem %s10, %s477
      $region64: #{bert_embedder_forward.1} parent=23 // pred_fallthru
        _
      // Predicated region
      $region65: #{bert_embedder_forward.1} parent=23 // pred_check
        %p479 = pneg %p312
      $region66: #{bert_embedder_forward.1} parent=23 // pred_check_branch
        %481 = sbr.rel (%p479) target = $region68
      $region67: #{bert_embedder_forward.1} parent=23 // pred_region
        %p482 = scmp.lt.s32.totalorder %s28, 1
        %s483 = scalar_select %p482, %s28, 1
        %s484 = scalar_lea.vmem %s11, %s483
      $region68: #{bert_embedder_forward.1} parent=23 // pred_fallthru
        _
    $region24: #{bert_embedder_forward.1} parent=5 // pred_fallthru
      _
    %p485 = scmp.le.s32.totalorder 1, %s20
    %p486 = scmp.lt.s32.totalorder %s20, 3
    %p487 = pnand %p485, %p486
    %p488 = pneg %p487
    // Predicated region
    $region69: #{bert_embedder_forward.1} parent=5 // pred_check
      _
    $region70: #{bert_embedder_forward.1} parent=5 // pred_check_branch
      %490 = sbr.rel (%p487) target = $region72
    $region71: #{bert_embedder_forward.1} parent=5 // pred_region
      %s491 = ssub.s32 %s20, 1
      %p492 = scmp.lt.s32.totalorder %s30, 1
      %s493 = scalar_select %p492, %s30, 1
      %s494 = scalar_lea.vmem %s1, %s493
      %p495 = pneg %p58
      %p496 = pneg %p55
      %p497 = scmp.lt.s32.totalorder %s30, 1
      %s498 = scalar_select %p497, %s30, 1
      %s499 = scalar_lea.vmem %s2, %s498
      %p500 = pneg %p84
      %p501 = pneg %p81
      %p502 = scmp.lt.s32.totalorder %s30, 1
      %s503 = scalar_select %p502, %s30, 1
      %s504 = smul.addr %s503, 48
      %s505 = smul.addr %s504, 4
      %s506 = scalar_lea.vmem %s3, %s505
      %p507 = pneg %p110
      %p508 = pneg %p107
      %p509 = scmp.lt.s32.totalorder %s30, 1
      %s510 = scalar_select %p509, %s30, 1
      %s511 = smul.addr %s510, 64
      %s512 = smul.addr %s511, 4
      %s513 = scalar_lea.vmem %s4, %s512
      %p514 = pneg %p136
      %p515 = pneg %p133
      %p516 = scmp.lt.s32.totalorder %s30, 1
      %s517 = scalar_select %p516, %s30, 1
      %s518 = scalar_lea.vmem %s5, %s517
      %p519 = pneg %p162
      %p520 = pneg %p159
      %p521 = scmp.lt.s32.totalorder %s30, 1
      %s522 = scalar_select %p521, %s30, 1
      %s523 = scalar_lea.vmem %s6, %s522
      %p524 = pneg %p188
      %p525 = pneg %p185
      %p526 = scmp.lt.s32.totalorder %s30, 1
      %s527 = scalar_select %p526, %s30, 1
      %s528 = scalar_lea.vmem %s7, %s527
      %p529 = pneg %p214
      %p530 = pneg %p211
      %p531 = scmp.lt.s32.totalorder %s30, 1
      %s532 = scalar_select %p531, %s30, 1
      %s533 = smul.addr %s532, 4
      %s534 = smul.addr %s533, 4
      %s535 = scalar_lea.vmem %s8, %s534
      %p536 = pneg %p240
      %p537 = pneg %p237
      %p538 = scmp.lt.s32.totalorder %s30, 1
      %s539 = scalar_select %p538, %s30, 1
      %s540 = scalar_lea.vmem %s9, %s539
      %p541 = pneg %p266
      %p542 = pneg %p263
      %p543 = scmp.lt.s32.totalorder %s30, 1
      %s544 = scalar_select %p543, %s30, 1
      %s545 = smul.addr %s544, 16
      %s546 = smul.addr %s545, 4
      %s547 = scalar_lea.vmem %s10, %s546
      %p548 = pneg %p292
      %p549 = pneg %p289
      %p550 = scmp.lt.s32.totalorder %s30, 1
      %s551 = scalar_select %p550, %s30, 1
      %s552 = scalar_lea.vmem %s11, %s551
      %p553 = pneg %p318
      %p554 = pneg %p315
      %p555 = pneg %p339
      %p556 = pneg %p336
      %p557 = pneg %p360
      %p558 = pneg %p357
      %p559 = pneg %p386
      %p560 = pneg %p383
      %s561 = smul.u32 2, %s29
      %p562 = scmp.lt.s32.totalorder %s561, 1
      %s563 = scalar_select %p562, %s561, 1
      %s564 = smul.addr %s563, 8
      %s565 = scalar_lea.vmem %s14, %s564
      %p566 = scmp.lt.s32.totalorder %s30, 1
      %s567 = scalar_select %p566, %s30, 1
      %s568 = scalar_lea.vmem %s1, %s567
      %p569 = scmp.lt.s32.totalorder %s30, 1
      %s570 = scalar_select %p569, %s30, 1
      %s571 = scalar_lea.vmem %s2, %s570
      %p572 = scmp.lt.s32.totalorder %s30, 1
      %s573 = scalar_select %p572, %s30, 1
      %s574 = smul.addr %s573, 48
      %s575 = smul.addr %s574, 4
      %s576 = scalar_lea.vmem %s3, %s575
      %p577 = scmp.lt.s32.totalorder %s30, 1
      %s578 = scalar_select %p577, %s30, 1
      %s579 = smul.addr %s578, 64
      %s580 = smul.addr %s579, 4
      %s581 = scalar_lea.vmem %s4, %s580
      %p582 = scmp.lt.s32.totalorder %s30, 1
      %s583 = scalar_select %p582, %s30, 1
      %s584 = scalar_lea.vmem %s5, %s583
      %p585 = scmp.lt.s32.totalorder %s30, 1
      %s586 = scalar_select %p585, %s30, 1
      %s587 = scalar_lea.vmem %s6, %s586
      %p588 = scmp.lt.s32.totalorder %s30, 1
      %s589 = scalar_select %p588, %s30, 1
      %s590 = scalar_lea.vmem %s7, %s589
      %p591 = scmp.lt.s32.totalorder %s30, 1
      %s592 = scalar_select %p591, %s30, 1
      %s593 = smul.addr %s592, 4
      %s594 = smul.addr %s593, 4
      %s595 = scalar_lea.vmem %s8, %s594
      %p596 = scmp.lt.s32.totalorder %s30, 1
      %s597 = scalar_select %p596, %s30, 1
      %s598 = scalar_lea.vmem %s9, %s597
      %p599 = scmp.lt.s32.totalorder %s30, 1
      %s600 = scalar_select %p599, %s30, 1
      %s601 = smul.addr %s600, 16
      %s602 = smul.addr %s601, 4
      %s603 = scalar_lea.vmem %s10, %s602
      %p604 = scmp.lt.s32.totalorder %s30, 1
      %s605 = scalar_select %p604, %s30, 1
      %s606 = scalar_lea.vmem %s11, %s605
      %s607 = smul.u32 2, %s29
      %p608 = scmp.lt.s32.totalorder %s607, 1
      %s609 = scalar_select %p608, %s607, 1
      %s610 = smul.addr %s609, 8
      %s611 = scalar_lea.vmem %s14, %s610
      %s612 = smul.u32 2, %s29
      %p614 = scmp.eq.s32.totalorder %s30, 0
      // Predicated region
      $region73: #{bert_embedder_forward.1} parent=71 // pred_check
        %p615 = pneg %p614
      $region74: #{bert_embedder_forward.1} parent=71 // pred_check_branch
        %617 = sbr.rel (%p615) target = $region76
      $region75: #{bert_embedder_forward.1} parent=71 // pred_region
        %s618 = smul.u32 %s29, 16
        $region77: #{bert_embedder_forward.1} parent=75
          #allocation3 [shape = 's32[1]{0}', space=sflag, size = 0x4, scoped, tag = 'scoped memory for bert_embedder_forward.1']
          %s619 = scalar_lea.vmem %s0, %s618
          %p621 = scmp.lt.u32.totalorder 16, 8
          %p622 = pneg %p621
          // Predicated region
          $region78: #{bert_embedder_forward.1} parent=77 // pred_check
            _
          $region79: #{bert_embedder_forward.1} parent=77 // pred_check_branch
            %624 = sbr.rel (%p621) target = $region81
          $region80: #{bert_embedder_forward.1} parent=77 // pred_region
            %s639 = sand.u32 16, 7
            %p640 = scmp.eq.s32.totalorder %s639, 0
            // Predicated region
            $region93: #{bert_embedder_forward.1} parent=80 // pred_check
              %p641 = pneg %p640
            $region94: #{bert_embedder_forward.1} parent=80 // pred_check_branch
              %643 = sbr.rel (%p641) target = $region96
            $region95: #{bert_embedder_forward.1} parent=80 // pred_region
              loop: start=0, step=1, limit=1
              $region97: #{bert_embedder_forward.1} parent=95 // loop_pre_header
                _
              $region98: #{bert_embedder_forward.1} parent=95 // loop_header
                %s645 = sphi 0, %s649
                %p646 = scmp.ge.s32.totalorder %s645, 1
                %s650 = sphi %s619, %s619
                %s651 = sphi %s611, %s611
              $region99: #{bert_embedder_forward.1} parent=95 // loop_header_branch
                %648 = sbr.rel (%p646) target = $region103
              $region100: #{bert_embedder_forward.1} parent=95 // loop_body
                %v652 = vld [vmem:[%s650] sm:$0xff]
                %653 = vst [vmem:[%s651] sm:$0xff] %v652
                %v654 = vld [vmem:[%s650 + $0x8] sm:$0xff]
                %655 = vst [vmem:[%s651 + $0x8] sm:$0xff] %v654
              $region101: #{bert_embedder_forward.1} parent=95 // loop_footer
                %s649 = sadd.s32 1, %s645
              $region102: #{bert_embedder_forward.1} parent=95 // loop_footer_branch
                %644 = sbr.rel target = $region98
              $region103: #{bert_embedder_forward.1} parent=95 // loop_exit
                _
            $region96: #{bert_embedder_forward.1} parent=80 // pred_fallthru
              _
            %p656 = pneg %p640
            // Predicated region
            $region104: #{bert_embedder_forward.1} parent=80 // pred_check
              _
            $region105: #{bert_embedder_forward.1} parent=80 // pred_check_branch
              %658 = sbr.rel (%p640) target = $region107
            $region106: #{bert_embedder_forward.1} parent=80 // pred_region
              %s659 = sand.u32 16, 7
            $region107: #{bert_embedder_forward.1} parent=80 // pred_fallthru
              _
          $region81: #{bert_embedder_forward.1} parent=77 // pred_fallthru
            _
          // Predicated region
          $region82: #{bert_embedder_forward.1} parent=77 // pred_check
            %p625 = pneg %p621
          $region83: #{bert_embedder_forward.1} parent=77 // pred_check_branch
            %627 = sbr.rel (%p625) target = $region85
          $region84: #{bert_embedder_forward.1} parent=77 // pred_region
            %s628 = sshllo.u32 0, 16
            loop: start=0, step=1, limit=1
            $region86: #{bert_embedder_forward.1} parent=84 // loop_pre_header
              _
            $region87: #{bert_embedder_forward.1} parent=84 // loop_header
              %s630 = sphi 0, %s634
              %p631 = scmp.ge.s32.totalorder %s630, 1
              %s635 = sphi %s619, %s619
              %s636 = sphi %s611, %s611
            $region88: #{bert_embedder_forward.1} parent=84 // loop_header_branch
              %633 = sbr.rel (%p631) target = $region92
            $region89: #{bert_embedder_forward.1} parent=84 // loop_body
              %v637 = vld [vmem:[%s635] sm:%s628]
              %638 = vst [vmem:[%s636] sm:%s628] %v637
            $region90: #{bert_embedder_forward.1} parent=84 // loop_footer
              %s634 = sadd.s32 1, %s630
            $region91: #{bert_embedder_forward.1} parent=84 // loop_footer_branch
              %629 = sbr.rel target = $region87
            $region92: #{bert_embedder_forward.1} parent=84 // loop_exit
              _
          $region85: #{bert_embedder_forward.1} parent=77 // pred_fallthru
            _
          // Predicated region
          $region108: #{bert_embedder_forward.1} parent=77 // pred_check
            _
          $region109: #{bert_embedder_forward.1} parent=77 // pred_check_branch
            %662 = sbr.rel (0) target = $region111
          $region110: #{bert_embedder_forward.1} parent=77 // pred_region
            %663 = vsyncadd [#allocation3], 256
          $region111: #{bert_embedder_forward.1} parent=77 // pred_fallthru
            _
          %s664 = smul.u32 16, 1
          %s665 = sshll.u32 %s664, 4
          %666 = dma.done [#allocation3], %s665
      $region76: #{bert_embedder_forward.1} parent=71 // pred_fallthru
        _
      %v667 = vld [vmem:[%s611] sm:$0xff]
      %v668 = vld [vmem:[%s611 + $0x8] sm:$0xff]
      %v669 = vld [vmem:[%s568] sm:$0x1]
      %v670 = vld [vmem:[%s571] sm:$0x1]
      %vm671 = vcmask 261120
      %v672 = vsel %vm671, %v667, 0.0
      %673 = vadd.xlane.f32.xlu0 %v672
      %v674 = vpop.xlane.xlu0 %673
      %v675 = vsel %vm671, %v668, 0.0
      %676 = vadd.xlane.f32.xlu0 %v675
      %v677 = vpop.xlane.xlu0 %676
      %v678 = vrcp.pop 32.0
      %v679 = vmul.f32 %v674, %v678
      %v680 = vmul.f32 %v677, %v678
      %v681 = vsub.f32 %v667, %v679
      %v682 = vsub.f32 %v668, %v680
      %v683 = vmul.f32 %v681, %v681
      %v684 = vmul.f32 %v682, %v682
      %v685 = vsel %vm671, %v683, 0.0
      %686 = vadd.xlane.f32.xlu0 %v685
      %v687 = vpop.xlane.xlu0 %686
      %v688 = vsel %vm671, %v684, 0.0
      %689 = vadd.xlane.f32.xlu0 %v688
      %v690 = vpop.xlane.xlu0 %689
      %v691 = vmul.f32 %v687, %v678
      %v692 = vmul.f32 %v690, %v678
      %v693 = vadd.f32 %v691, 1e-05
      %v694 = vadd.f32 %v692, 1e-05
      %v695 = vrsqrt.pop %v693
      %v696 = vrsqrt.pop %v694
      %v697 = vmul.f32 %v681, %v695
      %v698 = vmul.f32 %v682, %v696
      %v700 = vlaneseq
      %v701 = vshrl.u32 %v700, 7
      %v702 = vsub.s32 0, %v701
      %v703 = vrot.slane %v669, %v702
      %v705 = vmul.f32 %v697, %v703
      %v706 = vmul.f32 %v698, %v703
      %v708 = vlaneseq
      %v709 = vshrl.u32 %v708, 7
      %v710 = vsub.s32 0, %v709
      %v711 = vrot.slane %v670, %v710
      %v713 = vadd.f32 %v705, %v711
      %v714 = vadd.f32 %v706, %v711
      %v715 = vpack.c.bf16 %v714, %v713
      %v716 = vld [vmem:[%s576] sm:$0xff]
      %v717 = vld [vmem:[%s576 + $0x8] sm:$0xff]
      %v718 = vld [vmem:[%s576 + $0x10] sm:$0xff]
      %v719 = vld [vmem:[%s576 + $0x18] sm:$0xff]
      %v720 = vld [vmem:[%s576 + $0x20] sm:$0xff]
      %v721 = vld [vmem:[%s576 + $0x28] sm:$0xff]
      %v722 = vld [vmem:[%s576 + $0x30] sm:$0xff]
      %v723 = vld [vmem:[%s576 + $0x38] sm:$0xff]
      %v724 = vld [vmem:[%s576 + $0x40] sm:$0xff]
      %v725 = vld [vmem:[%s576 + $0x48] sm:$0xff]
      %v726 = vld [vmem:[%s576 + $0x50] sm:$0xff]
      %v727 = vld [vmem:[%s576 + $0x58] sm:$0xff]
      %v728 = vld [vmem:[%s576 + $0x60] sm:$0xff]
      %v729 = vld [vmem:[%s576 + $0x68] sm:$0xff]
      %v730 = vld [vmem:[%s576 + $0x70] sm:$0xff]
      %v731 = vld [vmem:[%s576 + $0x78] sm:$0xff]
      %v732 = vld [vmem:[%s576 + $0x80] sm:$0xff]
      %v733 = vld [vmem:[%s576 + $0x88] sm:$0xff]
      %v734 = vld [vmem:[%s576 + $0x90] sm:$0xff]
      %v735 = vld [vmem:[%s576 + $0x98] sm:$0xff]
      %v736 = vld [vmem:[%s576 + $0xa0] sm:$0xff]
      %v737 = vld [vmem:[%s576 + $0xa8] sm:$0xff]
      %v738 = vld [vmem:[%s576 + $0xb0] sm:$0xff]
      %v739 = vld [vmem:[%s576 + $0xb8] sm:$0xff]
      %v764 = vunpack.c.l.b16 %v716
      %v765 = vunpack.c.h.b16 %v716
      %v766 = vunpack.c.l.b16 %v717
      %v767 = vunpack.c.h.b16 %v717
      %v768 = vunpack.c.l.b16 %v718
      %v769 = vunpack.c.h.b16 %v718
      %v770 = vunpack.c.l.b16 %v719
      %v771 = vunpack.c.h.b16 %v719
      %v772 = vunpack.c.l.b16 %v720
      %v773 = vunpack.c.h.b16 %v720
      %v774 = vunpack.c.l.b16 %v721
      %v775 = vunpack.c.h.b16 %v721
      %v776 = vunpack.c.l.b16 %v722
      %v777 = vunpack.c.h.b16 %v722
      %v778 = vunpack.c.l.b16 %v723
      %v779 = vunpack.c.h.b16 %v723
      %v780 = vunpack.c.l.b16 %v724
      %v781 = vunpack.c.h.b16 %v724
      %v782 = vunpack.c.l.b16 %v725
      %v783 = vunpack.c.h.b16 %v725
      %v784 = vunpack.c.l.b16 %v726
      %v785 = vunpack.c.h.b16 %v726
      %v786 = vunpack.c.l.b16 %v727
      %v787 = vunpack.c.h.b16 %v727
      %v788 = vunpack.c.l.b16 %v728
      %v789 = vunpack.c.h.b16 %v728
      %v790 = vunpack.c.l.b16 %v729
      %v791 = vunpack.c.h.b16 %v729
      %v792 = vunpack.c.l.b16 %v730
      %v793 = vunpack.c.h.b16 %v730
      %v794 = vunpack.c.l.b16 %v731
      %v795 = vunpack.c.h.b16 %v731
      %v796 = vunpack.c.l.b16 %v732
      %v797 = vunpack.c.h.b16 %v732
      %v798 = vunpack.c.l.b16 %v733
      %v799 = vunpack.c.h.b16 %v733
      %v800 = vunpack.c.l.b16 %v734
      %v801 = vunpack.c.h.b16 %v734
      %v802 = vunpack.c.l.b16 %v735
      %v803 = vunpack.c.h.b16 %v735
      %v804 = vunpack.c.l.b16 %v736
      %v805 = vunpack.c.h.b16 %v736
      %v806 = vunpack.c.l.b16 %v737
      %v807 = vunpack.c.h.b16 %v737
      %v808 = vunpack.c.l.b16 %v738
      %v809 = vunpack.c.h.b16 %v738
      %v810 = vunpack.c.l.b16 %v739
      %v811 = vunpack.c.h.b16 %v739
      %v812 = vpack.c.b16 %v776, %v764
      %v813 = vpack.c.b16 %v777, %v765
      %v814 = vpack.c.b16 %v778, %v766
      %v815 = vpack.c.b16 %v779, %v767
      %v816 = vpack.c.b16 %v780, %v768
      %v817 = vpack.c.b16 %v781, %v769
      %v818 = vpack.c.b16 %v782, %v770
      %v819 = vpack.c.b16 %v783, %v771
      %v820 = vpack.c.b16 %v784, %v772
      %v821 = vpack.c.b16 %v785, %v773
      %v822 = vpack.c.b16 %v786, %v774
      %v823 = vpack.c.b16 %v787, %v775
      %v824 = vpack.c.b16 %v800, %v788
      %v825 = vpack.c.b16 %v801, %v789
      %v826 = vpack.c.b16 %v802, %v790
      %v827 = vpack.c.b16 %v803, %v791
      %v828 = vpack.c.b16 %v804, %v792
      %v829 = vpack.c.b16 %v805, %v793
      %v830 = vpack.c.b16 %v806, %v794
      %v831 = vpack.c.b16 %v807, %v795
      %v832 = vpack.c.b16 %v808, %v796
      %v833 = vpack.c.b16 %v809, %v797
      %v834 = vpack.c.b16 %v810, %v798
      %v835 = vpack.c.b16 %v811, %v799
      %v861 = vsel %vm671, %v715, 0
      %863 = vmatprep.subr.bf16.mxu0 %v813
      %864 = vmatpush1.bf16.msra.mxu0 %v812
      %865 = vmatprep.subr.bf16.mxu0 %v825
      %866 = vmatpush1.bf16.msra.mxu0 %v824
      %867 = vmatprep.subr.bf16.mxu0 0
      %868 = vmatpush1.bf16.msra.mxu0 0
      %869 = vmatprep.subr.bf16.mxu0 0
      %870 = vmatpush1.bf16.msra.mxu0 0
      %871 = vmatprep.subr.bf16.mxu0 0
      %872 = vmatpush1.bf16.msra.mxu0 0
      %873 = vmatprep.subr.bf16.mxu0 0
      %874 = vmatpush1.bf16.msra.mxu0 0
      %875 = vmatprep.subr.bf16.mxu0 0
      %876 = vmatpush1.bf16.msra.mxu0 0
      %877 = vmatprep.subr.bf16.mxu0 0
      %878 = vmatpush1.bf16.msra.mxu0 0
      %879 = vmatprep.subr.bf16.mxu0 0
      %880 = vmatpush1.bf16.msra.mxu0 0
      %881 = vmatprep.subr.bf16.mxu0 0
      %882 = vmatpush1.bf16.msra.mxu0 0
      %883 = vmatprep.subr.bf16.mxu0 0
      %884 = vmatpush1.bf16.msra.mxu0 0
      %885 = vmatprep.subr.bf16.mxu0 0
      %886 = vmatpush1.bf16.msra.mxu0 0
      %887 = vmatprep.subr.bf16.mxu0 0
      %888 = vmatpush1.bf16.msra.mxu0 0
      %889 = vmatprep.subr.bf16.mxu0 0
      %890 = vmatpush1.bf16.msra.mxu0 0
      %891 = vmatprep.subr.bf16.mxu0 0
      %892 = vmatpush1.bf16.msra.mxu0 0
      %893 = vmatprep.subr.bf16.mxu0 0
      %894 = vmatpush1.bf16.msra.mxu0 0
      %895 = vmatprep.mubr.bf16.mxu0 0
      %896 = vmatmul.mubr.bf16.gmra.mrb[0].mxu0 %v861
      %v897 = vpop.f32.mrb[0].mxu0
      %v898 = vadd.f32 0.0, %v897
      %v899 = vpop.f32.mrb[0].mxu0
      %v900 = vadd.f32 0.0, %v899
      %v901 = vpop.f32.mrb[0].mxu0
      %v902 = vadd.f32 0.0, %v901
      %v903 = vpop.f32.mrb[0].mxu0
      %v904 = vadd.f32 0.0, %v903
      %905 = vdwg.mxu0
      %906 = vmatprep.subr.bf16.mxu0 %v815
      %907 = vmatpush1.bf16.msra.mxu0 %v814
      %908 = vmatprep.subr.bf16.mxu0 %v827
      %909 = vmatpush1.bf16.msra.mxu0 %v826
      %910 = vmatprep.subr.bf16.mxu0 0
      %911 = vmatpush1.bf16.msra.mxu0 0
      %912 = vmatprep.subr.bf16.mxu0 0
      %913 = vmatpush1.bf16.msra.mxu0 0
      %914 = vmatprep.subr.bf16.mxu0 0
      %915 = vmatpush1.bf16.msra.mxu0 0
      %916 = vmatprep.subr.bf16.mxu0 0
      %917 = vmatpush1.bf16.msra.mxu0 0
      %918 = vmatprep.subr.bf16.mxu0 0
      %919 = vmatpush1.bf16.msra.mxu0 0
      %920 = vmatprep.subr.bf16.mxu0 0
      %921 = vmatpush1.bf16.msra.mxu0 0
      %922 = vmatprep.subr.bf16.mxu0 0
      %923 = vmatpush1.bf16.msra.mxu0 0
      %924 = vmatprep.subr.bf16.mxu0 0
      %925 = vmatpush1.bf16.msra.mxu0 0
      %926 = vmatprep.subr.bf16.mxu0 0
      %927 = vmatpush1.bf16.msra.mxu0 0
      %928 = vmatprep.subr.bf16.mxu0 0
      %929 = vmatpush1.bf16.msra.mxu0 0
      %930 = vmatprep.subr.bf16.mxu0 0
      %931 = vmatpush1.bf16.msra.mxu0 0
      %932 = vmatprep.subr.bf16.mxu0 0
      %933 = vmatpush1.bf16.msra.mxu0 0
      %934 = vmatprep.subr.bf16.mxu0 0
      %935 = vmatpush1.bf16.msra.mxu0 0
      %936 = vmatprep.subr.bf16.mxu0 0
      %937 = vmatpush1.bf16.msra.mxu0 0
      %938 = vmatprep.mubr.bf16.mxu0 0
      %939 = vmatmul.mubr.bf16.gmra.mrb[0].mxu0 %v861
      %v940 = vpop.f32.mrb[0].mxu0
      %v941 = vadd.f32 0.0, %v940
      %v942 = vpop.f32.mrb[0].mxu0
      %v943 = vadd.f32 0.0, %v942
      %v944 = vpop.f32.mrb[0].mxu0
      %v945 = vadd.f32 0.0, %v944
      %v946 = vpop.f32.mrb[0].mxu0
      %v947 = vadd.f32 0.0, %v946
      %948 = vdwg.mxu0
      %949 = vmatprep.subr.bf16.mxu0 %v817
      %950 = vmatpush1.bf16.msra.mxu0 %v816
      %951 = vmatprep.subr.bf16.mxu0 %v829
      %952 = vmatpush1.bf16.msra.mxu0 %v828
      %953 = vmatprep.subr.bf16.mxu0 0
      %954 = vmatpush1.bf16.msra.mxu0 0
      %955 = vmatprep.subr.bf16.mxu0 0
      %956 = vmatpush1.bf16.msra.mxu0 0
      %957 = vmatprep.subr.bf16.mxu0 0
      %958 = vmatpush1.bf16.msra.mxu0 0
      %959 = vmatprep.subr.bf16.mxu0 0
      %960 = vmatpush1.bf16.msra.mxu0 0
      %961 = vmatprep.subr.bf16.mxu0 0
      %962 = vmatpush1.bf16.msra.mxu0 0
      %963 = vmatprep.subr.bf16.mxu0 0
      %964 = vmatpush1.bf16.msra.mxu0 0
      %965 = vmatprep.subr.bf16.mxu0 0
      %966 = vmatpush1.bf16.msra.mxu0 0
      %967 = vmatprep.subr.bf16.mxu0 0
      %968 = vmatpush1.bf16.msra.mxu0 0
      %969 = vmatprep.subr.bf16.mxu0 0
      %970 = vmatpush1.bf16.msra.mxu0 0
      %971 = vmatprep.subr.bf16.mxu0 0
      %972 = vmatpush1.bf16.msra.mxu0 0
      %973 = vmatprep.subr.bf16.mxu0 0
      %974 = vmatpush1.bf16.msra.mxu0 0
      %975 = vmatprep.subr.bf16.mxu0 0
      %976 = vmatpush1.bf16.msra.mxu0 0
      %977 = vmatprep.subr.bf16.mxu0 0
      %978 = vmatpush1.bf16.msra.mxu0 0
      %979 = vmatprep.subr.bf16.mxu0 0
      %980 = vmatpush1.bf16.msra.mxu0 0
      %981 = vmatprep.mubr.bf16.mxu0 0
      %982 = vmatmul.mubr.bf16.gmra.mrb[0].mxu0 %v861
      %v983 = vpop.f32.mrb[0].mxu0
      %v984 = vadd.f32 0.0, %v983
      %v985 = vpop.f32.mrb[0].mxu0
      %v986 = vadd.f32 0.0, %v985
      %v987 = vpop.f32.mrb[0].mxu0
      %v988 = vadd.f32 0.0, %v987
      %v989 = vpop.f32.mrb[0].mxu0
      %v990 = vadd.f32 0.0, %v989
      %991 = vdwg.mxu0
      %992 = vmatprep.subr.bf16.mxu0 %v819
      %993 = vmatpush1.bf16.msra.mxu0 %v818
      %994 = vmatprep.subr.bf16.mxu0 %v831
      %995 = vmatpush1.bf16.msra.mxu0 %v830
      %996 = vmatprep.subr.bf16.mxu0 0
      %997 = vmatpush1.bf16.msra.mxu0 0
      %998 = vmatprep.subr.bf16.mxu0 0
      %999 = vmatpush1.bf16.msra.mxu0 0
      %1000 = vmatprep.subr.bf16.mxu0 0
      %1001 = vmatpush1.bf16.msra.mxu0 0
      %1002 = vmatprep.subr.bf16.mxu0 0
      %1003 = vmatpush1.bf16.msra.mxu0 0
      %1004 = vmatprep.subr.bf16.mxu0 0
      %1005 = vmatpush1.bf16.msra.mxu0 0
      %1006 = vmatprep.subr.bf16.mxu0 0
      %1007 = vmatpush1.bf16.msra.mxu0 0
      %1008 = vmatprep.subr.bf16.mxu0 0
      %1009 = vmatpush1.bf16.msra.mxu0 0
      %1010 = vmatprep.subr.bf16.mxu0 0
      %1011 = vmatpush1.bf16.msra.mxu0 0
      %1012 = vmatprep.subr.bf16.mxu0 0
      %1013 = vmatpush1.bf16.msra.mxu0 0
      %1014 = vmatprep.subr.bf16.mxu0 0
      %1015 = vmatpush1.bf16.msra.mxu0 0
      %1016 = vmatprep.subr.bf16.mxu0 0
      %1017 = vmatpush1.bf16.msra.mxu0 0
      %1018 = vmatprep.subr.bf16.mxu0 0
      %1019 = vmatpush1.bf16.msra.mxu0 0
      %1020 = vmatprep.subr.bf16.mxu0 0
      %1021 = vmatpush1.bf16.msra.mxu0 0
      %1022 = vmatprep.subr.bf16.mxu0 0
      %1023 = vmatpush1.bf16.msra.mxu0 0
      %1024 = vmatprep.mubr.bf16.mxu0 0
      %1025 = vmatmul.mubr.bf16.gmra.mrb[0].mxu0 %v861
      %v1026 = vpop.f32.mrb[0].mxu0
      %v1027 = vadd.f32 0.0, %v1026
      %v1028 = vpop.f32.mrb[0].mxu0
      %v1029 = vadd.f32 0.0, %v1028
      %v1030 = vpop.f32.mrb[0].mxu0
      %v1031 = vadd.f32 0.0, %v1030
      %v1032 = vpop.f32.mrb[0].mxu0
      %v1033 = vadd.f32 0.0, %v1032
      %1034 = vdwg.mxu0
      %1035 = vmatprep.subr.bf16.mxu0 %v821
      %1036 = vmatpush1.bf16.msra.mxu0 %v820
      %1037 = vmatprep.subr.bf16.mxu0 %v833
      %1038 = vmatpush1.bf16.msra.mxu0 %v832
      %1039 = vmatprep.subr.bf16.mxu0 0
      %1040 = vmatpush1.bf16.msra.mxu0 0
      %1041 = vmatprep.subr.bf16.mxu0 0
      %1042 = vmatpush1.bf16.msra.mxu0 0
      %1043 = vmatprep.subr.bf16.mxu0 0
      %1044 = vmatpush1.bf16.msra.mxu0 0
      %1045 = vmatprep.subr.bf16.mxu0 0
      %1046 = vmatpush1.bf16.msra.mxu0 0
      %1047 = vmatprep.subr.bf16.mxu0 0
      %1048 = vmatpush1.bf16.msra.mxu0 0
      %1049 = vmatprep.subr.bf16.mxu0 0
      %1050 = vmatpush1.bf16.msra.mxu0 0
      %1051 = vmatprep.subr.bf16.mxu0 0
      %1052 = vmatpush1.bf16.msra.mxu0 0
      %1053 = vmatprep.subr.bf16.mxu0 0
      %1054 = vmatpush1.bf16.msra.mxu0 0
      %1055 = vmatprep.subr.bf16.mxu0 0
      %1056 = vmatpush1.bf16.msra.mxu0 0
      %1057 = vmatprep.subr.bf16.mxu0 0
      %1058 = vmatpush1.bf16.msra.mxu0 0
      %1059 = vmatprep.subr.bf16.mxu0 0
      %1060 = vmatpush1.bf16.msra.mxu0 0
      %1061 = vmatprep.subr.bf16.mxu0 0
      %1062 = vmatpush1.bf16.msra.mxu0 0
      %1063 = vmatprep.subr.bf16.mxu0 0
      %1064 = vmatpush1.bf16.msra.mxu0 0
      %1065 = vmatprep.subr.bf16.mxu0 0
      %1066 = vmatpush1.bf16.msra.mxu0 0
      %1067 = vmatprep.mubr.bf16.mxu0 0
      %1068 = vmatmul.mubr.bf16.gmra.mrb[0].mxu0 %v861
      %v1069 = vpop.f32.mrb[0].mxu0
      %v1070 = vadd.f32 0.0, %v1069
      %v1071 = vpop.f32.mrb[0].mxu0
      %v1072 = vadd.f32 0.0, %v1071
      %v1073 = vpop.f32.mrb[0].mxu0
      %v1074 = vadd.f32 0.0, %v1073
      %v1075 = vpop.f32.mrb[0].mxu0
      %v1076 = vadd.f32 0.0, %v1075
      %1077 = vdwg.mxu0
      %1078 = vmatprep.subr.bf16.mxu0 %v823
      %1079 = vmatpush1.bf16.msra.mxu0 %v822
      %1080 = vmatprep.subr.bf16.mxu0 %v835
      %1081 = vmatpush1.bf16.msra.mxu0 %v834
      %1082 = vmatprep.subr.bf16.mxu0 0
      %1083 = vmatpush1.bf16.msra.mxu0 0
      %1084 = vmatprep.subr.bf16.mxu0 0
      %1085 = vmatpush1.bf16.msra.mxu0 0
      %1086 = vmatprep.subr.bf16.mxu0 0
      %1087 = vmatpush1.bf16.msra.mxu0 0
      %1088 = vmatprep.subr.bf16.mxu0 0
      %1089 = vmatpush1.bf16.msra.mxu0 0
      %1090 = vmatprep.subr.bf16.mxu0 0
      %1091 = vmatpush1.bf16.msra.mxu0 0
      %1092 = vmatprep.subr.bf16.mxu0 0
      %1093 = vmatpush1.bf16.msra.mxu0 0
      %1094 = vmatprep.subr.bf16.mxu0 0
      %1095 = vmatpush1.bf16.msra.mxu0 0
      %1096 = vmatprep.subr.bf16.mxu0 0
      %1097 = vmatpush1.bf16.msra.mxu0 0
      %1098 = vmatprep.subr.bf16.mxu0 0
      %1099 = vmatpush1.bf16.msra.mxu0 0
      %1100 = vmatprep.subr.bf16.mxu0 0
      %1101 = vmatpush1.bf16.msra.mxu0 0
      %1102 = vmatprep.subr.bf16.mxu0 0
      %1103 = vmatpush1.bf16.msra.mxu0 0
      %1104 = vmatprep.subr.bf16.mxu0 0
      %1105 = vmatpush1.bf16.msra.mxu0 0
      %1106 = vmatprep.subr.bf16.mxu0 0
      %1107 = vmatpush1.bf16.msra.mxu0 0
      %1108 = vmatprep.subr.bf16.mxu0 0
      %1109 = vmatpush1.bf16.msra.mxu0 0
      %1110 = vmatprep.mubr.bf16.mxu0 0
      %1111 = vmatmul.mubr.bf16.gmra.mrb[0].mxu0 %v861
      %v1112 = vpop.f32.mrb[0].mxu0
      %v1113 = vadd.f32 0.0, %v1112
      %v1114 = vpop.f32.mrb[0].mxu0
      %v1115 = vadd.f32 0.0, %v1114
      %v1116 = vpop.f32.mrb[0].mxu0
      %v1117 = vadd.f32 0.0, %v1116
      %v1118 = vpop.f32.mrb[0].mxu0
      %v1119 = vadd.f32 0.0, %v1118
      %1120 = vdwg.mxu0
      %v1121 = vmul.f32 %v898, 0.125
      %v1122 = vmul.f32 %v900, 0.125
      %v1123 = vmul.f32 %v941, 0.125
      %v1124 = vmul.f32 %v943, 0.125
      %v1125 = vmul.f32 %v902, 0.125
      %v1126 = vmul.f32 %v904, 0.125
      %v1127 = vmul.f32 %v945, 0.125
      %v1128 = vmul.f32 %v947, 0.125
      %v1129 = vpack.c.bf16 %v1125, %v1121
      %v1130 = vpack.c.bf16 %v1126, %v1122
      %v1131 = vpack.c.bf16 %v1127, %v1123
      %v1132 = vpack.c.bf16 %v1128, %v1124
      %v1133 = vpack.c.bf16 %v988, %v984
      %v1134 = vpack.c.bf16 %v990, %v986
      %v1135 = vpack.c.bf16 %v1031, %v1027
      %v1136 = vpack.c.bf16 %v1033, %v1029
      %v1137 = vpack.c.bf16 %v1074, %v1070
      %v1138 = vpack.c.bf16 %v1076, %v1072
      %v1139 = vpack.c.bf16 %v1117, %v1113
      %v1140 = vpack.c.bf16 %v1119, %v1115
      %v1142 = vunpack.c.l.b16 %v1129
      %v1143 = vunpack.c.h.b16 %v1129
      %v1144 = vpack.c.b16 %v1142, %v1142
      %v1145 = vpack.c.b16 %v1143, %v1143
      %v1147 = vunpack.c.l.b16 %v1133
      %v1148 = vunpack.c.h.b16 %v1133
      %v1149 = vpack.c.b16 %v1147, %v1147
      %v1150 = vpack.c.b16 %v1148, %v1148
      %v1152 = vunpack.c.l.b16 %v1137
      %v1153 = vunpack.c.h.b16 %v1137
      %v1154 = vpack.c.b16 %v1152, %v1152
      %v1155 = vpack.c.b16 %v1153, %v1153
      %vm1156 = vcmask 523264
      %v1158 = vsel %vm1156, %v1144, 0
      %v1161 = vsel %vm1156, %v1149, 0
      %1163 = vmatprep.subr.bf16.mxu0 0
      %1164 = vmatpush1.bf16.xpose.msra.mxu0 %v1161
      %1165 = vmatprep.subr.bf16.mxu0 0
      %1166 = vmatpush1.bf16.xpose.msra.mxu0 0
      %1167 = vmatprep.subr.bf16.mxu0 0
      %1168 = vmatpush1.bf16.xpose.msra.mxu0 0
      %1169 = vmatprep.subr.bf16.mxu0 0
      %1170 = vmatpush1.bf16.xpose.msra.mxu0 0
      %1171 = vmatprep.subr.bf16.mxu0 0
      %1172 = vmatpush1.bf16.xpose.msra.mxu0 0
      %1173 = vmatprep.subr.bf16.mxu0 0
      %1174 = vmatpush1.bf16.xpose.msra.mxu0 0
      %1175 = vmatprep.subr.bf16.mxu0 0
      %1176 = vmatpush1.bf16.xpose.msra.mxu0 0
      %1177 = vmatprep.subr.bf16.mxu0 0
      %1178 = vmatpush1.bf16.xpose.msra.mxu0 0
      %1179 = vmatprep.subr.bf16.mxu0 0
      %1180 = vmatpush1.bf16.xpose.msra.mxu0 0
      %1181 = vmatprep.subr.bf16.mxu0 0
      %1182 = vmatpush1.bf16.xpose.msra.mxu0 0
      %1183 = vmatprep.subr.bf16.mxu0 0
      %1184 = vmatpush1.bf16.xpose.msra.mxu0 0
      %1185 = vmatprep.subr.bf16.mxu0 0
      %1186 = vmatpush1.bf16.xpose.msra.mxu0 0
      %1187 = vmatprep.subr.bf16.mxu0 0
      %1188 = vmatpush1.bf16.xpose.msra.mxu0 0
      %1189 = vmatprep.subr.bf16.mxu0 0
      %1190 = vmatpush1.bf16.xpose.msra.mxu0 0
      %1191 = vmatprep.subr.bf16.mxu0 0
      %1192 = vmatpush1.bf16.xpose.msra.mxu0 0
      %1193 = vmatprep.subr.bf16.mxu0 0
      %1194 = vmatpush1.bf16.xpose.msra.mxu0 0
      %1195 = vmatprep.mubr.bf16.mxu0 0
      %1196 = vmatmul.mubr.bf16.gmra.mrb[0].mxu0 %v1158
      %v1197 = vpop.f32.mrb[0].mxu0
      %v1198 = vadd.f32 0.0, %v1197
      %v1199 = vpop.f32.mrb[0].mxu0
      %v1200 = vpop.f32.mrb[0].mxu0
      %v1201 = vpop.f32.mrb[0].mxu0
      %1202 = vdwg.mxu0
      %v1204 = vsel %vm1156, %v1145, 0
      %v1207 = vsel %vm1156, %v1150, 0
      %1209 = vmatprep.subr.bf16.mxu0 0
      %1210 = vmatpush1.bf16.xpose.msra.mxu0 %v1207
      %1211 = vmatprep.subr.bf16.mxu0 0
      %1212 = vmatpush1.bf16.xpose.msra.mxu0 0
      %1213 = vmatprep.subr.bf16.mxu0 0
      %1214 = vmatpush1.bf16.xpose.msra.mxu0 0
      %1215 = vmatprep.subr.bf16.mxu0 0
      %1216 = vmatpush1.bf16.xpose.msra.mxu0 0
      %1217 = vmatprep.subr.bf16.mxu0 0
      %1218 = vmatpush1.bf16.xpose.msra.mxu0 0
      %1219 = vmatprep.subr.bf16.mxu0 0
      %1220 = vmatpush1.bf16.xpose.msra.mxu0 0
      %1221 = vmatprep.subr.bf16.mxu0 0
      %1222 = vmatpush1.bf16.xpose.msra.mxu0 0
      %1223 = vmatprep.subr.bf16.mxu0 0
      %1224 = vmatpush1.bf16.xpose.msra.mxu0 0
      %1225 = vmatprep.subr.bf16.mxu0 0
      %1226 = vmatpush1.bf16.xpose.msra.mxu0 0
      %1227 = vmatprep.subr.bf16.mxu0 0
      %1228 = vmatpush1.bf16.xpose.msra.mxu0 0
      %1229 = vmatprep.subr.bf16.mxu0 0
      %1230 = vmatpush1.bf16.xpose.msra.mxu0 0
      %1231 = vmatprep.subr.bf16.mxu0 0
      %1232 = vmatpush1.bf16.xpose.msra.mxu0 0
      %1233 = vmatprep.subr.bf16.mxu0 0
      %1234 = vmatpush1.bf16.xpose.msra.mxu0 0
      %1235 = vmatprep.subr.bf16.mxu0 0
      %1236 = vmatpush1.bf16.xpose.msra.mxu0 0
      %1237 = vmatprep.subr.bf16.mxu0 0
      %1238 = vmatpush1.bf16.xpose.msra.mxu0 0
      %1239 = vmatprep.subr.bf16.mxu0 0
      %1240 = vmatpush1.bf16.xpose.msra.mxu0 0
      %1241 = vmatprep.mubr.bf16.mxu0 0
      %1242 = vmatmul.mubr.bf16.gmra.mrb[0].mxu0 %v1204
      %v1243 = vpop.f32.mrb[0].mxu0
      %v1244 = vadd.f32 0.0, %v1243
      %v1245 = vpop.f32.mrb[0].mxu0
      %v1246 = vpop.f32.mrb[0].mxu0
      %v1247 = vpop.f32.mrb[0].mxu0
      %1248 = vdwg.mxu0
      %vm1249 = vcmask 64512
      %v1250 = vsel %vm1249, %v1198, -inf
      %1251 = vmax.xlane.f32.xlu0 %v1250
      %v1252 = vpop.xlane.xlu0 %1251
      %v1253 = vsel %vm1249, %v1244, -inf
      %1254 = vmax.xlane.f32.xlu0 %v1253
      %v1255 = vpop.xlane.xlu0 %1254
      %v1256 = vsub.f32 %v1198, %v1252
      %v1257 = vsub.f32 %v1244, %v1255
      %v1258 = vmul.f32 %v1256, 1.442695
      %v1259 = vpow.pop %v1258
      %v1260 = vmul.f32 %v1257, 1.442695
      %v1261 = vpow.pop %v1260
      %v1262 = vsel %vm1249, %v1259, 0.0
      %1263 = vadd.xlane.f32.xlu0 %v1262
      %v1264 = vpop.xlane.xlu0 %1263
      %v1265 = vsel %vm1249, %v1261, 0.0
      %1266 = vadd.xlane.f32.xlu0 %v1265
      %v1267 = vpop.xlane.xlu0 %1266
      %v1268 = vrcp.pop %v1264
      %v1269 = vrcp.pop %v1267
      %v1270 = vmul.f32 %v1259, %v1268
      %v1271 = vmul.f32 %v1261, %v1269
      %v1272 = vpack.c.bf16 %v1270, %v1270
      %v1273 = vpack.c.bf16 %v1271, %v1271
      %v1275 = vsel %vm1249, %v1272, 0
      %vm1277 = vcmask 1043456
      %v1279 = vsel %vm1277, %v1154, 0
      %1281 = vmatprep.subr.bf16.mxu0 0
      %1282 = vmatpush1.bf16.msra.mxu0 %v1279
      %1283 = vmatprep.subr.bf16.mxu0 0
      %1284 = vmatpush1.bf16.msra.mxu0 0
      %1285 = vmatprep.subr.bf16.mxu0 0
      %1286 = vmatpush1.bf16.msra.mxu0 0
      %1287 = vmatprep.subr.bf16.mxu0 0
      %1288 = vmatpush1.bf16.msra.mxu0 0
      %1289 = vmatprep.subr.bf16.mxu0 0
      %1290 = vmatpush1.bf16.msra.mxu0 0
      %1291 = vmatprep.subr.bf16.mxu0 0
      %1292 = vmatpush1.bf16.msra.mxu0 0
      %1293 = vmatprep.subr.bf16.mxu0 0
      %1294 = vmatpush1.bf16.msra.mxu0 0
      %1295 = vmatprep.subr.bf16.mxu0 0
      %1296 = vmatpush1.bf16.msra.mxu0 0
      %1297 = vmatprep.subr.bf16.mxu0 0
      %1298 = vmatpush1.bf16.msra.mxu0 0
      %1299 = vmatprep.subr.bf16.mxu0 0
      %1300 = vmatpush1.bf16.msra.mxu0 0
      %1301 = vmatprep.subr.bf16.mxu0 0
      %1302 = vmatpush1.bf16.msra.mxu0 0
      %1303 = vmatprep.subr.bf16.mxu0 0
      %1304 = vmatpush1.bf16.msra.mxu0 0
      %1305 = vmatprep.subr.bf16.mxu0 0
      %1306 = vmatpush1.bf16.msra.mxu0 0
      %1307 = vmatprep.subr.bf16.mxu0 0
      %1308 = vmatpush1.bf16.msra.mxu0 0
      %1309 = vmatprep.subr.bf16.mxu0 0
      %1310 = vmatpush1.bf16.msra.mxu0 0
      %1311 = vmatprep.subr.bf16.mxu0 0
      %1312 = vmatpush1.bf16.msra.mxu0 0
      %1313 = vmatprep.mubr.bf16.mxu0 0
      %1314 = vmatmul.mubr.bf16.gmra.mrb[0].mxu0 %v1275
      %v1315 = vpop.f32.mrb[0].mxu0
      %v1316 = vadd.f32 0.0, %v1315
      %v1317 = vpop.f32.mrb[0].mxu0
      %v1318 = vpop.f32.mrb[0].mxu0
      %v1319 = vpop.f32.mrb[0].mxu0
      %1320 = vdwg.mxu0
      %v1322 = vsel %vm1249, %v1273, 0
      %v1325 = vsel %vm1277, %v1155, 0
      %1327 = vmatprep.subr.bf16.mxu0 0
      %1328 = vmatpush1.bf16.msra.mxu0 %v1325
      %1329 = vmatprep.subr.bf16.mxu0 0
      %1330 = vmatpush1.bf16.msra.mxu0 0
      %1331 = vmatprep.subr.bf16.mxu0 0
      %1332 = vmatpush1.bf16.msra.mxu0 0
      %1333 = vmatprep.subr.bf16.mxu0 0
      %1334 = vmatpush1.bf16.msra.mxu0 0
      %1335 = vmatprep.subr.bf16.mxu0 0
      %1336 = vmatpush1.bf16.msra.mxu0 0
      %1337 = vmatprep.subr.bf16.mxu0 0
      %1338 = vmatpush1.bf16.msra.mxu0 0
      %1339 = vmatprep.subr.bf16.mxu0 0
      %1340 = vmatpush1.bf16.msra.mxu0 0
      %1341 = vmatprep.subr.bf16.mxu0 0
      %1342 = vmatpush1.bf16.msra.mxu0 0
      %1343 = vmatprep.subr.bf16.mxu0 0
      %1344 = vmatpush1.bf16.msra.mxu0 0
      %1345 = vmatprep.subr.bf16.mxu0 0
      %1346 = vmatpush1.bf16.msra.mxu0 0
      %1347 = vmatprep.subr.bf16.mxu0 0
      %1348 = vmatpush1.bf16.msra.mxu0 0
      %1349 = vmatprep.subr.bf16.mxu0 0
      %1350 = vmatpush1.bf16.msra.mxu0 0
      %1351 = vmatprep.subr.bf16.mxu0 0
      %1352 = vmatpush1.bf16.msra.mxu0 0
      %1353 = vmatprep.subr.bf16.mxu0 0
      %1354 = vmatpush1.bf16.msra.mxu0 0
      %1355 = vmatprep.subr.bf16.mxu0 0
      %1356 = vmatpush1.bf16.msra.mxu0 0
      %1357 = vmatprep.subr.bf16.mxu0 0
      %1358 = vmatpush1.bf16.msra.mxu0 0
      %1359 = vmatprep.mubr.bf16.mxu0 0
      %1360 = vmatmul.mubr.bf16.gmra.mrb[0].mxu0 %v1322
      %v1361 = vpop.f32.mrb[0].mxu0
      %v1362 = vadd.f32 0.0, %v1361
      %v1363 = vpop.f32.mrb[0].mxu0
      %v1364 = vpop.f32.mrb[0].mxu0
      %v1365 = vpop.f32.mrb[0].mxu0
      %1366 = vdwg.mxu0
      %v1367 = vpack.c.bf16 %v1362, %v1316
      %1368 = vst.msk [vmem:[#allocation2] sm:$0xff] %vm1156, %v1367
      %1369 = vrot.lane.b32.xlu0 %v1144, 64
      %v1370 = vpop.permute.xlu0 %1369
      %1371 = vrot.lane.b32.xlu0 %v1149, 64
      %v1372 = vpop.permute.xlu0 %1371
      %v1374 = vsel %vm1156, %v1370, 0
      %v1377 = vsel %vm1156, %v1372, 0
      %1379 = vmatprep.subr.bf16.mxu0 0
      %1380 = vmatpush1.bf16.xpose.msra.mxu0 %v1377
      %1381 = vmatprep.subr.bf16.mxu0 0
      %1382 = vmatpush1.bf16.xpose.msra.mxu0 0
      %1383 = vmatprep.subr.bf16.mxu0 0
      %1384 = vmatpush1.bf16.xpose.msra.mxu0 0
      %1385 = vmatprep.subr.bf16.mxu0 0
      %1386 = vmatpush1.bf16.xpose.msra.mxu0 0
      %1387 = vmatprep.subr.bf16.mxu0 0
      %1388 = vmatpush1.bf16.xpose.msra.mxu0 0
      %1389 = vmatprep.subr.bf16.mxu0 0
      %1390 = vmatpush1.bf16.xpose.msra.mxu0 0
      %1391 = vmatprep.subr.bf16.mxu0 0
      %1392 = vmatpush1.bf16.xpose.msra.mxu0 0
      %1393 = vmatprep.subr.bf16.mxu0 0
      %1394 = vmatpush1.bf16.xpose.msra.mxu0 0
      %1395 = vmatprep.subr.bf16.mxu0 0
      %1396 = vmatpush1.bf16.xpose.msra.mxu0 0
      %1397 = vmatprep.subr.bf16.mxu0 0
      %1398 = vmatpush1.bf16.xpose.msra.mxu0 0
      %1399 = vmatprep.subr.bf16.mxu0 0
      %1400 = vmatpush1.bf16.xpose.msra.mxu0 0
      %1401 = vmatprep.subr.bf16.mxu0 0
      %1402 = vmatpush1.bf16.xpose.msra.mxu0 0
      %1403 = vmatprep.subr.bf16.mxu0 0
      %1404 = vmatpush1.bf16.xpose.msra.mxu0 0
      %1405 = vmatprep.subr.bf16.mxu0 0
      %1406 = vmatpush1.bf16.xpose.msra.mxu0 0
      %1407 = vmatprep.subr.bf16.mxu0 0
      %1408 = vmatpush1.bf16.xpose.msra.mxu0 0
      %1409 = vmatprep.subr.bf16.mxu0 0
      %1410 = vmatpush1.bf16.xpose.msra.mxu0 0
      %1411 = vmatprep.mubr.bf16.mxu0 0
      %1412 = vmatmul.mubr.bf16.gmra.mrb[0].mxu0 %v1374
      %v1413 = vpop.f32.mrb[0].mxu0
      %v1414 = vadd.f32 0.0, %v1413
      %v1415 = vpop.f32.mrb[0].mxu0
      %v1416 = vpop.f32.mrb[0].mxu0
      %v1417 = vpop.f32.mrb[0].mxu0
      %1418 = vdwg.mxu0
      %1419 = vrot.lane.b32.xlu0 %v1145, 64
      %v1420 = vpop.permute.xlu0 %1419
      %1421 = vrot.lane.b32.xlu0 %v1150, 64
      %v1422 = vpop.permute.xlu0 %1421
      %v1424 = vsel %vm1156, %v1420, 0
      %v1427 = vsel %vm1156, %v1422, 0
      %1429 = vmatprep.subr.bf16.mxu0 0
      %1430 = vmatpush1.bf16.xpose.msra.mxu0 %v1427
      %1431 = vmatprep.subr.bf16.mxu0 0
      %1432 = vmatpush1.bf16.xpose.msra.mxu0 0
      %1433 = vmatprep.subr.bf16.mxu0 0
      %1434 = vmatpush1.bf16.xpose.msra.mxu0 0
      %1435 = vmatprep.subr.bf16.mxu0 0
      %1436 = vmatpush1.bf16.xpose.msra.mxu0 0
      %1437 = vmatprep.subr.bf16.mxu0 0
      %1438 = vmatpush1.bf16.xpose.msra.mxu0 0
      %1439 = vmatprep.subr.bf16.mxu0 0
      %1440 = vmatpush1.bf16.xpose.msra.mxu0 0
      %1441 = vmatprep.subr.bf16.mxu0 0
      %1442 = vmatpush1.bf16.xpose.msra.mxu0 0
      %1443 = vmatprep.subr.bf16.mxu0 0
      %1444 = vmatpush1.bf16.xpose.msra.mxu0 0
      %1445 = vmatprep.subr.bf16.mxu0 0
      %1446 = vmatpush1.bf16.xpose.msra.mxu0 0
      %1447 = vmatprep.subr.bf16.mxu0 0
      %1448 = vmatpush1.bf16.xpose.msra.mxu0 0
      %1449 = vmatprep.subr.bf16.mxu0 0
      %1450 = vmatpush1.bf16.xpose.msra.mxu0 0
      %1451 = vmatprep.subr.bf16.mxu0 0
      %1452 = vmatpush1.bf16.xpose.msra.mxu0 0
      %1453 = vmatprep.subr.bf16.mxu0 0
      %1454 = vmatpush1.bf16.xpose.msra.mxu0 0
      %1455 = vmatprep.subr.bf16.mxu0 0
      %1456 = vmatpush1.bf16.xpose.msra.mxu0 0
      %1457 = vmatprep.subr.bf16.mxu0 0
      %1458 = vmatpush1.bf16.xpose.msra.mxu0 0
      %1459 = vmatprep.subr.bf16.mxu0 0
      %1460 = vmatpush1.bf16.xpose.msra.mxu0 0
      %1461 = vmatprep.mubr.bf16.mxu0 0
      %1462 = vmatmul.mubr.bf16.gmra.mrb[0].mxu0 %v1424
      %v1463 = vpop.f32.mrb[0].mxu0
      %v1464 = vadd.f32 0.0, %v1463
      %v1465 = vpop.f32.mrb[0].mxu0
      %v1466 = vpop.f32.mrb[0].mxu0
      %v1467 = vpop.f32.mrb[0].mxu0
      %1468 = vdwg.mxu0
      %v1469 = vsel %vm1249, %v1414, -inf
      %1470 = vmax.xlane.f32.xlu0 %v1469
      %v1471 = vpop.xlane.xlu0 %1470
      %v1472 = vsel %vm1249, %v1464, -inf
      %1473 = vmax.xlane.f32.xlu0 %v1472
      %v1474 = vpop.xlane.xlu0 %1473
      %v1475 = vsub.f32 %v1414, %v1471
      %v1476 = vsub.f32 %v1464, %v1474
      %v1477 = vmul.f32 %v1475, 1.442695
      %v1478 = vpow.pop %v1477
      %v1479 = vmul.f32 %v1476, 1.442695
      %v1480 = vpow.pop %v1479
      %v1481 = vsel %vm1249, %v1478, 0.0
      %1482 = vadd.xlane.f32.xlu0 %v1481
      %v1483 = vpop.xlane.xlu0 %1482
      %v1484 = vsel %vm1249, %v1480, 0.0
      %1485 = vadd.xlane.f32.xlu0 %v1484
      %v1486 = vpop.xlane.xlu0 %1485
      %v1487 = vrcp.pop %v1483
      %v1488 = vrcp.pop %v1486
      %v1489 = vmul.f32 %v1478, %v1487
      %v1490 = vmul.f32 %v1480, %v1488
      %v1491 = vpack.c.bf16 %v1489, %v1489
      %v1492 = vpack.c.bf16 %v1490, %v1490
      %1493 = vrot.lane.b32.xlu0 %v1154, 64
      %v1494 = vpop.permute.xlu0 %1493
      %v1496 = vsel %vm1249, %v1491, 0
      %v1499 = vsel %vm1277, %v1494, 0
      %1501 = vmatprep.subr.bf16.mxu0 0
      %1502 = vmatpush1.bf16.msra.mxu0 %v1499
      %1503 = vmatprep.subr.bf16.mxu0 0
      %1504 = vmatpush1.bf16.msra.mxu0 0
      %1505 = vmatprep.subr.bf16.mxu0 0
      %1506 = vmatpush1.bf16.msra.mxu0 0
      %1507 = vmatprep.subr.bf16.mxu0 0
      %1508 = vmatpush1.bf16.msra.mxu0 0
      %1509 = vmatprep.subr.bf16.mxu0 0
      %1510 = vmatpush1.bf16.msra.mxu0 0
      %1511 = vmatprep.subr.bf16.mxu0 0
      %1512 = vmatpush1.bf16.msra.mxu0 0
      %1513 = vmatprep.subr.bf16.mxu0 0
      %1514 = vmatpush1.bf16.msra.mxu0 0
      %1515 = vmatprep.subr.bf16.mxu0 0
      %1516 = vmatpush1.bf16.msra.mxu0 0
      %1517 = vmatprep.subr.bf16.mxu0 0
      %1518 = vmatpush1.bf16.msra.mxu0 0
      %1519 = vmatprep.subr.bf16.mxu0 0
      %1520 = vmatpush1.bf16.msra.mxu0 0
      %1521 = vmatprep.subr.bf16.mxu0 0
      %1522 = vmatpush1.bf16.msra.mxu0 0
      %1523 = vmatprep.subr.bf16.mxu0 0
      %1524 = vmatpush1.bf16.msra.mxu0 0
      %1525 = vmatprep.subr.bf16.mxu0 0
      %1526 = vmatpush1.bf16.msra.mxu0 0
      %1527 = vmatprep.subr.bf16.mxu0 0
      %1528 = vmatpush1.bf16.msra.mxu0 0
      %1529 = vmatprep.subr.bf16.mxu0 0
      %1530 = vmatpush1.bf16.msra.mxu0 0
      %1531 = vmatprep.subr.bf16.mxu0 0
      %1532 = vmatpush1.bf16.msra.mxu0 0
      %1533 = vmatprep.mubr.bf16.mxu0 0
      %1534 = vmatmul.mubr.bf16.gmra.mrb[0].mxu0 %v1496
      %v1535 = vpop.f32.mrb[0].mxu0
      %v1536 = vadd.f32 0.0, %v1535
      %v1537 = vpop.f32.mrb[0].mxu0
      %v1538 = vpop.f32.mrb[0].mxu0
      %v1539 = vpop.f32.mrb[0].mxu0
      %1540 = vdwg.mxu0
      %1541 = vrot.lane.b32.xlu0 %v1155, 64
      %v1542 = vpop.permute.xlu0 %1541
      %v1544 = vsel %vm1249, %v1492, 0
      %v1547 = vsel %vm1277, %v1542, 0
      %1549 = vmatprep.subr.bf16.mxu0 0
      %1550 = vmatpush1.bf16.msra.mxu0 %v1547
      %1551 = vmatprep.subr.bf16.mxu0 0
      %1552 = vmatpush1.bf16.msra.mxu0 0
      %1553 = vmatprep.subr.bf16.mxu0 0
      %1554 = vmatpush1.bf16.msra.mxu0 0
      %1555 = vmatprep.subr.bf16.mxu0 0
      %1556 = vmatpush1.bf16.msra.mxu0 0
      %1557 = vmatprep.subr.bf16.mxu0 0
      %1558 = vmatpush1.bf16.msra.mxu0 0
      %1559 = vmatprep.subr.bf16.mxu0 0
      %1560 = vmatpush1.bf16.msra.mxu0 0
      %1561 = vmatprep.subr.bf16.mxu0 0
      %1562 = vmatpush1.bf16.msra.mxu0 0
      %1563 = vmatprep.subr.bf16.mxu0 0
      %1564 = vmatpush1.bf16.msra.mxu0 0
      %1565 = vmatprep.subr.bf16.mxu0 0
      %1566 = vmatpush1.bf16.msra.mxu0 0
      %1567 = vmatprep.subr.bf16.mxu0 0
      %1568 = vmatpush1.bf16.msra.mxu0 0
      %1569 = vmatprep.subr.bf16.mxu0 0
      %1570 = vmatpush1.bf16.msra.mxu0 0
      %1571 = vmatprep.subr.bf16.mxu0 0
      %1572 = vmatpush1.bf16.msra.mxu0 0
      %1573 = vmatprep.subr.bf16.mxu0 0
      %1574 = vmatpush1.bf16.msra.mxu0 0
      %1575 = vmatprep.subr.bf16.mxu0 0
      %1576 = vmatpush1.bf16.msra.mxu0 0
      %1577 = vmatprep.subr.bf16.mxu0 0
      %1578 = vmatpush1.bf16.msra.mxu0 0
      %1579 = vmatprep.subr.bf16.mxu0 0
      %1580 = vmatpush1.bf16.msra.mxu0 0
      %1581 = vmatprep.mubr.bf16.mxu0 0
      %1582 = vmatmul.mubr.bf16.gmra.mrb[0].mxu0 %v1544
      %v1583 = vpop.f32.mrb[0].mxu0
      %v1584 = vadd.f32 0.0, %v1583
      %v1585 = vpop.f32.mrb[0].mxu0
      %v1586 = vpop.f32.mrb[0].mxu0
      %v1587 = vpop.f32.mrb[0].mxu0
      %1588 = vdwg.mxu0
      %v1589 = vpack.c.bf16 %v1584, %v1536
      %1591 = vrot.lane.b32.xlu0 %v1589, 64
      %v1592 = vpop.permute.xlu0 %1591
      %vm1594 = vcmask 1048064
      %1595 = vst.msk [vmem:[#allocation2] sm:$0xff] %vm1594, %v1592
      %v1597 = vunpack.c.l.b16 %v1130
      %v1598 = vunpack.c.h.b16 %v1130
      %v1599 = vpack.c.b16 %v1597, %v1597
      %v1600 = vpack.c.b16 %v1598, %v1598
      %v1602 = vunpack.c.l.b16 %v1134
      %v1603 = vunpack.c.h.b16 %v1134
      %v1604 = vpack.c.b16 %v1602, %v1602
      %v1605 = vpack.c.b16 %v1603, %v1603
      %v1607 = vunpack.c.l.b16 %v1138
      %v1608 = vunpack.c.h.b16 %v1138
      %v1609 = vpack.c.b16 %v1607, %v1607
      %v1610 = vpack.c.b16 %v1608, %v1608
      %v1612 = vsel %vm1156, %v1599, 0
      %v1615 = vsel %vm1156, %v1604, 0
      %1617 = vmatprep.subr.bf16.mxu0 0
      %1618 = vmatpush1.bf16.xpose.msra.mxu0 %v1615
      %1619 = vmatprep.subr.bf16.mxu0 0
      %1620 = vmatpush1.bf16.xpose.msra.mxu0 0
      %1621 = vmatprep.subr.bf16.mxu0 0
      %1622 = vmatpush1.bf16.xpose.msra.mxu0 0
      %1623 = vmatprep.subr.bf16.mxu0 0
      %1624 = vmatpush1.bf16.xpose.msra.mxu0 0
      %1625 = vmatprep.subr.bf16.mxu0 0
      %1626 = vmatpush1.bf16.xpose.msra.mxu0 0
      %1627 = vmatprep.subr.bf16.mxu0 0
      %1628 = vmatpush1.bf16.xpose.msra.mxu0 0
      %1629 = vmatprep.subr.bf16.mxu0 0
      %1630 = vmatpush1.bf16.xpose.msra.mxu0 0
      %1631 = vmatprep.subr.bf16.mxu0 0
      %1632 = vmatpush1.bf16.xpose.msra.mxu0 0
      %1633 = vmatprep.subr.bf16.mxu0 0
      %1634 = vmatpush1.bf16.xpose.msra.mxu0 0
      %1635 = vmatprep.subr.bf16.mxu0 0
      %1636 = vmatpush1.bf16.xpose.msra.mxu0 0
      %1637 = vmatprep.subr.bf16.mxu0 0
      %1638 = vmatpush1.bf16.xpose.msra.mxu0 0
      %1639 = vmatprep.subr.bf16.mxu0 0
      %1640 = vmatpush1.bf16.xpose.msra.mxu0 0
      %1641 = vmatprep.subr.bf16.mxu0 0
      %1642 = vmatpush1.bf16.xpose.msra.mxu0 0
      %1643 = vmatprep.subr.bf16.mxu0 0
      %1644 = vmatpush1.bf16.xpose.msra.mxu0 0
      %1645 = vmatprep.subr.bf16.mxu0 0
      %1646 = vmatpush1.bf16.xpose.msra.mxu0 0
      %1647 = vmatprep.subr.bf16.mxu0 0
      %1648 = vmatpush1.bf16.xpose.msra.mxu0 0
      %1649 = vmatprep.mubr.bf16.mxu0 0
      %1650 = vmatmul.mubr.bf16.gmra.mrb[0].mxu0 %v1612
      %v1651 = vpop.f32.mrb[0].mxu0
      %v1652 = vadd.f32 0.0, %v1651
      %v1653 = vpop.f32.mrb[0].mxu0
      %v1654 = vpop.f32.mrb[0].mxu0
      %v1655 = vpop.f32.mrb[0].mxu0
      %1656 = vdwg.mxu0
      %v1658 = vsel %vm1156, %v1600, 0
      %v1661 = vsel %vm1156, %v1605, 0
      %1663 = vmatprep.subr.bf16.mxu0 0
      %1664 = vmatpush1.bf16.xpose.msra.mxu0 %v1661
      %1665 = vmatprep.subr.bf16.mxu0 0
      %1666 = vmatpush1.bf16.xpose.msra.mxu0 0
      %1667 = vmatprep.subr.bf16.mxu0 0
      %1668 = vmatpush1.bf16.xpose.msra.mxu0 0
      %1669 = vmatprep.subr.bf16.mxu0 0
      %1670 = vmatpush1.bf16.xpose.msra.mxu0 0
      %1671 = vmatprep.subr.bf16.mxu0 0
      %1672 = vmatpush1.bf16.xpose.msra.mxu0 0
      %1673 = vmatprep.subr.bf16.mxu0 0
      %1674 = vmatpush1.bf16.xpose.msra.mxu0 0
      %1675 = vmatprep.subr.bf16.mxu0 0
      %1676 = vmatpush1.bf16.xpose.msra.mxu0 0
      %1677 = vmatprep.subr.bf16.mxu0 0
      %1678 = vmatpush1.bf16.xpose.msra.mxu0 0
      %1679 = vmatprep.subr.bf16.mxu0 0
      %1680 = vmatpush1.bf16.xpose.msra.mxu0 0
      %1681 = vmatprep.subr.bf16.mxu0 0
      %1682 = vmatpush1.bf16.xpose.msra.mxu0 0
      %1683 = vmatprep.subr.bf16.mxu0 0
      %1684 = vmatpush1.bf16.xpose.msra.mxu0 0
      %1685 = vmatprep.subr.bf16.mxu0 0
      %1686 = vmatpush1.bf16.xpose.msra.mxu0 0
      %1687 = vmatprep.subr.bf16.mxu0 0
      %1688 = vmatpush1.bf16.xpose.msra.mxu0 0
      %1689 = vmatprep.subr.bf16.mxu0 0
      %1690 = vmatpush1.bf16.xpose.msra.mxu0 0
      %1691 = vmatprep.subr.bf16.mxu0 0
      %1692 = vmatpush1.bf16.xpose.msra.mxu0 0
      %1693 = vmatprep.subr.bf16.mxu0 0
      %1694 = vmatpush1.bf16.xpose.msra.mxu0 0
      %1695 = vmatprep.mubr.bf16.mxu0 0
      %1696 = vmatmul.mubr.bf16.gmra.mrb[0].mxu0 %v1658
      %v1697 = vpop.f32.mrb[0].mxu0
      %v1698 = vadd.f32 0.0, %v1697
      %v1699 = vpop.f32.mrb[0].mxu0
      %v1700 = vpop.f32.mrb[0].mxu0
      %v1701 = vpop.f32.mrb[0].mxu0
      %1702 = vdwg.mxu0
      %v1703 = vsel %vm1249, %v1652, -inf
      %1704 = vmax.xlane.f32.xlu0 %v1703
      %v1705 = vpop.xlane.xlu0 %1704
      %v1706 = vsel %vm1249, %v1698, -inf
      %1707 = vmax.xlane.f32.xlu0 %v1706
      %v1708 = vpop.xlane.xlu0 %1707
      %v1709 = vsub.f32 %v1652, %v1705
      %v1710 = vsub.f32 %v1698, %v1708
      %v1711 = vmul.f32 %v1709, 1.442695
      %v1712 = vpow.pop %v1711
      %v1713 = vmul.f32 %v1710, 1.442695
      %v1714 = vpow.pop %v1713
      %v1715 = vsel %vm1249, %v1712, 0.0
      %1716 = vadd.xlane.f32.xlu0 %v1715
      %v1717 = vpop.xlane.xlu0 %1716
      %v1718 = vsel %vm1249, %v1714, 0.0
      %1719 = vadd.xlane.f32.xlu0 %v1718
      %v1720 = vpop.xlane.xlu0 %1719
      %v1721 = vrcp.pop %v1717
      %v1722 = vrcp.pop %v1720
      %v1723 = vmul.f32 %v1712, %v1721
      %v1724 = vmul.f32 %v1714, %v1722
      %v1725 = vpack.c.bf16 %v1723, %v1723
      %v1726 = vpack.c.bf16 %v1724, %v1724
      %v1728 = vsel %vm1249, %v1725, 0
      %v1731 = vsel %vm1277, %v1609, 0
      %1733 = vmatprep.subr.bf16.mxu0 0
      %1734 = vmatpush1.bf16.msra.mxu0 %v1731
      %1735 = vmatprep.subr.bf16.mxu0 0
      %1736 = vmatpush1.bf16.msra.mxu0 0
      %1737 = vmatprep.subr.bf16.mxu0 0
      %1738 = vmatpush1.bf16.msra.mxu0 0
      %1739 = vmatprep.subr.bf16.mxu0 0
      %1740 = vmatpush1.bf16.msra.mxu0 0
      %1741 = vmatprep.subr.bf16.mxu0 0
      %1742 = vmatpush1.bf16.msra.mxu0 0
      %1743 = vmatprep.subr.bf16.mxu0 0
      %1744 = vmatpush1.bf16.msra.mxu0 0
      %1745 = vmatprep.subr.bf16.mxu0 0
      %1746 = vmatpush1.bf16.msra.mxu0 0
      %1747 = vmatprep.subr.bf16.mxu0 0
      %1748 = vmatpush1.bf16.msra.mxu0 0
      %1749 = vmatprep.subr.bf16.mxu0 0
      %1750 = vmatpush1.bf16.msra.mxu0 0
      %1751 = vmatprep.subr.bf16.mxu0 0
      %1752 = vmatpush1.bf16.msra.mxu0 0
      %1753 = vmatprep.subr.bf16.mxu0 0
      %1754 = vmatpush1.bf16.msra.mxu0 0
      %1755 = vmatprep.subr.bf16.mxu0 0
      %1756 = vmatpush1.bf16.msra.mxu0 0
      %1757 = vmatprep.subr.bf16.mxu0 0
      %1758 = vmatpush1.bf16.msra.mxu0 0
      %1759 = vmatprep.subr.bf16.mxu0 0
      %1760 = vmatpush1.bf16.msra.mxu0 0
      %1761 = vmatprep.subr.bf16.mxu0 0
      %1762 = vmatpush1.bf16.msra.mxu0 0
      %1763 = vmatprep.subr.bf16.mxu0 0
      %1764 = vmatpush1.bf16.msra.mxu0 0
      %1765 = vmatprep.mubr.bf16.mxu0 0
      %1766 = vmatmul.mubr.bf16.gmra.mrb[0].mxu0 %v1728
      %v1767 = vpop.f32.mrb[0].mxu0
      %v1768 = vadd.f32 0.0, %v1767
      %v1769 = vpop.f32.mrb[0].mxu0
      %v1770 = vpop.f32.mrb[0].mxu0
      %v1771 = vpop.f32.mrb[0].mxu0
      %1772 = vdwg.mxu0
      %v1774 = vsel %vm1249, %v1726, 0
      %v1777 = vsel %vm1277, %v1610, 0
      %1779 = vmatprep.subr.bf16.mxu0 0
      %1780 = vmatpush1.bf16.msra.mxu0 %v1777
      %1781 = vmatprep.subr.bf16.mxu0 0
      %1782 = vmatpush1.bf16.msra.mxu0 0
      %1783 = vmatprep.subr.bf16.mxu0 0
      %1784 = vmatpush1.bf16.msra.mxu0 0
      %1785 = vmatprep.subr.bf16.mxu0 0
      %1786 = vmatpush1.bf16.msra.mxu0 0
      %1787 = vmatprep.subr.bf16.mxu0 0
      %1788 = vmatpush1.bf16.msra.mxu0 0
      %1789 = vmatprep.subr.bf16.mxu0 0
      %1790 = vmatpush1.bf16.msra.mxu0 0
      %1791 = vmatprep.subr.bf16.mxu0 0
      %1792 = vmatpush1.bf16.msra.mxu0 0
      %1793 = vmatprep.subr.bf16.mxu0 0
      %1794 = vmatpush1.bf16.msra.mxu0 0
      %1795 = vmatprep.subr.bf16.mxu0 0
      %1796 = vmatpush1.bf16.msra.mxu0 0
      %1797 = vmatprep.subr.bf16.mxu0 0
      %1798 = vmatpush1.bf16.msra.mxu0 0
      %1799 = vmatprep.subr.bf16.mxu0 0
      %1800 = vmatpush1.bf16.msra.mxu0 0
      %1801 = vmatprep.subr.bf16.mxu0 0
      %1802 = vmatpush1.bf16.msra.mxu0 0
      %1803 = vmatprep.subr.bf16.mxu0 0
      %1804 = vmatpush1.bf16.msra.mxu0 0
      %1805 = vmatprep.subr.bf16.mxu0 0
      %1806 = vmatpush1.bf16.msra.mxu0 0
      %1807 = vmatprep.subr.bf16.mxu0 0
      %1808 = vmatpush1.bf16.msra.mxu0 0
      %1809 = vmatprep.subr.bf16.mxu0 0
      %1810 = vmatpush1.bf16.msra.mxu0 0
      %1811 = vmatprep.mubr.bf16.mxu0 0
      %1812 = vmatmul.mubr.bf16.gmra.mrb[0].mxu0 %v1774
      %v1813 = vpop.f32.mrb[0].mxu0
      %v1814 = vadd.f32 0.0, %v1813
      %v1815 = vpop.f32.mrb[0].mxu0
      %v1816 = vpop.f32.mrb[0].mxu0
      %v1817 = vpop.f32.mrb[0].mxu0
      %1818 = vdwg.mxu0
      %v1819 = vpack.c.bf16 %v1814, %v1768
      %1820 = vst.msk [vmem:[#allocation2 + $0x8] sm:$0xff] %vm1156, %v1819
      %1821 = vrot.lane.b32.xlu0 %v1599, 64
      %v1822 = vpop.permute.xlu0 %1821
      %1823 = vrot.lane.b32.xlu0 %v1604, 64
      %v1824 = vpop.permute.xlu0 %1823
      %v1826 = vsel %vm1156, %v1822, 0
      %v1829 = vsel %vm1156, %v1824, 0
      %1831 = vmatprep.subr.bf16.mxu0 0
      %1832 = vmatpush1.bf16.xpose.msra.mxu0 %v1829
      %1833 = vmatprep.subr.bf16.mxu0 0
      %1834 = vmatpush1.bf16.xpose.msra.mxu0 0
      %1835 = vmatprep.subr.bf16.mxu0 0
      %1836 = vmatpush1.bf16.xpose.msra.mxu0 0
      %1837 = vmatprep.subr.bf16.mxu0 0
      %1838 = vmatpush1.bf16.xpose.msra.mxu0 0
      %1839 = vmatprep.subr.bf16.mxu0 0
      %1840 = vmatpush1.bf16.xpose.msra.mxu0 0
      %1841 = vmatprep.subr.bf16.mxu0 0
      %1842 = vmatpush1.bf16.xpose.msra.mxu0 0
      %1843 = vmatprep.subr.bf16.mxu0 0
      %1844 = vmatpush1.bf16.xpose.msra.mxu0 0
      %1845 = vmatprep.subr.bf16.mxu0 0
      %1846 = vmatpush1.bf16.xpose.msra.mxu0 0
      %1847 = vmatprep.subr.bf16.mxu0 0
      %1848 = vmatpush1.bf16.xpose.msra.mxu0 0
      %1849 = vmatprep.subr.bf16.mxu0 0
      %1850 = vmatpush1.bf16.xpose.msra.mxu0 0
      %1851 = vmatprep.subr.bf16.mxu0 0
      %1852 = vmatpush1.bf16.xpose.msra.mxu0 0
      %1853 = vmatprep.subr.bf16.mxu0 0
      %1854 = vmatpush1.bf16.xpose.msra.mxu0 0
      %1855 = vmatprep.subr.bf16.mxu0 0
      %1856 = vmatpush1.bf16.xpose.msra.mxu0 0
      %1857 = vmatprep.subr.bf16.mxu0 0
      %1858 = vmatpush1.bf16.xpose.msra.mxu0 0
      %1859 = vmatprep.subr.bf16.mxu0 0
      %1860 = vmatpush1.bf16.xpose.msra.mxu0 0
      %1861 = vmatprep.subr.bf16.mxu0 0
      %1862 = vmatpush1.bf16.xpose.msra.mxu0 0
      %1863 = vmatprep.mubr.bf16.mxu0 0
      %1864 = vmatmul.mubr.bf16.gmra.mrb[0].mxu0 %v1826
      %v1865 = vpop.f32.mrb[0].mxu0
      %v1866 = vadd.f32 0.0, %v1865
      %v1867 = vpop.f32.mrb[0].mxu0
      %v1868 = vpop.f32.mrb[0].mxu0
      %v1869 = vpop.f32.mrb[0].mxu0
      %1870 = vdwg.mxu0
      %1871 = vrot.lane.b32.xlu0 %v1600, 64
      %v1872 = vpop.permute.xlu0 %1871
      %1873 = vrot.lane.b32.xlu0 %v1605, 64
      %v1874 = vpop.permute.xlu0 %1873
      %v1876 = vsel %vm1156, %v1872, 0
      %v1879 = vsel %vm1156, %v1874, 0
      %1881 = vmatprep.subr.bf16.mxu0 0
      %1882 = vmatpush1.bf16.xpose.msra.mxu0 %v1879
      %1883 = vmatprep.subr.bf16.mxu0 0
      %1884 = vmatpush1.bf16.xpose.msra.mxu0 0
      %1885 = vmatprep.subr.bf16.mxu0 0
      %1886 = vmatpush1.bf16.xpose.msra.mxu0 0
      %1887 = vmatprep.subr.bf16.mxu0 0
      %1888 = vmatpush1.bf16.xpose.msra.mxu0 0
      %1889 = vmatprep.subr.bf16.mxu0 0
      %1890 = vmatpush1.bf16.xpose.msra.mxu0 0
      %1891 = vmatprep.subr.bf16.mxu0 0
      %1892 = vmatpush1.bf16.xpose.msra.mxu0 0
      %1893 = vmatprep.subr.bf16.mxu0 0
      %1894 = vmatpush1.bf16.xpose.msra.mxu0 0
      %1895 = vmatprep.subr.bf16.mxu0 0
      %1896 = vmatpush1.bf16.xpose.msra.mxu0 0
      %1897 = vmatprep.subr.bf16.mxu0 0
      %1898 = vmatpush1.bf16.xpose.msra.mxu0 0
      %1899 = vmatprep.subr.bf16.mxu0 0
      %1900 = vmatpush1.bf16.xpose.msra.mxu0 0
      %1901 = vmatprep.subr.bf16.mxu0 0
      %1902 = vmatpush1.bf16.xpose.msra.mxu0 0
      %1903 = vmatprep.subr.bf16.mxu0 0
      %1904 = vmatpush1.bf16.xpose.msra.mxu0 0
      %1905 = vmatprep.subr.bf16.mxu0 0
      %1906 = vmatpush1.bf16.xpose.msra.mxu0 0
      %1907 = vmatprep.subr.bf16.mxu0 0
      %1908 = vmatpush1.bf16.xpose.msra.mxu0 0
      %1909 = vmatprep.subr.bf16.mxu0 0
      %1910 = vmatpush1.bf16.xpose.msra.mxu0 0
      %1911 = vmatprep.subr.bf16.mxu0 0
      %1912 = vmatpush1.bf16.xpose.msra.mxu0 0
      %1913 = vmatprep.mubr.bf16.mxu0 0
      %1914 = vmatmul.mubr.bf16.gmra.mrb[0].mxu0 %v1876
      %v1915 = vpop.f32.mrb[0].mxu0
      %v1916 = vadd.f32 0.0, %v1915
      %v1917 = vpop.f32.mrb[0].mxu0
      %v1918 = vpop.f32.mrb[0].mxu0
      %v1919 = vpop.f32.mrb[0].mxu0
      %1920 = vdwg.mxu0
      %v1921 = vsel %vm1249, %v1866, -inf
      %1922 = vmax.xlane.f32.xlu0 %v1921
      %v1923 = vpop.xlane.xlu0 %1922
      %v1924 = vsel %vm1249, %v1916, -inf
      %1925 = vmax.xlane.f32.xlu0 %v1924
      %v1926 = vpop.xlane.xlu0 %1925
      %v1927 = vsub.f32 %v1866, %v1923
      %v1928 = vsub.f32 %v1916, %v1926
      %v1929 = vmul.f32 %v1927, 1.442695
      %v1930 = vpow.pop %v1929
      %v1931 = vmul.f32 %v1928, 1.442695
      %v1932 = vpow.pop %v1931
      %v1933 = vsel %vm1249, %v1930, 0.0
      %1934 = vadd.xlane.f32.xlu0 %v1933
      %v1935 = vpop.xlane.xlu0 %1934
      %v1936 = vsel %vm1249, %v1932, 0.0
      %1937 = vadd.xlane.f32.xlu0 %v1936
      %v1938 = vpop.xlane.xlu0 %1937
      %v1939 = vrcp.pop %v1935
      %v1940 = vrcp.pop %v1938
      %v1941 = vmul.f32 %v1930, %v1939
      %v1942 = vmul.f32 %v1932, %v1940
      %v1943 = vpack.c.bf16 %v1941, %v1941
      %v1944 = vpack.c.bf16 %v1942, %v1942
      %1945 = vrot.lane.b32.xlu0 %v1609, 64
      %v1946 = vpop.permute.xlu0 %1945
      %v1948 = vsel %vm1249, %v1943, 0
      %v1951 = vsel %vm1277, %v1946, 0
      %1953 = vmatprep.subr.bf16.mxu0 0
      %1954 = vmatpush1.bf16.msra.mxu0 %v1951
      %1955 = vmatprep.subr.bf16.mxu0 0
      %1956 = vmatpush1.bf16.msra.mxu0 0
      %1957 = vmatprep.subr.bf16.mxu0 0
      %1958 = vmatpush1.bf16.msra.mxu0 0
      %1959 = vmatprep.subr.bf16.mxu0 0
      %1960 = vmatpush1.bf16.msra.mxu0 0
      %1961 = vmatprep.subr.bf16.mxu0 0
      %1962 = vmatpush1.bf16.msra.mxu0 0
      %1963 = vmatprep.subr.bf16.mxu0 0
      %1964 = vmatpush1.bf16.msra.mxu0 0
      %1965 = vmatprep.subr.bf16.mxu0 0
      %1966 = vmatpush1.bf16.msra.mxu0 0
      %1967 = vmatprep.subr.bf16.mxu0 0
      %1968 = vmatpush1.bf16.msra.mxu0 0
      %1969 = vmatprep.subr.bf16.mxu0 0
      %1970 = vmatpush1.bf16.msra.mxu0 0
      %1971 = vmatprep.subr.bf16.mxu0 0
      %1972 = vmatpush1.bf16.msra.mxu0 0
      %1973 = vmatprep.subr.bf16.mxu0 0
      %1974 = vmatpush1.bf16.msra.mxu0 0
      %1975 = vmatprep.subr.bf16.mxu0 0
      %1976 = vmatpush1.bf16.msra.mxu0 0
      %1977 = vmatprep.subr.bf16.mxu0 0
      %1978 = vmatpush1.bf16.msra.mxu0 0
      %1979 = vmatprep.subr.bf16.mxu0 0
      %1980 = vmatpush1.bf16.msra.mxu0 0
      %1981 = vmatprep.subr.bf16.mxu0 0
      %1982 = vmatpush1.bf16.msra.mxu0 0
      %1983 = vmatprep.subr.bf16.mxu0 0
      %1984 = vmatpush1.bf16.msra.mxu0 0
      %1985 = vmatprep.mubr.bf16.mxu0 0
      %1986 = vmatmul.mubr.bf16.gmra.mrb[0].mxu0 %v1948
      %v1987 = vpop.f32.mrb[0].mxu0
      %v1988 = vadd.f32 0.0, %v1987
      %v1989 = vpop.f32.mrb[0].mxu0
      %v1990 = vpop.f32.mrb[0].mxu0
      %v1991 = vpop.f32.mrb[0].mxu0
      %1992 = vdwg.mxu0
      %1993 = vrot.lane.b32.xlu0 %v1610, 64
      %v1994 = vpop.permute.xlu0 %1993
      %v1996 = vsel %vm1249, %v1944, 0
      %v1999 = vsel %vm1277, %v1994, 0
      %2001 = vmatprep.subr.bf16.mxu0 0
      %2002 = vmatpush1.bf16.msra.mxu0 %v1999
      %2003 = vmatprep.subr.bf16.mxu0 0
      %2004 = vmatpush1.bf16.msra.mxu0 0
      %2005 = vmatprep.subr.bf16.mxu0 0
      %2006 = vmatpush1.bf16.msra.mxu0 0
      %2007 = vmatprep.subr.bf16.mxu0 0
      %2008 = vmatpush1.bf16.msra.mxu0 0
      %2009 = vmatprep.subr.bf16.mxu0 0
      %2010 = vmatpush1.bf16.msra.mxu0 0
      %2011 = vmatprep.subr.bf16.mxu0 0
      %2012 = vmatpush1.bf16.msra.mxu0 0
      %2013 = vmatprep.subr.bf16.mxu0 0
      %2014 = vmatpush1.bf16.msra.mxu0 0
      %2015 = vmatprep.subr.bf16.mxu0 0
      %2016 = vmatpush1.bf16.msra.mxu0 0
      %2017 = vmatprep.subr.bf16.mxu0 0
      %2018 = vmatpush1.bf16.msra.mxu0 0
      %2019 = vmatprep.subr.bf16.mxu0 0
      %2020 = vmatpush1.bf16.msra.mxu0 0
      %2021 = vmatprep.subr.bf16.mxu0 0
      %2022 = vmatpush1.bf16.msra.mxu0 0
      %2023 = vmatprep.subr.bf16.mxu0 0
      %2024 = vmatpush1.bf16.msra.mxu0 0
      %2025 = vmatprep.subr.bf16.mxu0 0
      %2026 = vmatpush1.bf16.msra.mxu0 0
      %2027 = vmatprep.subr.bf16.mxu0 0
      %2028 = vmatpush1.bf16.msra.mxu0 0
      %2029 = vmatprep.subr.bf16.mxu0 0
      %2030 = vmatpush1.bf16.msra.mxu0 0
      %2031 = vmatprep.subr.bf16.mxu0 0
      %2032 = vmatpush1.bf16.msra.mxu0 0
      %2033 = vmatprep.mubr.bf16.mxu0 0
      %2034 = vmatmul.mubr.bf16.gmra.mrb[0].mxu0 %v1996
      %v2035 = vpop.f32.mrb[0].mxu0
      %v2036 = vadd.f32 0.0, %v2035
      %v2037 = vpop.f32.mrb[0].mxu0
      %v2038 = vpop.f32.mrb[0].mxu0
      %v2039 = vpop.f32.mrb[0].mxu0
      %2040 = vdwg.mxu0
      %v2041 = vpack.c.bf16 %v2036, %v1988
      %2043 = vrot.lane.b32.xlu0 %v2041, 64
      %v2044 = vpop.permute.xlu0 %2043
      %2046 = vst.msk [vmem:[#allocation2 + $0x8] sm:$0xff] %vm1594, %v2044
      %v2048 = vunpack.c.l.b16 %v1131
      %v2049 = vunpack.c.h.b16 %v1131
      %v2050 = vpack.c.b16 %v2048, %v2048
      %v2051 = vpack.c.b16 %v2049, %v2049
      %v2053 = vunpack.c.l.b16 %v1135
      %v2054 = vunpack.c.h.b16 %v1135
      %v2055 = vpack.c.b16 %v2053, %v2053
      %v2056 = vpack.c.b16 %v2054, %v2054
      %v2058 = vunpack.c.l.b16 %v1139
      %v2059 = vunpack.c.h.b16 %v1139
      %v2060 = vpack.c.b16 %v2058, %v2058
      %v2061 = vpack.c.b16 %v2059, %v2059
      %v2063 = vsel %vm1156, %v2050, 0
      %v2066 = vsel %vm1156, %v2055, 0
      %2068 = vmatprep.subr.bf16.mxu0 0
      %2069 = vmatpush1.bf16.xpose.msra.mxu0 %v2066
      %2070 = vmatprep.subr.bf16.mxu0 0
      %2071 = vmatpush1.bf16.xpose.msra.mxu0 0
      %2072 = vmatprep.subr.bf16.mxu0 0
      %2073 = vmatpush1.bf16.xpose.msra.mxu0 0
      %2074 = vmatprep.subr.bf16.mxu0 0
      %2075 = vmatpush1.bf16.xpose.msra.mxu0 0
      %2076 = vmatprep.subr.bf16.mxu0 0
      %2077 = vmatpush1.bf16.xpose.msra.mxu0 0
      %2078 = vmatprep.subr.bf16.mxu0 0
      %2079 = vmatpush1.bf16.xpose.msra.mxu0 0
      %2080 = vmatprep.subr.bf16.mxu0 0
      %2081 = vmatpush1.bf16.xpose.msra.mxu0 0
      %2082 = vmatprep.subr.bf16.mxu0 0
      %2083 = vmatpush1.bf16.xpose.msra.mxu0 0
      %2084 = vmatprep.subr.bf16.mxu0 0
      %2085 = vmatpush1.bf16.xpose.msra.mxu0 0
      %2086 = vmatprep.subr.bf16.mxu0 0
      %2087 = vmatpush1.bf16.xpose.msra.mxu0 0
      %2088 = vmatprep.subr.bf16.mxu0 0
      %2089 = vmatpush1.bf16.xpose.msra.mxu0 0
      %2090 = vmatprep.subr.bf16.mxu0 0
      %2091 = vmatpush1.bf16.xpose.msra.mxu0 0
      %2092 = vmatprep.subr.bf16.mxu0 0
      %2093 = vmatpush1.bf16.xpose.msra.mxu0 0
      %2094 = vmatprep.subr.bf16.mxu0 0
      %2095 = vmatpush1.bf16.xpose.msra.mxu0 0
      %2096 = vmatprep.subr.bf16.mxu0 0
      %2097 = vmatpush1.bf16.xpose.msra.mxu0 0
      %2098 = vmatprep.subr.bf16.mxu0 0
      %2099 = vmatpush1.bf16.xpose.msra.mxu0 0
      %2100 = vmatprep.mubr.bf16.mxu0 0
      %2101 = vmatmul.mubr.bf16.gmra.mrb[0].mxu0 %v2063
      %v2102 = vpop.f32.mrb[0].mxu0
      %v2103 = vadd.f32 0.0, %v2102
      %v2104 = vpop.f32.mrb[0].mxu0
      %v2105 = vpop.f32.mrb[0].mxu0
      %v2106 = vpop.f32.mrb[0].mxu0
      %2107 = vdwg.mxu0
      %v2109 = vsel %vm1156, %v2051, 0
      %v2112 = vsel %vm1156, %v2056, 0
      %2114 = vmatprep.subr.bf16.mxu0 0
      %2115 = vmatpush1.bf16.xpose.msra.mxu0 %v2112
      %2116 = vmatprep.subr.bf16.mxu0 0
      %2117 = vmatpush1.bf16.xpose.msra.mxu0 0
      %2118 = vmatprep.subr.bf16.mxu0 0
      %2119 = vmatpush1.bf16.xpose.msra.mxu0 0
      %2120 = vmatprep.subr.bf16.mxu0 0
      %2121 = vmatpush1.bf16.xpose.msra.mxu0 0
      %2122 = vmatprep.subr.bf16.mxu0 0
      %2123 = vmatpush1.bf16.xpose.msra.mxu0 0
      %2124 = vmatprep.subr.bf16.mxu0 0
      %2125 = vmatpush1.bf16.xpose.msra.mxu0 0
      %2126 = vmatprep.subr.bf16.mxu0 0
      %2127 = vmatpush1.bf16.xpose.msra.mxu0 0
      %2128 = vmatprep.subr.bf16.mxu0 0
      %2129 = vmatpush1.bf16.xpose.msra.mxu0 0
      %2130 = vmatprep.subr.bf16.mxu0 0
      %2131 = vmatpush1.bf16.xpose.msra.mxu0 0
      %2132 = vmatprep.subr.bf16.mxu0 0
      %2133 = vmatpush1.bf16.xpose.msra.mxu0 0
      %2134 = vmatprep.subr.bf16.mxu0 0
      %2135 = vmatpush1.bf16.xpose.msra.mxu0 0
      %2136 = vmatprep.subr.bf16.mxu0 0
      %2137 = vmatpush1.bf16.xpose.msra.mxu0 0
      %2138 = vmatprep.subr.bf16.mxu0 0
      %2139 = vmatpush1.bf16.xpose.msra.mxu0 0
      %2140 = vmatprep.subr.bf16.mxu0 0
      %2141 = vmatpush1.bf16.xpose.msra.mxu0 0
      %2142 = vmatprep.subr.bf16.mxu0 0
      %2143 = vmatpush1.bf16.xpose.msra.mxu0 0
      %2144 = vmatprep.subr.bf16.mxu0 0
      %2145 = vmatpush1.bf16.xpose.msra.mxu0 0
      %2146 = vmatprep.mubr.bf16.mxu0 0
      %2147 = vmatmul.mubr.bf16.gmra.mrb[0].mxu0 %v2109
      %v2148 = vpop.f32.mrb[0].mxu0
      %v2149 = vadd.f32 0.0, %v2148
      %v2150 = vpop.f32.mrb[0].mxu0
      %v2151 = vpop.f32.mrb[0].mxu0
      %v2152 = vpop.f32.mrb[0].mxu0
      %2153 = vdwg.mxu0
      %v2154 = vsel %vm1249, %v2103, -inf
      %2155 = vmax.xlane.f32.xlu0 %v2154
      %v2156 = vpop.xlane.xlu0 %2155
      %v2157 = vsel %vm1249, %v2149, -inf
      %2158 = vmax.xlane.f32.xlu0 %v2157
      %v2159 = vpop.xlane.xlu0 %2158
      %v2160 = vsub.f32 %v2103, %v2156
      %v2161 = vsub.f32 %v2149, %v2159
      %v2162 = vmul.f32 %v2160, 1.442695
      %v2163 = vpow.pop %v2162
      %v2164 = vmul.f32 %v2161, 1.442695
      %v2165 = vpow.pop %v2164
      %v2166 = vsel %vm1249, %v2163, 0.0
      %2167 = vadd.xlane.f32.xlu0 %v2166
      %v2168 = vpop.xlane.xlu0 %2167
      %v2169 = vsel %vm1249, %v2165, 0.0
      %2170 = vadd.xlane.f32.xlu0 %v2169
      %v2171 = vpop.xlane.xlu0 %2170
      %v2172 = vrcp.pop %v2168
      %v2173 = vrcp.pop %v2171
      %v2174 = vmul.f32 %v2163, %v2172
      %v2175 = vmul.f32 %v2165, %v2173
      %v2176 = vpack.c.bf16 %v2174, %v2174
      %v2177 = vpack.c.bf16 %v2175, %v2175
      %v2179 = vsel %vm1249, %v2176, 0
      %v2182 = vsel %vm1277, %v2060, 0
      %2184 = vmatprep.subr.bf16.mxu0 0
      %2185 = vmatpush1.bf16.msra.mxu0 %v2182
      %2186 = vmatprep.subr.bf16.mxu0 0
      %2187 = vmatpush1.bf16.msra.mxu0 0
      %2188 = vmatprep.subr.bf16.mxu0 0
      %2189 = vmatpush1.bf16.msra.mxu0 0
      %2190 = vmatprep.subr.bf16.mxu0 0
      %2191 = vmatpush1.bf16.msra.mxu0 0
      %2192 = vmatprep.subr.bf16.mxu0 0
      %2193 = vmatpush1.bf16.msra.mxu0 0
      %2194 = vmatprep.subr.bf16.mxu0 0
      %2195 = vmatpush1.bf16.msra.mxu0 0
      %2196 = vmatprep.subr.bf16.mxu0 0
      %2197 = vmatpush1.bf16.msra.mxu0 0
      %2198 = vmatprep.subr.bf16.mxu0 0
      %2199 = vmatpush1.bf16.msra.mxu0 0
      %2200 = vmatprep.subr.bf16.mxu0 0
      %2201 = vmatpush1.bf16.msra.mxu0 0
      %2202 = vmatprep.subr.bf16.mxu0 0
      %2203 = vmatpush1.bf16.msra.mxu0 0
      %2204 = vmatprep.subr.bf16.mxu0 0
      %2205 = vmatpush1.bf16.msra.mxu0 0
      %2206 = vmatprep.subr.bf16.mxu0 0
      %2207 = vmatpush1.bf16.msra.mxu0 0
      %2208 = vmatprep.subr.bf16.mxu0 0
      %2209 = vmatpush1.bf16.msra.mxu0 0
      %2210 = vmatprep.subr.bf16.mxu0 0
      %2211 = vmatpush1.bf16.msra.mxu0 0
      %2212 = vmatprep.subr.bf16.mxu0 0
      %2213 = vmatpush1.bf16.msra.mxu0 0
      %2214 = vmatprep.subr.bf16.mxu0 0
      %2215 = vmatpush1.bf16.msra.mxu0 0
      %2216 = vmatprep.mubr.bf16.mxu0 0
      %2217 = vmatmul.mubr.bf16.gmra.mrb[0].mxu0 %v2179
      %v2218 = vpop.f32.mrb[0].mxu0
      %v2219 = vadd.f32 0.0, %v2218
      %v2220 = vpop.f32.mrb[0].mxu0
      %v2221 = vpop.f32.mrb[0].mxu0
      %v2222 = vpop.f32.mrb[0].mxu0
      %2223 = vdwg.mxu0
      %v2225 = vsel %vm1249, %v2177, 0
      %v2228 = vsel %vm1277, %v2061, 0
      %2230 = vmatprep.subr.bf16.mxu0 0
      %2231 = vmatpush1.bf16.msra.mxu0 %v2228
      %2232 = vmatprep.subr.bf16.mxu0 0
      %2233 = vmatpush1.bf16.msra.mxu0 0
      %2234 = vmatprep.subr.bf16.mxu0 0
      %2235 = vmatpush1.bf16.msra.mxu0 0
      %2236 = vmatprep.subr.bf16.mxu0 0
      %2237 = vmatpush1.bf16.msra.mxu0 0
      %2238 = vmatprep.subr.bf16.mxu0 0
      %2239 = vmatpush1.bf16.msra.mxu0 0
      %2240 = vmatprep.subr.bf16.mxu0 0
      %2241 = vmatpush1.bf16.msra.mxu0 0
      %2242 = vmatprep.subr.bf16.mxu0 0
      %2243 = vmatpush1.bf16.msra.mxu0 0
      %2244 = vmatprep.subr.bf16.mxu0 0
      %2245 = vmatpush1.bf16.msra.mxu0 0
      %2246 = vmatprep.subr.bf16.mxu0 0
      %2247 = vmatpush1.bf16.msra.mxu0 0
      %2248 = vmatprep.subr.bf16.mxu0 0
      %2249 = vmatpush1.bf16.msra.mxu0 0
      %2250 = vmatprep.subr.bf16.mxu0 0
      %2251 = vmatpush1.bf16.msra.mxu0 0
      %2252 = vmatprep.subr.bf16.mxu0 0
      %2253 = vmatpush1.bf16.msra.mxu0 0
      %2254 = vmatprep.subr.bf16.mxu0 0
      %2255 = vmatpush1.bf16.msra.mxu0 0
      %2256 = vmatprep.subr.bf16.mxu0 0
      %2257 = vmatpush1.bf16.msra.mxu0 0
      %2258 = vmatprep.subr.bf16.mxu0 0
      %2259 = vmatpush1.bf16.msra.mxu0 0
      %2260 = vmatprep.subr.bf16.mxu0 0
      %2261 = vmatpush1.bf16.msra.mxu0 0
      %2262 = vmatprep.mubr.bf16.mxu0 0
      %2263 = vmatmul.mubr.bf16.gmra.mrb[0].mxu0 %v2225
      %v2264 = vpop.f32.mrb[0].mxu0
      %v2265 = vadd.f32 0.0, %v2264
      %v2266 = vpop.f32.mrb[0].mxu0
      %v2267 = vpop.f32.mrb[0].mxu0
      %v2268 = vpop.f32.mrb[0].mxu0
      %2269 = vdwg.mxu0
      %v2270 = vpack.c.bf16 %v2265, %v2219
      %2271 = vst.msk [vmem:[#allocation2 + $0x10] sm:$0xff] %vm1156, %v2270
      %2272 = vrot.lane.b32.xlu0 %v2050, 64
      %v2273 = vpop.permute.xlu0 %2272
      %2274 = vrot.lane.b32.xlu0 %v2055, 64
      %v2275 = vpop.permute.xlu0 %2274
      %v2277 = vsel %vm1156, %v2273, 0
      %v2280 = vsel %vm1156, %v2275, 0
      %2282 = vmatprep.subr.bf16.mxu0 0
      %2283 = vmatpush1.bf16.xpose.msra.mxu0 %v2280
      %2284 = vmatprep.subr.bf16.mxu0 0
      %2285 = vmatpush1.bf16.xpose.msra.mxu0 0
      %2286 = vmatprep.subr.bf16.mxu0 0
      %2287 = vmatpush1.bf16.xpose.msra.mxu0 0
      %2288 = vmatprep.subr.bf16.mxu0 0
      %2289 = vmatpush1.bf16.xpose.msra.mxu0 0
      %2290 = vmatprep.subr.bf16.mxu0 0
      %2291 = vmatpush1.bf16.xpose.msra.mxu0 0
      %2292 = vmatprep.subr.bf16.mxu0 0
      %2293 = vmatpush1.bf16.xpose.msra.mxu0 0
      %2294 = vmatprep.subr.bf16.mxu0 0
      %2295 = vmatpush1.bf16.xpose.msra.mxu0 0
      %2296 = vmatprep.subr.bf16.mxu0 0
      %2297 = vmatpush1.bf16.xpose.msra.mxu0 0
      %2298 = vmatprep.subr.bf16.mxu0 0
      %2299 = vmatpush1.bf16.xpose.msra.mxu0 0
      %2300 = vmatprep.subr.bf16.mxu0 0
      %2301 = vmatpush1.bf16.xpose.msra.mxu0 0
      %2302 = vmatprep.subr.bf16.mxu0 0
      %2303 = vmatpush1.bf16.xpose.msra.mxu0 0
      %2304 = vmatprep.subr.bf16.mxu0 0
      %2305 = vmatpush1.bf16.xpose.msra.mxu0 0
      %2306 = vmatprep.subr.bf16.mxu0 0
      %2307 = vmatpush1.bf16.xpose.msra.mxu0 0
      %2308 = vmatprep.subr.bf16.mxu0 0
      %2309 = vmatpush1.bf16.xpose.msra.mxu0 0
      %2310 = vmatprep.subr.bf16.mxu0 0
      %2311 = vmatpush1.bf16.xpose.msra.mxu0 0
      %2312 = vmatprep.subr.bf16.mxu0 0
      %2313 = vmatpush1.bf16.xpose.msra.mxu0 0
      %2314 = vmatprep.mubr.bf16.mxu0 0
      %2315 = vmatmul.mubr.bf16.gmra.mrb[0].mxu0 %v2277
      %v2316 = vpop.f32.mrb[0].mxu0
      %v2317 = vadd.f32 0.0, %v2316
      %v2318 = vpop.f32.mrb[0].mxu0
      %v2319 = vpop.f32.mrb[0].mxu0
      %v2320 = vpop.f32.mrb[0].mxu0
      %2321 = vdwg.mxu0
      %2322 = vrot.lane.b32.xlu0 %v2051, 64
      %v2323 = vpop.permute.xlu0 %2322
      %2324 = vrot.lane.b32.xlu0 %v2056, 64
      %v2325 = vpop.permute.xlu0 %2324
      %v2327 = vsel %vm1156, %v2323, 0
      %v2330 = vsel %vm1156, %v2325, 0
      %2332 = vmatprep.subr.bf16.mxu0 0
      %2333 = vmatpush1.bf16.xpose.msra.mxu0 %v2330
      %2334 = vmatprep.subr.bf16.mxu0 0
      %2335 = vmatpush1.bf16.xpose.msra.mxu0 0
      %2336 = vmatprep.subr.bf16.mxu0 0
      %2337 = vmatpush1.bf16.xpose.msra.mxu0 0
      %2338 = vmatprep.subr.bf16.mxu0 0
      %2339 = vmatpush1.bf16.xpose.msra.mxu0 0
      %2340 = vmatprep.subr.bf16.mxu0 0
      %2341 = vmatpush1.bf16.xpose.msra.mxu0 0
      %2342 = vmatprep.subr.bf16.mxu0 0
      %2343 = vmatpush1.bf16.xpose.msra.mxu0 0
      %2344 = vmatprep.subr.bf16.mxu0 0
      %2345 = vmatpush1.bf16.xpose.msra.mxu0 0
      %2346 = vmatprep.subr.bf16.mxu0 0
      %2347 = vmatpush1.bf16.xpose.msra.mxu0 0
      %2348 = vmatprep.subr.bf16.mxu0 0
      %2349 = vmatpush1.bf16.xpose.msra.mxu0 0
      %2350 = vmatprep.subr.bf16.mxu0 0
      %2351 = vmatpush1.bf16.xpose.msra.mxu0 0
      %2352 = vmatprep.subr.bf16.mxu0 0
      %2353 = vmatpush1.bf16.xpose.msra.mxu0 0
      %2354 = vmatprep.subr.bf16.mxu0 0
      %2355 = vmatpush1.bf16.xpose.msra.mxu0 0
      %2356 = vmatprep.subr.bf16.mxu0 0
      %2357 = vmatpush1.bf16.xpose.msra.mxu0 0
      %2358 = vmatprep.subr.bf16.mxu0 0
      %2359 = vmatpush1.bf16.xpose.msra.mxu0 0
      %2360 = vmatprep.subr.bf16.mxu0 0
      %2361 = vmatpush1.bf16.xpose.msra.mxu0 0
      %2362 = vmatprep.subr.bf16.mxu0 0
      %2363 = vmatpush1.bf16.xpose.msra.mxu0 0
      %2364 = vmatprep.mubr.bf16.mxu0 0
      %2365 = vmatmul.mubr.bf16.gmra.mrb[0].mxu0 %v2327
      %v2366 = vpop.f32.mrb[0].mxu0
      %v2367 = vadd.f32 0.0, %v2366
      %v2368 = vpop.f32.mrb[0].mxu0
      %v2369 = vpop.f32.mrb[0].mxu0
      %v2370 = vpop.f32.mrb[0].mxu0
      %2371 = vdwg.mxu0
      %v2372 = vsel %vm1249, %v2317, -inf
      %2373 = vmax.xlane.f32.xlu0 %v2372
      %v2374 = vpop.xlane.xlu0 %2373
      %v2375 = vsel %vm1249, %v2367, -inf
      %2376 = vmax.xlane.f32.xlu0 %v2375
      %v2377 = vpop.xlane.xlu0 %2376
      %v2378 = vsub.f32 %v2317, %v2374
      %v2379 = vsub.f32 %v2367, %v2377
      %v2380 = vmul.f32 %v2378, 1.442695
      %v2381 = vpow.pop %v2380
      %v2382 = vmul.f32 %v2379, 1.442695
      %v2383 = vpow.pop %v2382
      %v2384 = vsel %vm1249, %v2381, 0.0
      %2385 = vadd.xlane.f32.xlu0 %v2384
      %v2386 = vpop.xlane.xlu0 %2385
      %v2387 = vsel %vm1249, %v2383, 0.0
      %2388 = vadd.xlane.f32.xlu0 %v2387
      %v2389 = vpop.xlane.xlu0 %2388
      %v2390 = vrcp.pop %v2386
      %v2391 = vrcp.pop %v2389
      %v2392 = vmul.f32 %v2381, %v2390
      %v2393 = vmul.f32 %v2383, %v2391
      %v2394 = vpack.c.bf16 %v2392, %v2392
      %v2395 = vpack.c.bf16 %v2393, %v2393
      %2396 = vrot.lane.b32.xlu0 %v2060, 64
      %v2397 = vpop.permute.xlu0 %2396
      %v2399 = vsel %vm1249, %v2394, 0
      %v2402 = vsel %vm1277, %v2397, 0
      %2404 = vmatprep.subr.bf16.mxu0 0
      %2405 = vmatpush1.bf16.msra.mxu0 %v2402
      %2406 = vmatprep.subr.bf16.mxu0 0
      %2407 = vmatpush1.bf16.msra.mxu0 0
      %2408 = vmatprep.subr.bf16.mxu0 0
      %2409 = vmatpush1.bf16.msra.mxu0 0
      %2410 = vmatprep.subr.bf16.mxu0 0
      %2411 = vmatpush1.bf16.msra.mxu0 0
      %2412 = vmatprep.subr.bf16.mxu0 0
      %2413 = vmatpush1.bf16.msra.mxu0 0
      %2414 = vmatprep.subr.bf16.mxu0 0
      %2415 = vmatpush1.bf16.msra.mxu0 0
      %2416 = vmatprep.subr.bf16.mxu0 0
      %2417 = vmatpush1.bf16.msra.mxu0 0
      %2418 = vmatprep.subr.bf16.mxu0 0
      %2419 = vmatpush1.bf16.msra.mxu0 0
      %2420 = vmatprep.subr.bf16.mxu0 0
      %2421 = vmatpush1.bf16.msra.mxu0 0
      %2422 = vmatprep.subr.bf16.mxu0 0
      %2423 = vmatpush1.bf16.msra.mxu0 0
      %2424 = vmatprep.subr.bf16.mxu0 0
      %2425 = vmatpush1.bf16.msra.mxu0 0
      %2426 = vmatprep.subr.bf16.mxu0 0
      %2427 = vmatpush1.bf16.msra.mxu0 0
      %2428 = vmatprep.subr.bf16.mxu0 0
      %2429 = vmatpush1.bf16.msra.mxu0 0
      %2430 = vmatprep.subr.bf16.mxu0 0
      %2431 = vmatpush1.bf16.msra.mxu0 0
      %2432 = vmatprep.subr.bf16.mxu0 0
      %2433 = vmatpush1.bf16.msra.mxu0 0
      %2434 = vmatprep.subr.bf16.mxu0 0
      %2435 = vmatpush1.bf16.msra.mxu0 0
      %2436 = vmatprep.mubr.bf16.mxu0 0
      %2437 = vmatmul.mubr.bf16.gmra.mrb[0].mxu0 %v2399
      %v2438 = vpop.f32.mrb[0].mxu0
      %v2439 = vadd.f32 0.0, %v2438
      %v2440 = vpop.f32.mrb[0].mxu0
      %v2441 = vpop.f32.mrb[0].mxu0
      %v2442 = vpop.f32.mrb[0].mxu0
      %2443 = vdwg.mxu0
      %2444 = vrot.lane.b32.xlu0 %v2061, 64
      %v2445 = vpop.permute.xlu0 %2444
      %v2447 = vsel %vm1249, %v2395, 0
      %v2450 = vsel %vm1277, %v2445, 0
      %2452 = vmatprep.subr.bf16.mxu0 0
      %2453 = vmatpush1.bf16.msra.mxu0 %v2450
      %2454 = vmatprep.subr.bf16.mxu0 0
      %2455 = vmatpush1.bf16.msra.mxu0 0
      %2456 = vmatprep.subr.bf16.mxu0 0
      %2457 = vmatpush1.bf16.msra.mxu0 0
      %2458 = vmatprep.subr.bf16.mxu0 0
      %2459 = vmatpush1.bf16.msra.mxu0 0
      %2460 = vmatprep.subr.bf16.mxu0 0
      %2461 = vmatpush1.bf16.msra.mxu0 0
      %2462 = vmatprep.subr.bf16.mxu0 0
      %2463 = vmatpush1.bf16.msra.mxu0 0
      %2464 = vmatprep.subr.bf16.mxu0 0
      %2465 = vmatpush1.bf16.msra.mxu0 0
      %2466 = vmatprep.subr.bf16.mxu0 0
      %2467 = vmatpush1.bf16.msra.mxu0 0
      %2468 = vmatprep.subr.bf16.mxu0 0
      %2469 = vmatpush1.bf16.msra.mxu0 0
      %2470 = vmatprep.subr.bf16.mxu0 0
      %2471 = vmatpush1.bf16.msra.mxu0 0
      %2472 = vmatprep.subr.bf16.mxu0 0
      %2473 = vmatpush1.bf16.msra.mxu0 0
      %2474 = vmatprep.subr.bf16.mxu0 0
      %2475 = vmatpush1.bf16.msra.mxu0 0
      %2476 = vmatprep.subr.bf16.mxu0 0
      %2477 = vmatpush1.bf16.msra.mxu0 0
      %2478 = vmatprep.subr.bf16.mxu0 0
      %2479 = vmatpush1.bf16.msra.mxu0 0
      %2480 = vmatprep.subr.bf16.mxu0 0
      %2481 = vmatpush1.bf16.msra.mxu0 0
      %2482 = vmatprep.subr.bf16.mxu0 0
      %2483 = vmatpush1.bf16.msra.mxu0 0
      %2484 = vmatprep.mubr.bf16.mxu0 0
      %2485 = vmatmul.mubr.bf16.gmra.mrb[0].mxu0 %v2447
      %v2486 = vpop.f32.mrb[0].mxu0
      %v2487 = vadd.f32 0.0, %v2486
      %v2488 = vpop.f32.mrb[0].mxu0
      %v2489 = vpop.f32.mrb[0].mxu0
      %v2490 = vpop.f32.mrb[0].mxu0
      %2491 = vdwg.mxu0
      %v2492 = vpack.c.bf16 %v2487, %v2439
      %2494 = vrot.lane.b32.xlu0 %v2492, 64
      %v2495 = vpop.permute.xlu0 %2494
      %2497 = vst.msk [vmem:[#allocation2 + $0x10] sm:$0xff] %vm1594, %v2495
      %v2499 = vunpack.c.l.b16 %v1132
      %v2500 = vunpack.c.h.b16 %v1132
      %v2501 = vpack.c.b16 %v2499, %v2499
      %v2502 = vpack.c.b16 %v2500, %v2500
      %v2504 = vunpack.c.l.b16 %v1136
      %v2505 = vunpack.c.h.b16 %v1136
      %v2506 = vpack.c.b16 %v2504, %v2504
      %v2507 = vpack.c.b16 %v2505, %v2505
      %v2509 = vunpack.c.l.b16 %v1140
      %v2510 = vunpack.c.h.b16 %v1140
      %v2511 = vpack.c.b16 %v2509, %v2509
      %v2512 = vpack.c.b16 %v2510, %v2510
      %v2514 = vsel %vm1156, %v2501, 0
      %v2517 = vsel %vm1156, %v2506, 0
      %2519 = vmatprep.subr.bf16.mxu0 0
      %2520 = vmatpush1.bf16.xpose.msra.mxu0 %v2517
      %2521 = vmatprep.subr.bf16.mxu0 0
      %2522 = vmatpush1.bf16.xpose.msra.mxu0 0
      %2523 = vmatprep.subr.bf16.mxu0 0
      %2524 = vmatpush1.bf16.xpose.msra.mxu0 0
      %2525 = vmatprep.subr.bf16.mxu0 0
      %2526 = vmatpush1.bf16.xpose.msra.mxu0 0
      %2527 = vmatprep.subr.bf16.mxu0 0
      %2528 = vmatpush1.bf16.xpose.msra.mxu0 0
      %2529 = vmatprep.subr.bf16.mxu0 0
      %2530 = vmatpush1.bf16.xpose.msra.mxu0 0
      %2531 = vmatprep.subr.bf16.mxu0 0
      %2532 = vmatpush1.bf16.xpose.msra.mxu0 0
      %2533 = vmatprep.subr.bf16.mxu0 0
      %2534 = vmatpush1.bf16.xpose.msra.mxu0 0
      %2535 = vmatprep.subr.bf16.mxu0 0
      %2536 = vmatpush1.bf16.xpose.msra.mxu0 0
      %2537 = vmatprep.subr.bf16.mxu0 0
      %2538 = vmatpush1.bf16.xpose.msra.mxu0 0
      %2539 = vmatprep.subr.bf16.mxu0 0
      %2540 = vmatpush1.bf16.xpose.msra.mxu0 0
      %2541 = vmatprep.subr.bf16.mxu0 0
      %2542 = vmatpush1.bf16.xpose.msra.mxu0 0
      %2543 = vmatprep.subr.bf16.mxu0 0
      %2544 = vmatpush1.bf16.xpose.msra.mxu0 0
      %2545 = vmatprep.subr.bf16.mxu0 0
      %2546 = vmatpush1.bf16.xpose.msra.mxu0 0
      %2547 = vmatprep.subr.bf16.mxu0 0
      %2548 = vmatpush1.bf16.xpose.msra.mxu0 0
      %2549 = vmatprep.subr.bf16.mxu0 0
      %2550 = vmatpush1.bf16.xpose.msra.mxu0 0
      %2551 = vmatprep.mubr.bf16.mxu0 0
      %2552 = vmatmul.mubr.bf16.gmra.mrb[0].mxu0 %v2514
      %v2553 = vpop.f32.mrb[0].mxu0
      %v2554 = vadd.f32 0.0, %v2553
      %v2555 = vpop.f32.mrb[0].mxu0
      %v2556 = vpop.f32.mrb[0].mxu0
      %v2557 = vpop.f32.mrb[0].mxu0
      %2558 = vdwg.mxu0
      %v2560 = vsel %vm1156, %v2502, 0
      %v2563 = vsel %vm1156, %v2507, 0
      %2565 = vmatprep.subr.bf16.mxu0 0
      %2566 = vmatpush1.bf16.xpose.msra.mxu0 %v2563
      %2567 = vmatprep.subr.bf16.mxu0 0
      %2568 = vmatpush1.bf16.xpose.msra.mxu0 0
      %2569 = vmatprep.subr.bf16.mxu0 0
      %2570 = vmatpush1.bf16.xpose.msra.mxu0 0
      %2571 = vmatprep.subr.bf16.mxu0 0
      %2572 = vmatpush1.bf16.xpose.msra.mxu0 0
      %2573 = vmatprep.subr.bf16.mxu0 0
      %2574 = vmatpush1.bf16.xpose.msra.mxu0 0
      %2575 = vmatprep.subr.bf16.mxu0 0
      %2576 = vmatpush1.bf16.xpose.msra.mxu0 0
      %2577 = vmatprep.subr.bf16.mxu0 0
      %2578 = vmatpush1.bf16.xpose.msra.mxu0 0
      %2579 = vmatprep.subr.bf16.mxu0 0
      %2580 = vmatpush1.bf16.xpose.msra.mxu0 0
      %2581 = vmatprep.subr.bf16.mxu0 0
      %2582 = vmatpush1.bf16.xpose.msra.mxu0 0
      %2583 = vmatprep.subr.bf16.mxu0 0
      %2584 = vmatpush1.bf16.xpose.msra.mxu0 0
      %2585 = vmatprep.subr.bf16.mxu0 0
      %2586 = vmatpush1.bf16.xpose.msra.mxu0 0
      %2587 = vmatprep.subr.bf16.mxu0 0
      %2588 = vmatpush1.bf16.xpose.msra.mxu0 0
      %2589 = vmatprep.subr.bf16.mxu0 0
      %2590 = vmatpush1.bf16.xpose.msra.mxu0 0
      %2591 = vmatprep.subr.bf16.mxu0 0
      %2592 = vmatpush1.bf16.xpose.msra.mxu0 0
      %2593 = vmatprep.subr.bf16.mxu0 0
      %2594 = vmatpush1.bf16.xpose.msra.mxu0 0
      %2595 = vmatprep.subr.bf16.mxu0 0
      %2596 = vmatpush1.bf16.xpose.msra.mxu0 0
      %2597 = vmatprep.mubr.bf16.mxu0 0
      %2598 = vmatmul.mubr.bf16.gmra.mrb[0].mxu0 %v2560
      %v2599 = vpop.f32.mrb[0].mxu0
      %v2600 = vadd.f32 0.0, %v2599
      %v2601 = vpop.f32.mrb[0].mxu0
      %v2602 = vpop.f32.mrb[0].mxu0
      %v2603 = vpop.f32.mrb[0].mxu0
      %2604 = vdwg.mxu0
      %v2605 = vsel %vm1249, %v2554, -inf
      %2606 = vmax.xlane.f32.xlu0 %v2605
      %v2607 = vpop.xlane.xlu0 %2606
      %v2608 = vsel %vm1249, %v2600, -inf
      %2609 = vmax.xlane.f32.xlu0 %v2608
      %v2610 = vpop.xlane.xlu0 %2609
      %v2611 = vsub.f32 %v2554, %v2607
      %v2612 = vsub.f32 %v2600, %v2610
      %v2613 = vmul.f32 %v2611, 1.442695
      %v2614 = vpow.pop %v2613
      %v2615 = vmul.f32 %v2612, 1.442695
      %v2616 = vpow.pop %v2615
      %v2617 = vsel %vm1249, %v2614, 0.0
      %2618 = vadd.xlane.f32.xlu0 %v2617
      %v2619 = vpop.xlane.xlu0 %2618
      %v2620 = vsel %vm1249, %v2616, 0.0
      %2621 = vadd.xlane.f32.xlu0 %v2620
      %v2622 = vpop.xlane.xlu0 %2621
      %v2623 = vrcp.pop %v2619
      %v2624 = vrcp.pop %v2622
      %v2625 = vmul.f32 %v2614, %v2623
      %v2626 = vmul.f32 %v2616, %v2624
      %v2627 = vpack.c.bf16 %v2625, %v2625
      %v2628 = vpack.c.bf16 %v2626, %v2626
      %v2630 = vsel %vm1249, %v2627, 0
      %v2633 = vsel %vm1277, %v2511, 0
      %2635 = vmatprep.subr.bf16.mxu0 0
      %2636 = vmatpush1.bf16.msra.mxu0 %v2633
      %2637 = vmatprep.subr.bf16.mxu0 0
      %2638 = vmatpush1.bf16.msra.mxu0 0
      %2639 = vmatprep.subr.bf16.mxu0 0
      %2640 = vmatpush1.bf16.msra.mxu0 0
      %2641 = vmatprep.subr.bf16.mxu0 0
      %2642 = vmatpush1.bf16.msra.mxu0 0
      %2643 = vmatprep.subr.bf16.mxu0 0
      %2644 = vmatpush1.bf16.msra.mxu0 0
      %2645 = vmatprep.subr.bf16.mxu0 0
      %2646 = vmatpush1.bf16.msra.mxu0 0
      %2647 = vmatprep.subr.bf16.mxu0 0
      %2648 = vmatpush1.bf16.msra.mxu0 0
      %2649 = vmatprep.subr.bf16.mxu0 0
      %2650 = vmatpush1.bf16.msra.mxu0 0
      %2651 = vmatprep.subr.bf16.mxu0 0
      %2652 = vmatpush1.bf16.msra.mxu0 0
      %2653 = vmatprep.subr.bf16.mxu0 0
      %2654 = vmatpush1.bf16.msra.mxu0 0
      %2655 = vmatprep.subr.bf16.mxu0 0
      %2656 = vmatpush1.bf16.msra.mxu0 0
      %2657 = vmatprep.subr.bf16.mxu0 0
      %2658 = vmatpush1.bf16.msra.mxu0 0
      %2659 = vmatprep.subr.bf16.mxu0 0
      %2660 = vmatpush1.bf16.msra.mxu0 0
      %2661 = vmatprep.subr.bf16.mxu0 0
      %2662 = vmatpush1.bf16.msra.mxu0 0
      %2663 = vmatprep.subr.bf16.mxu0 0
      %2664 = vmatpush1.bf16.msra.mxu0 0
      %2665 = vmatprep.subr.bf16.mxu0 0
      %2666 = vmatpush1.bf16.msra.mxu0 0
      %2667 = vmatprep.mubr.bf16.mxu0 0
      %2668 = vmatmul.mubr.bf16.gmra.mrb[0].mxu0 %v2630
      %v2669 = vpop.f32.mrb[0].mxu0
      %v2670 = vadd.f32 0.0, %v2669
      %v2671 = vpop.f32.mrb[0].mxu0
      %v2672 = vpop.f32.mrb[0].mxu0
      %v2673 = vpop.f32.mrb[0].mxu0
      %2674 = vdwg.mxu0
      %v2676 = vsel %vm1249, %v2628, 0
      %v2679 = vsel %vm1277, %v2512, 0
      %2681 = vmatprep.subr.bf16.mxu0 0
      %2682 = vmatpush1.bf16.msra.mxu0 %v2679
      %2683 = vmatprep.subr.bf16.mxu0 0
      %2684 = vmatpush1.bf16.msra.mxu0 0
      %2685 = vmatprep.subr.bf16.mxu0 0
      %2686 = vmatpush1.bf16.msra.mxu0 0
      %2687 = vmatprep.subr.bf16.mxu0 0
      %2688 = vmatpush1.bf16.msra.mxu0 0
      %2689 = vmatprep.subr.bf16.mxu0 0
      %2690 = vmatpush1.bf16.msra.mxu0 0
      %2691 = vmatprep.subr.bf16.mxu0 0
      %2692 = vmatpush1.bf16.msra.mxu0 0
      %2693 = vmatprep.subr.bf16.mxu0 0
      %2694 = vmatpush1.bf16.msra.mxu0 0
      %2695 = vmatprep.subr.bf16.mxu0 0
      %2696 = vmatpush1.bf16.msra.mxu0 0
      %2697 = vmatprep.subr.bf16.mxu0 0
      %2698 = vmatpush1.bf16.msra.mxu0 0
      %2699 = vmatprep.subr.bf16.mxu0 0
      %2700 = vmatpush1.bf16.msra.mxu0 0
      %2701 = vmatprep.subr.bf16.mxu0 0
      %2702 = vmatpush1.bf16.msra.mxu0 0
      %2703 = vmatprep.subr.bf16.mxu0 0
      %2704 = vmatpush1.bf16.msra.mxu0 0
      %2705 = vmatprep.subr.bf16.mxu0 0
      %2706 = vmatpush1.bf16.msra.mxu0 0
      %2707 = vmatprep.subr.bf16.mxu0 0
      %2708 = vmatpush1.bf16.msra.mxu0 0
      %2709 = vmatprep.subr.bf16.mxu0 0
      %2710 = vmatpush1.bf16.msra.mxu0 0
      %2711 = vmatprep.subr.bf16.mxu0 0
      %2712 = vmatpush1.bf16.msra.mxu0 0
      %2713 = vmatprep.mubr.bf16.mxu0 0
      %2714 = vmatmul.mubr.bf16.gmra.mrb[0].mxu0 %v2676
      %v2715 = vpop.f32.mrb[0].mxu0
      %v2716 = vadd.f32 0.0, %v2715
      %v2717 = vpop.f32.mrb[0].mxu0
      %v2718 = vpop.f32.mrb[0].mxu0
      %v2719 = vpop.f32.mrb[0].mxu0
      %2720 = vdwg.mxu0
      %v2721 = vpack.c.bf16 %v2716, %v2670
      %2722 = vst.msk [vmem:[#allocation2 + $0x18] sm:$0xff] %vm1156, %v2721
      %2723 = vrot.lane.b32.xlu0 %v2501, 64
      %v2724 = vpop.permute.xlu0 %2723
      %2725 = vrot.lane.b32.xlu0 %v2506, 64
      %v2726 = vpop.permute.xlu0 %2725
      %v2728 = vsel %vm1156, %v2724, 0
      %v2731 = vsel %vm1156, %v2726, 0
      %2733 = vmatprep.subr.bf16.mxu0 0
      %2734 = vmatpush1.bf16.xpose.msra.mxu0 %v2731
      %2735 = vmatprep.subr.bf16.mxu0 0
      %2736 = vmatpush1.bf16.xpose.msra.mxu0 0
      %2737 = vmatprep.subr.bf16.mxu0 0
      %2738 = vmatpush1.bf16.xpose.msra.mxu0 0
      %2739 = vmatprep.subr.bf16.mxu0 0
      %2740 = vmatpush1.bf16.xpose.msra.mxu0 0
      %2741 = vmatprep.subr.bf16.mxu0 0
      %2742 = vmatpush1.bf16.xpose.msra.mxu0 0
      %2743 = vmatprep.subr.bf16.mxu0 0
      %2744 = vmatpush1.bf16.xpose.msra.mxu0 0
      %2745 = vmatprep.subr.bf16.mxu0 0
      %2746 = vmatpush1.bf16.xpose.msra.mxu0 0
      %2747 = vmatprep.subr.bf16.mxu0 0
      %2748 = vmatpush1.bf16.xpose.msra.mxu0 0
      %2749 = vmatprep.subr.bf16.mxu0 0
      %2750 = vmatpush1.bf16.xpose.msra.mxu0 0
      %2751 = vmatprep.subr.bf16.mxu0 0
      %2752 = vmatpush1.bf16.xpose.msra.mxu0 0
      %2753 = vmatprep.subr.bf16.mxu0 0
      %2754 = vmatpush1.bf16.xpose.msra.mxu0 0
      %2755 = vmatprep.subr.bf16.mxu0 0
      %2756 = vmatpush1.bf16.xpose.msra.mxu0 0
      %2757 = vmatprep.subr.bf16.mxu0 0
      %2758 = vmatpush1.bf16.xpose.msra.mxu0 0
      %2759 = vmatprep.subr.bf16.mxu0 0
      %2760 = vmatpush1.bf16.xpose.msra.mxu0 0
      %2761 = vmatprep.subr.bf16.mxu0 0
      %2762 = vmatpush1.bf16.xpose.msra.mxu0 0
      %2763 = vmatprep.subr.bf16.mxu0 0
      %2764 = vmatpush1.bf16.xpose.msra.mxu0 0
      %2765 = vmatprep.mubr.bf16.mxu0 0
      %2766 = vmatmul.mubr.bf16.gmra.mrb[0].mxu0 %v2728
      %v2767 = vpop.f32.mrb[0].mxu0
      %v2768 = vadd.f32 0.0, %v2767
      %v2769 = vpop.f32.mrb[0].mxu0
      %v2770 = vpop.f32.mrb[0].mxu0
      %v2771 = vpop.f32.mrb[0].mxu0
      %2772 = vdwg.mxu0
      %2773 = vrot.lane.b32.xlu0 %v2502, 64
      %v2774 = vpop.permute.xlu0 %2773
      %2775 = vrot.lane.b32.xlu0 %v2507, 64
      %v2776 = vpop.permute.xlu0 %2775
      %v2778 = vsel %vm1156, %v2774, 0
      %v2781 = vsel %vm1156, %v2776, 0
      %2783 = vmatprep.subr.bf16.mxu0 0
      %2784 = vmatpush1.bf16.xpose.msra.mxu0 %v2781
      %2785 = vmatprep.subr.bf16.mxu0 0
      %2786 = vmatpush1.bf16.xpose.msra.mxu0 0
      %2787 = vmatprep.subr.bf16.mxu0 0
      %2788 = vmatpush1.bf16.xpose.msra.mxu0 0
      %2789 = vmatprep.subr.bf16.mxu0 0
      %2790 = vmatpush1.bf16.xpose.msra.mxu0 0
      %2791 = vmatprep.subr.bf16.mxu0 0
      %2792 = vmatpush1.bf16.xpose.msra.mxu0 0
      %2793 = vmatprep.subr.bf16.mxu0 0
      %2794 = vmatpush1.bf16.xpose.msra.mxu0 0
      %2795 = vmatprep.subr.bf16.mxu0 0
      %2796 = vmatpush1.bf16.xpose.msra.mxu0 0
      %2797 = vmatprep.subr.bf16.mxu0 0
      %2798 = vmatpush1.bf16.xpose.msra.mxu0 0
      %2799 = vmatprep.subr.bf16.mxu0 0
      %2800 = vmatpush1.bf16.xpose.msra.mxu0 0
      %2801 = vmatprep.subr.bf16.mxu0 0
      %2802 = vmatpush1.bf16.xpose.msra.mxu0 0
      %2803 = vmatprep.subr.bf16.mxu0 0
      %2804 = vmatpush1.bf16.xpose.msra.mxu0 0
      %2805 = vmatprep.subr.bf16.mxu0 0
      %2806 = vmatpush1.bf16.xpose.msra.mxu0 0
      %2807 = vmatprep.subr.bf16.mxu0 0
      %2808 = vmatpush1.bf16.xpose.msra.mxu0 0
      %2809 = vmatprep.subr.bf16.mxu0 0
      %2810 = vmatpush1.bf16.xpose.msra.mxu0 0
      %2811 = vmatprep.subr.bf16.mxu0 0
      %2812 = vmatpush1.bf16.xpose.msra.mxu0 0
      %2813 = vmatprep.subr.bf16.mxu0 0
      %2814 = vmatpush1.bf16.xpose.msra.mxu0 0
      %2815 = vmatprep.mubr.bf16.mxu0 0
      %2816 = vmatmul.mubr.bf16.gmra.mrb[0].mxu0 %v2778
      %v2817 = vpop.f32.mrb[0].mxu0
      %v2818 = vadd.f32 0.0, %v2817
      %v2819 = vpop.f32.mrb[0].mxu0
      %v2820 = vpop.f32.mrb[0].mxu0
      %v2821 = vpop.f32.mrb[0].mxu0
      %2822 = vdwg.mxu0
      %v2823 = vsel %vm1249, %v2768, -inf
      %2824 = vmax.xlane.f32.xlu0 %v2823
      %v2825 = vpop.xlane.xlu0 %2824
      %v2826 = vsel %vm1249, %v2818, -inf
      %2827 = vmax.xlane.f32.xlu0 %v2826
      %v2828 = vpop.xlane.xlu0 %2827
      %v2829 = vsub.f32 %v2768, %v2825
      %v2830 = vsub.f32 %v2818, %v2828
      %v2831 = vmul.f32 %v2829, 1.442695
      %v2832 = vpow.pop %v2831
      %v2833 = vmul.f32 %v2830, 1.442695
      %v2834 = vpow.pop %v2833
      %v2835 = vsel %vm1249, %v2832, 0.0
      %2836 = vadd.xlane.f32.xlu0 %v2835
      %v2837 = vpop.xlane.xlu0 %2836
      %v2838 = vsel %vm1249, %v2834, 0.0
      %2839 = vadd.xlane.f32.xlu0 %v2838
      %v2840 = vpop.xlane.xlu0 %2839
      %v2841 = vrcp.pop %v2837
      %v2842 = vrcp.pop %v2840
      %v2843 = vmul.f32 %v2832, %v2841
      %v2844 = vmul.f32 %v2834, %v2842
      %v2845 = vpack.c.bf16 %v2843, %v2843
      %v2846 = vpack.c.bf16 %v2844, %v2844
      %2847 = vrot.lane.b32.xlu0 %v2511, 64
      %v2848 = vpop.permute.xlu0 %2847
      %v2850 = vsel %vm1249, %v2845, 0
      %v2853 = vsel %vm1277, %v2848, 0
      %2855 = vmatprep.subr.bf16.mxu0 0
      %2856 = vmatpush1.bf16.msra.mxu0 %v2853
      %2857 = vmatprep.subr.bf16.mxu0 0
      %2858 = vmatpush1.bf16.msra.mxu0 0
      %2859 = vmatprep.subr.bf16.mxu0 0
      %2860 = vmatpush1.bf16.msra.mxu0 0
      %2861 = vmatprep.subr.bf16.mxu0 0
      %2862 = vmatpush1.bf16.msra.mxu0 0
      %2863 = vmatprep.subr.bf16.mxu0 0
      %2864 = vmatpush1.bf16.msra.mxu0 0
      %2865 = vmatprep.subr.bf16.mxu0 0
      %2866 = vmatpush1.bf16.msra.mxu0 0
      %2867 = vmatprep.subr.bf16.mxu0 0
      %2868 = vmatpush1.bf16.msra.mxu0 0
      %2869 = vmatprep.subr.bf16.mxu0 0
      %2870 = vmatpush1.bf16.msra.mxu0 0
      %2871 = vmatprep.subr.bf16.mxu0 0
      %2872 = vmatpush1.bf16.msra.mxu0 0
      %2873 = vmatprep.subr.bf16.mxu0 0
      %2874 = vmatpush1.bf16.msra.mxu0 0
      %2875 = vmatprep.subr.bf16.mxu0 0
      %2876 = vmatpush1.bf16.msra.mxu0 0
      %2877 = vmatprep.subr.bf16.mxu0 0
      %2878 = vmatpush1.bf16.msra.mxu0 0
      %2879 = vmatprep.subr.bf16.mxu0 0
      %2880 = vmatpush1.bf16.msra.mxu0 0
      %2881 = vmatprep.subr.bf16.mxu0 0
      %2882 = vmatpush1.bf16.msra.mxu0 0
      %2883 = vmatprep.subr.bf16.mxu0 0
      %2884 = vmatpush1.bf16.msra.mxu0 0
      %2885 = vmatprep.subr.bf16.mxu0 0
      %2886 = vmatpush1.bf16.msra.mxu0 0
      %2887 = vmatprep.mubr.bf16.mxu0 0
      %2888 = vmatmul.mubr.bf16.gmra.mrb[0].mxu0 %v2850
      %v2889 = vpop.f32.mrb[0].mxu0
      %v2890 = vadd.f32 0.0, %v2889
      %v2891 = vpop.f32.mrb[0].mxu0
      %v2892 = vpop.f32.mrb[0].mxu0
      %v2893 = vpop.f32.mrb[0].mxu0
      %2894 = vdwg.mxu0
      %2895 = vrot.lane.b32.xlu0 %v2512, 64
      %v2896 = vpop.permute.xlu0 %2895
      %v2898 = vsel %vm1249, %v2846, 0
      %v2901 = vsel %vm1277, %v2896, 0
      %2903 = vmatprep.subr.bf16.mxu0 0
      %2904 = vmatpush1.bf16.msra.mxu0 %v2901
      %2905 = vmatprep.subr.bf16.mxu0 0
      %2906 = vmatpush1.bf16.msra.mxu0 0
      %2907 = vmatprep.subr.bf16.mxu0 0
      %2908 = vmatpush1.bf16.msra.mxu0 0
      %2909 = vmatprep.subr.bf16.mxu0 0
      %2910 = vmatpush1.bf16.msra.mxu0 0
      %2911 = vmatprep.subr.bf16.mxu0 0
      %2912 = vmatpush1.bf16.msra.mxu0 0
      %2913 = vmatprep.subr.bf16.mxu0 0
      %2914 = vmatpush1.bf16.msra.mxu0 0
      %2915 = vmatprep.subr.bf16.mxu0 0
      %2916 = vmatpush1.bf16.msra.mxu0 0
      %2917 = vmatprep.subr.bf16.mxu0 0
      %2918 = vmatpush1.bf16.msra.mxu0 0
      %2919 = vmatprep.subr.bf16.mxu0 0
      %2920 = vmatpush1.bf16.msra.mxu0 0
      %2921 = vmatprep.subr.bf16.mxu0 0
      %2922 = vmatpush1.bf16.msra.mxu0 0
      %2923 = vmatprep.subr.bf16.mxu0 0
      %2924 = vmatpush1.bf16.msra.mxu0 0
      %2925 = vmatprep.subr.bf16.mxu0 0
      %2926 = vmatpush1.bf16.msra.mxu0 0
      %2927 = vmatprep.subr.bf16.mxu0 0
      %2928 = vmatpush1.bf16.msra.mxu0 0
      %2929 = vmatprep.subr.bf16.mxu0 0
      %2930 = vmatpush1.bf16.msra.mxu0 0
      %2931 = vmatprep.subr.bf16.mxu0 0
      %2932 = vmatpush1.bf16.msra.mxu0 0
      %2933 = vmatprep.subr.bf16.mxu0 0
      %2934 = vmatpush1.bf16.msra.mxu0 0
      %2935 = vmatprep.mubr.bf16.mxu0 0
      %2936 = vmatmul.mubr.bf16.gmra.mrb[0].mxu0 %v2898
      %v2937 = vpop.f32.mrb[0].mxu0
      %v2938 = vadd.f32 0.0, %v2937
      %v2939 = vpop.f32.mrb[0].mxu0
      %v2940 = vpop.f32.mrb[0].mxu0
      %v2941 = vpop.f32.mrb[0].mxu0
      %2942 = vdwg.mxu0
      %v2943 = vpack.c.bf16 %v2938, %v2890
      %2945 = vrot.lane.b32.xlu0 %v2943, 64
      %v2946 = vpop.permute.xlu0 %2945
      %2948 = vst.msk [vmem:[#allocation2 + $0x18] sm:$0xff] %vm1594, %v2946
      %v2949 = vld [vmem:[#allocation2] sm:$0xff]
      %v2950 = vld [vmem:[#allocation2 + $0x8] sm:$0xff]
      %v2951 = vld [vmem:[#allocation2 + $0x10] sm:$0xff]
      %v2952 = vld [vmem:[#allocation2 + $0x18] sm:$0xff]
      %v2953 = vld [vmem:[%s581] sm:$0xf]
      %v2954 = vld [vmem:[%s581 + $0x4] sm:$0xf]
      %v2955 = vld [vmem:[%s581 + $0x8] sm:$0xf]
      %v2956 = vld [vmem:[%s581 + $0xc] sm:$0xf]
      %v2957 = vld [vmem:[%s581 + $0x10] sm:$0xf]
      %v2958 = vld [vmem:[%s581 + $0x14] sm:$0xf]
      %v2959 = vld [vmem:[%s581 + $0x18] sm:$0xf]
      %v2960 = vld [vmem:[%s581 + $0x1c] sm:$0xf]
      %v2961 = vld [vmem:[%s581 + $0x20] sm:$0xf]
      %v2962 = vld [vmem:[%s581 + $0x24] sm:$0xf]
      %v2963 = vld [vmem:[%s581 + $0x28] sm:$0xf]
      %v2964 = vld [vmem:[%s581 + $0x2c] sm:$0xf]
      %v2965 = vld [vmem:[%s581 + $0x30] sm:$0xf]
      %v2966 = vld [vmem:[%s581 + $0x34] sm:$0xf]
      %v2967 = vld [vmem:[%s581 + $0x38] sm:$0xf]
      %v2968 = vld [vmem:[%s581 + $0x3c] sm:$0xf]
      %v2969 = vld [vmem:[%s581 + $0x40] sm:$0xf]
      %v2970 = vld [vmem:[%s581 + $0x44] sm:$0xf]
      %v2971 = vld [vmem:[%s581 + $0x48] sm:$0xf]
      %v2972 = vld [vmem:[%s581 + $0x4c] sm:$0xf]
      %v2973 = vld [vmem:[%s581 + $0x50] sm:$0xf]
      %v2974 = vld [vmem:[%s581 + $0x54] sm:$0xf]
      %v2975 = vld [vmem:[%s581 + $0x58] sm:$0xf]
      %v2976 = vld [vmem:[%s581 + $0x5c] sm:$0xf]
      %v2977 = vld [vmem:[%s581 + $0x60] sm:$0xf]
      %v2978 = vld [vmem:[%s581 + $0x64] sm:$0xf]
      %v2979 = vld [vmem:[%s581 + $0x68] sm:$0xf]
      %v2980 = vld [vmem:[%s581 + $0x6c] sm:$0xf]
      %v2981 = vld [vmem:[%s581 + $0x70] sm:$0xf]
      %v2982 = vld [vmem:[%s581 + $0x74] sm:$0xf]
      %v2983 = vld [vmem:[%s581 + $0x78] sm:$0xf]
      %v2984 = vld [vmem:[%s581 + $0x7c] sm:$0xf]
      %v2985 = vld [vmem:[%s581 + $0x80] sm:$0xf]
      %v2986 = vld [vmem:[%s581 + $0x84] sm:$0xf]
      %v2987 = vld [vmem:[%s581 + $0x88] sm:$0xf]
      %v2988 = vld [vmem:[%s581 + $0x8c] sm:$0xf]
      %v2989 = vld [vmem:[%s581 + $0x90] sm:$0xf]
      %v2990 = vld [vmem:[%s581 + $0x94] sm:$0xf]
      %v2991 = vld [vmem:[%s581 + $0x98] sm:$0xf]
      %v2992 = vld [vmem:[%s581 + $0x9c] sm:$0xf]
      %v2993 = vld [vmem:[%s581 + $0xa0] sm:$0xf]
      %v2994 = vld [vmem:[%s581 + $0xa4] sm:$0xf]
      %v2995 = vld [vmem:[%s581 + $0xa8] sm:$0xf]
      %v2996 = vld [vmem:[%s581 + $0xac] sm:$0xf]
      %v2997 = vld [vmem:[%s581 + $0xb0] sm:$0xf]
      %v2998 = vld [vmem:[%s581 + $0xb4] sm:$0xf]
      %v2999 = vld [vmem:[%s581 + $0xb8] sm:$0xf]
      %v3000 = vld [vmem:[%s581 + $0xbc] sm:$0xf]
      %v3001 = vld [vmem:[%s581 + $0xc0] sm:$0xf]
      %v3002 = vld [vmem:[%s581 + $0xc4] sm:$0xf]
      %v3003 = vld [vmem:[%s581 + $0xc8] sm:$0xf]
      %v3004 = vld [vmem:[%s581 + $0xcc] sm:$0xf]
      %v3005 = vld [vmem:[%s581 + $0xd0] sm:$0xf]
      %v3006 = vld [vmem:[%s581 + $0xd4] sm:$0xf]
      %v3007 = vld [vmem:[%s581 + $0xd8] sm:$0xf]
      %v3008 = vld [vmem:[%s581 + $0xdc] sm:$0xf]
      %v3009 = vld [vmem:[%s581 + $0xe0] sm:$0xf]
      %v3010 = vld [vmem:[%s581 + $0xe4] sm:$0xf]
      %v3011 = vld [vmem:[%s581 + $0xe8] sm:$0xf]
      %v3012 = vld [vmem:[%s581 + $0xec] sm:$0xf]
      %v3013 = vld [vmem:[%s581 + $0xf0] sm:$0xf]
      %v3014 = vld [vmem:[%s581 + $0xf4] sm:$0xf]
      %v3015 = vld [vmem:[%s581 + $0xf8] sm:$0xf]
      %v3016 = vld [vmem:[%s581 + $0xfc] sm:$0xf]
      %v3081 = vunpack.c.l.b16 %v2953
      %v3082 = vunpack.c.l.b16 %v2954
      %v3083 = vunpack.c.l.b16 %v2955
      %v3084 = vunpack.c.l.b16 %v2956
      %v3085 = vunpack.c.l.b16 %v2957
      %v3086 = vunpack.c.l.b16 %v2958
      %v3087 = vunpack.c.l.b16 %v2959
      %v3088 = vunpack.c.l.b16 %v2960
      %v3089 = vunpack.c.l.b16 %v2961
      %v3090 = vunpack.c.l.b16 %v2962
      %v3091 = vunpack.c.l.b16 %v2963
      %v3092 = vunpack.c.l.b16 %v2964
      %v3093 = vunpack.c.l.b16 %v2965
      %v3094 = vunpack.c.l.b16 %v2966
      %v3095 = vunpack.c.l.b16 %v2967
      %v3096 = vunpack.c.l.b16 %v2968
      %v3097 = vunpack.c.l.b16 %v2969
      %v3098 = vunpack.c.l.b16 %v2970
      %v3099 = vunpack.c.l.b16 %v2971
      %v3100 = vunpack.c.l.b16 %v2972
      %v3101 = vunpack.c.l.b16 %v2973
      %v3102 = vunpack.c.l.b16 %v2974
      %v3103 = vunpack.c.l.b16 %v2975
      %v3104 = vunpack.c.l.b16 %v2976
      %v3105 = vunpack.c.l.b16 %v2977
      %v3106 = vunpack.c.l.b16 %v2978
      %v3107 = vunpack.c.l.b16 %v2979
      %v3108 = vunpack.c.l.b16 %v2980
      %v3109 = vunpack.c.l.b16 %v2981
      %v3110 = vunpack.c.l.b16 %v2982
      %v3111 = vunpack.c.l.b16 %v2983
      %v3112 = vunpack.c.l.b16 %v2984
      %v3113 = vunpack.c.l.b16 %v2985
      %v3114 = vunpack.c.l.b16 %v2986
      %v3115 = vunpack.c.l.b16 %v2987
      %v3116 = vunpack.c.l.b16 %v2988
      %v3117 = vunpack.c.l.b16 %v2989
      %v3118 = vunpack.c.l.b16 %v2990
      %v3119 = vunpack.c.l.b16 %v2991
      %v3120 = vunpack.c.l.b16 %v2992
      %v3121 = vunpack.c.l.b16 %v2993
      %v3122 = vunpack.c.l.b16 %v2994
      %v3123 = vunpack.c.l.b16 %v2995
      %v3124 = vunpack.c.l.b16 %v2996
      %v3125 = vunpack.c.l.b16 %v2997
      %v3126 = vunpack.c.l.b16 %v2998
      %v3127 = vunpack.c.l.b16 %v2999
      %v3128 = vunpack.c.l.b16 %v3000
      %v3129 = vunpack.c.l.b16 %v3001
      %v3130 = vunpack.c.l.b16 %v3002
      %v3131 = vunpack.c.l.b16 %v3003
      %v3132 = vunpack.c.l.b16 %v3004
      %v3133 = vunpack.c.l.b16 %v3005
      %v3134 = vunpack.c.l.b16 %v3006
      %v3135 = vunpack.c.l.b16 %v3007
      %v3136 = vunpack.c.l.b16 %v3008
      %v3137 = vunpack.c.l.b16 %v3009
      %v3138 = vunpack.c.l.b16 %v3010
      %v3139 = vunpack.c.l.b16 %v3011
      %v3140 = vunpack.c.l.b16 %v3012
      %v3141 = vunpack.c.l.b16 %v3013
      %v3142 = vunpack.c.l.b16 %v3014
      %v3143 = vunpack.c.l.b16 %v3015
      %v3144 = vunpack.c.l.b16 %v3016
      %v3145 = vpack.c.b16 %v3082, %v3081
      %v3146 = vpack.c.b16 %v3084, %v3083
      %v3147 = vpack.c.b16 %v3086, %v3085
      %v3148 = vpack.c.b16 %v3088, %v3087
      %v3149 = vpack.c.b16 %v3090, %v3089
      %v3150 = vpack.c.b16 %v3092, %v3091
      %v3151 = vpack.c.b16 %v3094, %v3093
      %v3152 = vpack.c.b16 %v3096, %v3095
      %v3153 = vpack.c.b16 %v3098, %v3097
      %v3154 = vpack.c.b16 %v3100, %v3099
      %v3155 = vpack.c.b16 %v3102, %v3101
      %v3156 = vpack.c.b16 %v3104, %v3103
      %v3157 = vpack.c.b16 %v3106, %v3105
      %v3158 = vpack.c.b16 %v3108, %v3107
      %v3159 = vpack.c.b16 %v3110, %v3109
      %v3160 = vpack.c.b16 %v3112, %v3111
      %v3161 = vpack.c.b16 %v3114, %v3113
      %v3162 = vpack.c.b16 %v3116, %v3115
      %v3163 = vpack.c.b16 %v3118, %v3117
      %v3164 = vpack.c.b16 %v3120, %v3119
      %v3165 = vpack.c.b16 %v3122, %v3121
      %v3166 = vpack.c.b16 %v3124, %v3123
      %v3167 = vpack.c.b16 %v3126, %v3125
      %v3168 = vpack.c.b16 %v3128, %v3127
      %v3169 = vpack.c.b16 %v3130, %v3129
      %v3170 = vpack.c.b16 %v3132, %v3131
      %v3171 = vpack.c.b16 %v3134, %v3133
      %v3172 = vpack.c.b16 %v3136, %v3135
      %v3173 = vpack.c.b16 %v3138, %v3137
      %v3174 = vpack.c.b16 %v3140, %v3139
      %v3175 = vpack.c.b16 %v3142, %v3141
      %v3176 = vpack.c.b16 %v3144, %v3143
      %3209 = vmatprep.subr.bf16.mxu0 0
      %3210 = vmatpush1.bf16.msra.mxu0 %v3145
      %3211 = vmatprep.subr.bf16.mxu0 0
      %3212 = vmatpush1.bf16.msra.mxu0 %v3146
      %3213 = vmatprep.subr.bf16.mxu0 0
      %3214 = vmatpush1.bf16.msra.mxu0 %v3147
      %3215 = vmatprep.subr.bf16.mxu0 0
      %3216 = vmatpush1.bf16.msra.mxu0 %v3148
      %3217 = vmatprep.subr.bf16.mxu0 0
      %3218 = vmatpush1.bf16.msra.mxu0 %v3149
      %3219 = vmatprep.subr.bf16.mxu0 0
      %3220 = vmatpush1.bf16.msra.mxu0 %v3150
      %3221 = vmatprep.subr.bf16.mxu0 0
      %3222 = vmatpush1.bf16.msra.mxu0 %v3151
      %3223 = vmatprep.subr.bf16.mxu0 0
      %3224 = vmatpush1.bf16.msra.mxu0 %v3152
      %3225 = vmatprep.subr.bf16.mxu0 0
      %3226 = vmatpush1.bf16.msra.mxu0 %v3153
      %3227 = vmatprep.subr.bf16.mxu0 0
      %3228 = vmatpush1.bf16.msra.mxu0 %v3154
      %3229 = vmatprep.subr.bf16.mxu0 0
      %3230 = vmatpush1.bf16.msra.mxu0 %v3155
      %3231 = vmatprep.subr.bf16.mxu0 0
      %3232 = vmatpush1.bf16.msra.mxu0 %v3156
      %3233 = vmatprep.subr.bf16.mxu0 0
      %3234 = vmatpush1.bf16.msra.mxu0 %v3157
      %3235 = vmatprep.subr.bf16.mxu0 0
      %3236 = vmatpush1.bf16.msra.mxu0 %v3158
      %3237 = vmatprep.subr.bf16.mxu0 0
      %3238 = vmatpush1.bf16.msra.mxu0 %v3159
      %3239 = vmatprep.subr.bf16.mxu0 0
      %3240 = vmatpush1.bf16.msra.mxu0 %v3160
      %3241 = vmatprep.mubr.bf16.mxu0 %v2950
      %3242 = vmatmul.mubr.bf16.gmra.mrb[0].mxu0 %v2949
      %v3243 = vpop.f32.mrb[0].mxu0
      %v3244 = vadd.f32 0.0, %v3243
      %v3245 = vpop.f32.mrb[0].mxu0
      %v3246 = vpop.f32.mrb[0].mxu0
      %v3247 = vadd.f32 0.0, %v3246
      %v3248 = vpop.f32.mrb[0].mxu0
      %3249 = vdwg.mxu0
      %3250 = vmatprep.subr.bf16.mxu0 0
      %3251 = vmatpush1.bf16.msra.mxu0 %v3161
      %3252 = vmatprep.subr.bf16.mxu0 0
      %3253 = vmatpush1.bf16.msra.mxu0 %v3162
      %3254 = vmatprep.subr.bf16.mxu0 0
      %3255 = vmatpush1.bf16.msra.mxu0 %v3163
      %3256 = vmatprep.subr.bf16.mxu0 0
      %3257 = vmatpush1.bf16.msra.mxu0 %v3164
      %3258 = vmatprep.subr.bf16.mxu0 0
      %3259 = vmatpush1.bf16.msra.mxu0 %v3165
      %3260 = vmatprep.subr.bf16.mxu0 0
      %3261 = vmatpush1.bf16.msra.mxu0 %v3166
      %3262 = vmatprep.subr.bf16.mxu0 0
      %3263 = vmatpush1.bf16.msra.mxu0 %v3167
      %3264 = vmatprep.subr.bf16.mxu0 0
      %3265 = vmatpush1.bf16.msra.mxu0 %v3168
      %3266 = vmatprep.subr.bf16.mxu0 0
      %3267 = vmatpush1.bf16.msra.mxu0 %v3169
      %3268 = vmatprep.subr.bf16.mxu0 0
      %3269 = vmatpush1.bf16.msra.mxu0 %v3170
      %3270 = vmatprep.subr.bf16.mxu0 0
      %3271 = vmatpush1.bf16.msra.mxu0 %v3171
      %3272 = vmatprep.subr.bf16.mxu0 0
      %3273 = vmatpush1.bf16.msra.mxu0 %v3172
      %3274 = vmatprep.subr.bf16.mxu0 0
      %3275 = vmatpush1.bf16.msra.mxu0 %v3173
      %3276 = vmatprep.subr.bf16.mxu0 0
      %3277 = vmatpush1.bf16.msra.mxu0 %v3174
      %3278 = vmatprep.subr.bf16.mxu0 0
      %3279 = vmatpush1.bf16.msra.mxu0 %v3175
      %3280 = vmatprep.subr.bf16.mxu0 0
      %3281 = vmatpush1.bf16.msra.mxu0 %v3176
      %3282 = vmatprep.mubr.bf16.mxu0 %v2952
      %3283 = vmatmul.mubr.bf16.gmra.mrb[0].mxu0 %v2951
      %v3284 = vpop.f32.mrb[0].mxu0
      %v3285 = vadd.f32 %v3244, %v3284
      %v3286 = vpop.f32.mrb[0].mxu0
      %v3287 = vpop.f32.mrb[0].mxu0
      %v3288 = vadd.f32 %v3247, %v3287
      %v3289 = vpop.f32.mrb[0].mxu0
      %3290 = vdwg.mxu0
      %v3291 = vadd.f32 %v667, %v3285
      %v3292 = vadd.f32 %v668, %v3288
      %v3293 = vld [vmem:[%s584] sm:$0x1]
      %v3295 = vlaneseq
      %v3296 = vshrl.u32 %v3295, 7
      %v3297 = vsub.s32 0, %v3296
      %v3298 = vrot.slane %v3293, %v3297
      %v3300 = vadd.f32 %v3291, %v3298
      %v3301 = vadd.f32 %v3292, %v3298
      %v3302 = vld [vmem:[%s587] sm:$0x1]
      %v3303 = vld [vmem:[%s590] sm:$0x1]
      %v3304 = vsel %vm671, %v3300, 0.0
      %3305 = vadd.xlane.f32.xlu0 %v3304
      %v3306 = vpop.xlane.xlu0 %3305
      %v3307 = vsel %vm671, %v3301, 0.0
      %3308 = vadd.xlane.f32.xlu0 %v3307
      %v3309 = vpop.xlane.xlu0 %3308
      %v3310 = vmul.f32 %v3306, %v678
      %v3311 = vmul.f32 %v3309, %v678
      %v3312 = vsub.f32 %v3300, %v3310
      %v3313 = vsub.f32 %v3301, %v3311
      %v3314 = vmul.f32 %v3312, %v3312
      %v3315 = vmul.f32 %v3313, %v3313
      %v3316 = vsel %vm671, %v3314, 0.0
      %3317 = vadd.xlane.f32.xlu0 %v3316
      %v3318 = vpop.xlane.xlu0 %3317
      %v3319 = vsel %vm671, %v3315, 0.0
      %3320 = vadd.xlane.f32.xlu0 %v3319
      %v3321 = vpop.xlane.xlu0 %3320
      %v3322 = vmul.f32 %v3318, %v678
      %v3323 = vmul.f32 %v3321, %v678
      %v3324 = vadd.f32 %v3322, 1e-05
      %v3325 = vadd.f32 %v3323, 1e-05
      %v3326 = vrsqrt.pop %v3324
      %v3327 = vrsqrt.pop %v3325
      %v3328 = vmul.f32 %v3312, %v3326
      %v3329 = vmul.f32 %v3313, %v3327
      %v3331 = vlaneseq
      %v3332 = vshrl.u32 %v3331, 7
      %v3333 = vsub.s32 0, %v3332
      %v3334 = vrot.slane %v3302, %v3333
      %v3336 = vmul.f32 %v3328, %v3334
      %v3337 = vmul.f32 %v3329, %v3334
      %v3339 = vlaneseq
      %v3340 = vshrl.u32 %v3339, 7
      %v3341 = vsub.s32 0, %v3340
      %v3342 = vrot.slane %v3303, %v3341
      %v3344 = vadd.f32 %v3336, %v3342
      %v3345 = vadd.f32 %v3337, %v3342
      %v3346 = vpack.c.bf16 %v3345, %v3344
      %v3347 = vld [vmem:[%s595] sm:$0xf]
      %v3348 = vld [vmem:[%s595 + $0x4] sm:$0xf]
      %v3349 = vld [vmem:[%s595 + $0x8] sm:$0xf]
      %v3350 = vld [vmem:[%s595 + $0xc] sm:$0xf]
      %v3351 = vld [vmem:[%s598] sm:$0x1]
      %v3353 = vlaneseq
      %v3354 = vshrl.u32 %v3353, 7
      %v3355 = vsub.s32 0, %v3354
      %v3356 = vrot.slane %v3351, %v3355
      %v3362 = vunpack.c.l.b16 %v3347
      %v3363 = vunpack.c.l.b16 %v3348
      %v3364 = vunpack.c.l.b16 %v3349
      %v3365 = vunpack.c.l.b16 %v3350
      %v3366 = vpack.c.b16 %v3363, %v3362
      %v3367 = vpack.c.b16 %v3365, %v3364
      %v3371 = vsel %vm671, %v3346, 0
      %3373 = vmatprep.subr.bf16.mxu0 0
      %3374 = vmatpush1.bf16.msra.mxu0 %v3366
      %3375 = vmatprep.subr.bf16.mxu0 0
      %3376 = vmatpush1.bf16.msra.mxu0 %v3367
      %3377 = vmatprep.subr.bf16.mxu0 0
      %3378 = vmatpush1.bf16.msra.mxu0 0
      %3379 = vmatprep.subr.bf16.mxu0 0
      %3380 = vmatpush1.bf16.msra.mxu0 0
      %3381 = vmatprep.subr.bf16.mxu0 0
      %3382 = vmatpush1.bf16.msra.mxu0 0
      %3383 = vmatprep.subr.bf16.mxu0 0
      %3384 = vmatpush1.bf16.msra.mxu0 0
      %3385 = vmatprep.subr.bf16.mxu0 0
      %3386 = vmatpush1.bf16.msra.mxu0 0
      %3387 = vmatprep.subr.bf16.mxu0 0
      %3388 = vmatpush1.bf16.msra.mxu0 0
      %3389 = vmatprep.subr.bf16.mxu0 0
      %3390 = vmatpush1.bf16.msra.mxu0 0
      %3391 = vmatprep.subr.bf16.mxu0 0
      %3392 = vmatpush1.bf16.msra.mxu0 0
      %3393 = vmatprep.subr.bf16.mxu0 0
      %3394 = vmatpush1.bf16.msra.mxu0 0
      %3395 = vmatprep.subr.bf16.mxu0 0
      %3396 = vmatpush1.bf16.msra.mxu0 0
      %3397 = vmatprep.subr.bf16.mxu0 0
      %3398 = vmatpush1.bf16.msra.mxu0 0
      %3399 = vmatprep.subr.bf16.mxu0 0
      %3400 = vmatpush1.bf16.msra.mxu0 0
      %3401 = vmatprep.subr.bf16.mxu0 0
      %3402 = vmatpush1.bf16.msra.mxu0 0
      %3403 = vmatprep.subr.bf16.mxu0 0
      %3404 = vmatpush1.bf16.msra.mxu0 0
      %3405 = vmatprep.mubr.bf16.mxu0 0
      %3406 = vmatmul.mubr.bf16.gmra.mrb[0].mxu0 %v3371
      %v3407 = vpop.f32.mrb[0].mxu0
      %v3408 = vadd.f32 %v3356, %v3407
      %v3409 = vpop.f32.mrb[0].mxu0
      %v3410 = vpop.f32.mrb[0].mxu0
      %v3411 = vadd.f32 %v3356, %v3410
      %v3412 = vpop.f32.mrb[0].mxu0
      %3413 = vdwg.mxu0
      %v3414 = vmul.f32 %v3408, 0.5
      %v3415 = vmul.f32 %v3411, 0.5
      %v3416 = vmul.f32 %v3408, 0.044715
      %v3417 = vmul.f32 %v3411, 0.044715
      %v3418 = vmul.f32 %v3416, %v3408
      %v3419 = vmul.f32 %v3417, %v3411
      %v3420 = vmul.f32 %v3418, %v3408
      %v3421 = vmul.f32 %v3419, %v3411
      %v3422 = vadd.f32 %v3408, %v3420
      %v3423 = vadd.f32 %v3411, %v3421
      %v3424 = vmul.f32 %v3422, 0.7978846
      %v3425 = vmul.f32 %v3423, 0.7978846
      %v3426 = vtanh.pop %v3424
      %v3427 = vtanh.pop %v3425
      %v3428 = vadd.f32 %v3426, 1.0
      %v3429 = vadd.f32 %v3427, 1.0
      %v3430 = vmul.f32 %v3414, %v3428
      %v3431 = vmul.f32 %v3415, %v3429
      %v3432 = vpack.c.bf16 %v3431, %v3430
      %v3433 = vld [vmem:[%s603] sm:$0xf]
      %v3434 = vld [vmem:[%s603 + $0x4] sm:$0xf]
      %v3435 = vld [vmem:[%s603 + $0x8] sm:$0xf]
      %v3436 = vld [vmem:[%s603 + $0xc] sm:$0xf]
      %v3437 = vld [vmem:[%s603 + $0x10] sm:$0xf]
      %v3438 = vld [vmem:[%s603 + $0x14] sm:$0xf]
      %v3439 = vld [vmem:[%s603 + $0x18] sm:$0xf]
      %v3440 = vld [vmem:[%s603 + $0x1c] sm:$0xf]
      %v3441 = vld [vmem:[%s603 + $0x20] sm:$0xf]
      %v3442 = vld [vmem:[%s603 + $0x24] sm:$0xf]
      %v3443 = vld [vmem:[%s603 + $0x28] sm:$0xf]
      %v3444 = vld [vmem:[%s603 + $0x2c] sm:$0xf]
      %v3445 = vld [vmem:[%s603 + $0x30] sm:$0xf]
      %v3446 = vld [vmem:[%s603 + $0x34] sm:$0xf]
      %v3447 = vld [vmem:[%s603 + $0x38] sm:$0xf]
      %v3448 = vld [vmem:[%s603 + $0x3c] sm:$0xf]
      %v3465 = vunpack.c.l.b16 %v3433
      %v3466 = vunpack.c.l.b16 %v3434
      %v3467 = vunpack.c.l.b16 %v3435
      %v3468 = vunpack.c.l.b16 %v3436
      %v3469 = vunpack.c.l.b16 %v3437
      %v3470 = vunpack.c.l.b16 %v3438
      %v3471 = vunpack.c.l.b16 %v3439
      %v3472 = vunpack.c.l.b16 %v3440
      %v3473 = vunpack.c.l.b16 %v3441
      %v3474 = vunpack.c.l.b16 %v3442
      %v3475 = vunpack.c.l.b16 %v3443
      %v3476 = vunpack.c.l.b16 %v3444
      %v3477 = vunpack.c.l.b16 %v3445
      %v3478 = vunpack.c.l.b16 %v3446
      %v3479 = vunpack.c.l.b16 %v3447
      %v3480 = vunpack.c.l.b16 %v3448
      %v3481 = vpack.c.b16 %v3466, %v3465
      %v3482 = vpack.c.b16 %v3468, %v3467
      %v3483 = vpack.c.b16 %v3470, %v3469
      %v3484 = vpack.c.b16 %v3472, %v3471
      %v3485 = vpack.c.b16 %v3474, %v3473
      %v3486 = vpack.c.b16 %v3476, %v3475
      %v3487 = vpack.c.b16 %v3478, %v3477
      %v3488 = vpack.c.b16 %v3480, %v3479
      %3497 = vmatprep.subr.bf16.mxu0 0
      %3498 = vmatpush1.bf16.msra.mxu0 %v3481
      %3499 = vmatprep.subr.bf16.mxu0 0
      %3500 = vmatpush1.bf16.msra.mxu0 %v3482
      %3501 = vmatprep.subr.bf16.mxu0 0
      %3502 = vmatpush1.bf16.msra.mxu0 %v3483
      %3503 = vmatprep.subr.bf16.mxu0 0
      %3504 = vmatpush1.bf16.msra.mxu0 %v3484
      %3505 = vmatprep.subr.bf16.mxu0 0
      %3506 = vmatpush1.bf16.msra.mxu0 %v3485
      %3507 = vmatprep.subr.bf16.mxu0 0
      %3508 = vmatpush1.bf16.msra.mxu0 %v3486
      %3509 = vmatprep.subr.bf16.mxu0 0
      %3510 = vmatpush1.bf16.msra.mxu0 %v3487
      %3511 = vmatprep.subr.bf16.mxu0 0
      %3512 = vmatpush1.bf16.msra.mxu0 %v3488
      %3513 = vmatprep.subr.bf16.mxu0 0
      %3514 = vmatpush1.bf16.msra.mxu0 0
      %3515 = vmatprep.subr.bf16.mxu0 0
      %3516 = vmatpush1.bf16.msra.mxu0 0
      %3517 = vmatprep.subr.bf16.mxu0 0
      %3518 = vmatpush1.bf16.msra.mxu0 0
      %3519 = vmatprep.subr.bf16.mxu0 0
      %3520 = vmatpush1.bf16.msra.mxu0 0
      %3521 = vmatprep.subr.bf16.mxu0 0
      %3522 = vmatpush1.bf16.msra.mxu0 0
      %3523 = vmatprep.subr.bf16.mxu0 0
      %3524 = vmatpush1.bf16.msra.mxu0 0
      %3525 = vmatprep.subr.bf16.mxu0 0
      %3526 = vmatpush1.bf16.msra.mxu0 0
      %3527 = vmatprep.subr.bf16.mxu0 0
      %3528 = vmatpush1.bf16.msra.mxu0 0
      %3529 = vmatprep.mubr.bf16.mxu0 0
      %3530 = vmatmul.mubr.bf16.gmra.mrb[0].mxu0 %v3432
      %v3531 = vpop.f32.mrb[0].mxu0
      %v3532 = vadd.f32 0.0, %v3531
      %v3533 = vpop.f32.mrb[0].mxu0
      %v3534 = vpop.f32.mrb[0].mxu0
      %v3535 = vadd.f32 0.0, %v3534
      %v3536 = vpop.f32.mrb[0].mxu0
      %3537 = vdwg.mxu0
      %v3538 = vadd.f32 %v3300, %v3532
      %v3539 = vadd.f32 %v3301, %v3535
      %v3540 = vld [vmem:[%s606] sm:$0x1]
      %v3542 = vlaneseq
      %v3543 = vshrl.u32 %v3542, 7
      %v3544 = vsub.s32 0, %v3543
      %v3545 = vrot.slane %v3540, %v3544
      %v3547 = vadd.f32 %v3538, %v3545
      %v3548 = vadd.f32 %v3539, %v3545
      %p3549 = scmp.lt.s32.totalorder %s30, 1
      // Predicated region
      $region112: #{bert_embedder_forward.1} parent=71 // pred_check
        %p3550 = pneg %p3549
      $region113: #{bert_embedder_forward.1} parent=71 // pred_check_branch
        %3552 = sbr.rel (%p3550) target = $region115
      $region114: #{bert_embedder_forward.1} parent=71 // pred_region
        %3553 = vst.msk [vmem:[%s611] sm:$0xff] %vm671, %v3547
        %3554 = vst.msk [vmem:[%s611 + $0x8] sm:$0xff] %vm671, %v3548
      $region115: #{bert_embedder_forward.1} parent=71 // pred_fallthru
        _
      %p3555 = scmp.eq.s32.totalorder %s30, 1
      // Predicated region
      $region116: #{bert_embedder_forward.1} parent=71 // pred_check
        %p3556 = pneg %p3555
      $region117: #{bert_embedder_forward.1} parent=71 // pred_check_branch
        %3558 = sbr.rel (%p3556) target = $region119
      $region118: #{bert_embedder_forward.1} parent=71 // pred_region
        %v3559 = vld [vmem:[%s12] sm:$0x1]
        %v3560 = vld [vmem:[%s13] sm:$0x1]
        %v3561 = vsel %vm671, %v3547, 0.0
        %3562 = vadd.xlane.f32.xlu0 %v3561
        %v3563 = vpop.xlane.xlu0 %3562
        %v3564 = vsel %vm671, %v3548, 0.0
        %3565 = vadd.xlane.f32.xlu0 %v3564
        %v3566 = vpop.xlane.xlu0 %3565
        %v3567 = vmul.f32 %v3563, %v678
        %v3568 = vmul.f32 %v3566, %v678
        %v3569 = vsub.f32 %v3547, %v3567
        %v3570 = vsub.f32 %v3548, %v3568
        %v3571 = vmul.f32 %v3569, %v3569
        %v3572 = vmul.f32 %v3570, %v3570
        %v3573 = vsel %vm671, %v3571, 0.0
        %3574 = vadd.xlane.f32.xlu0 %v3573
        %v3575 = vpop.xlane.xlu0 %3574
        %v3576 = vsel %vm671, %v3572, 0.0
        %3577 = vadd.xlane.f32.xlu0 %v3576
        %v3578 = vpop.xlane.xlu0 %3577
        %v3579 = vmul.f32 %v3575, %v678
        %v3580 = vmul.f32 %v3578, %v678
        %v3581 = vadd.f32 %v3579, 1e-05
        %v3582 = vadd.f32 %v3580, 1e-05
        %v3583 = vrsqrt.pop %v3581
        %v3584 = vrsqrt.pop %v3582
        %v3585 = vmul.f32 %v3569, %v3583
        %v3586 = vmul.f32 %v3570, %v3584
        %v3588 = vlaneseq
        %v3589 = vshrl.u32 %v3588, 7
        %v3590 = vsub.s32 0, %v3589
        %v3591 = vrot.slane %v3559, %v3590
        %v3593 = vmul.f32 %v3585, %v3591
        %v3594 = vmul.f32 %v3586, %v3591
        %v3596 = vlaneseq
        %v3597 = vshrl.u32 %v3596, 7
        %v3598 = vsub.s32 0, %v3597
        %v3599 = vrot.slane %v3560, %v3598
        %v3601 = vadd.f32 %v3593, %v3599
        %v3602 = vadd.f32 %v3594, %v3599
        %3603 = vst.msk [vmem:[%s611] sm:$0xff] %vm671, %v3601
        %3604 = vst.msk [vmem:[%s611 + $0x8] sm:$0xff] %vm671, %v3602
      $region119: #{bert_embedder_forward.1} parent=71 // pred_fallthru
        _
      %s3605 = smul.u32 2, %s29
      %p3606 = scmp.lt.s32.totalorder %s3605, 1
      %s3607 = scalar_select %p3606, %s3605, 1
      %s3608 = smul.addr %s3607, 8
      %s3609 = scalar_lea.vmem %s14, %s3608
      // Predicated region
      $region120: #{bert_embedder_forward.1} parent=71 // pred_check
        %p3610 = pneg %p383
      $region121: #{bert_embedder_forward.1} parent=71 // pred_check_branch
        %3612 = sbr.rel (%p3610) target = $region123
      $region122: #{bert_embedder_forward.1} parent=71 // pred_region
        %s3613 = smul.u32 2, %s29
      $region123: #{bert_embedder_forward.1} parent=71 // pred_fallthru
        _
      // Predicated region
      $region124: #{bert_embedder_forward.1} parent=71 // pred_check
        %p3614 = pneg %p383
      $region125: #{bert_embedder_forward.1} parent=71 // pred_check_branch
        %3616 = sbr.rel (%p3614) target = $region127
      $region126: #{bert_embedder_forward.1} parent=71 // pred_region
        %s3617 = smul.u32 2, %s29
        %p3618 = scmp.lt.s32.totalorder %s3617, 1
        %s3619 = scalar_select %p3618, %s3617, 1
        %s3620 = smul.addr %s3619, 8
        %s3621 = scalar_lea.vmem %s14, %s3620
      $region127: #{bert_embedder_forward.1} parent=71 // pred_fallthru
        _
    $region72: #{bert_embedder_forward.1} parent=5 // pred_fallthru
      _
    %p3622 = scmp.le.s32.totalorder 2, %s20
    // Predicated region
    $region128: #{bert_embedder_forward.1} parent=5 // pred_check
      %p3623 = pneg %p3622
    $region129: #{bert_embedder_forward.1} parent=5 // pred_check_branch
      %3625 = sbr.rel (%p3623) target = $region131
    $region130: #{bert_embedder_forward.1} parent=5 // pred_region
      %s3626 = ssub.s32 %s20, 2
    $region131: #{bert_embedder_forward.1} parent=5 // pred_fallthru
      _
  $region6: #{bert_embedder_forward.1} parent=0 // loop_footer
    %s24 = sadd.s32 1, %s20
  $region7: #{bert_embedder_forward.1} parent=0 // loop_footer_branch
    %19 = sbr.rel target = $region3
  $region8: #{bert_embedder_forward.1} parent=0 // loop_exit
    _

</llo_original>
